<compile_context>
chip_gen: v6e
topology: v6e:2x2x1
jax: 0.10.0
libtpu: 0.0.40
codegen_flags: <defaults>
</compile_context>

<pallas_src>
import functools
import math

import jax
import jax.numpy as jnp
from jax.experimental import pallas as pl
from jax.experimental.pallas import tpu as pltpu


# ----------------------------- fused ViT kernel -----------------------------

def _vit_kernel(patches_ref, pw_ref, pb_ref, cls_ref, pos_ref,
                ln1g_ref, ln1b_ref, wq_ref, wk_ref, wv_ref,
                bq_ref, bk_ref, bv_ref, wo_ref, bo_ref,
                ln2g_ref, ln2b_ref, wm1_ref, bm1_ref, wm2_ref, bm2_ref,
                clsg_ref, clsb_ref, hw_ref, hb_ref,
                out_ref, *, num_layers, num_heads, head_dim):
    f32 = jnp.float32

    def ln(x, g, b):
        mu = jnp.mean(x, axis=-1, keepdims=True)
        var = jnp.mean((x - mu) ** 2, axis=-1, keepdims=True)
        return (x - mu) * jax.lax.rsqrt(var + 1e-5) * g + b

    def mm(a, w):
        return jnp.dot(a, w, preferred_element_type=f32)

    # ---- patch embedding (conv-as-matmul) + CLS token + positional embed ----
    patches = patches_ref[0].astype(f32)                          # (N, C*P*P)
    emb = mm(patches, pw_ref[...]) + pb_ref[...]                  # (N, E)
    h = jnp.concatenate([cls_ref[...], emb], axis=0) + pos_ref[...]   # (S, E)
    # embedding dropout: identity in eval mode

    scale = 1.0 / math.sqrt(head_dim)

    for l in range(num_layers):
        # ---------------- MSA block (pre-LN) ----------------
        x = ln(h, ln1g_ref[l], ln1b_ref[l])                       # (S, E)
        q = (mm(x, wq_ref[l]) + bq_ref[l]) * scale                # (S, E)
        k = mm(x, wk_ref[l]) + bk_ref[l]
        v = mm(x, wv_ref[l]) + bv_ref[l]
        heads = []
        for hh in range(num_heads):
            lo, hi = hh * head_dim, (hh + 1) * head_dim
            s = mm(q[:, lo:hi], k[:, lo:hi].T)                    # (S, S)
            s = s - jnp.max(s, axis=-1, keepdims=True)
            p = jnp.exp(s)
            p = p * pl.reciprocal(jnp.sum(p, axis=-1, keepdims=True), approx=True)
            heads.append(mm(p, v[:, lo:hi]))                      # (S, head_dim)
        attn = jnp.concatenate(heads, axis=-1)                    # (S, E) lane-dense
        h = h + mm(attn, wo_ref[l]) + bo_ref[l]                   # residual
        # attention / projection dropouts: identity in eval mode

        # ---------------- MLP block (pre-LN) ----------------
        x = ln(h, ln2g_ref[l], ln2b_ref[l])
        m = mm(x, wm1_ref[l]) + bm1_ref[l]                        # (S, mlp)
        m = 0.5 * m * (1.0 + jax.lax.erf(m * (1.0 / math.sqrt(2.0))))  # exact GELU
        h = h + mm(m, wm2_ref[l]) + bm2_ref[l]                    # residual

    # ---------------- classifier on CLS token ----------------
    cls_feat = ln(h[0:1, :], clsg_ref[...], clsb_ref[...])        # (1, E)
    logits = mm(cls_feat, hw_ref[...]) + hb_ref[...]              # (1, num_classes)
    out_ref[0] = logits.astype(out_ref.dtype)


# ------------------------------ ViT in JAX ----------------------------------

class Config:
    img_size = 16
    in_channels = 3
    patch_size = 4
    num_layers = 2
    embedding_dim = 64
    mlp_size = 128
    num_heads = 4
    num_classes = 16


def init_params(key, cfg):
    E = cfg.embedding_dim
    C = cfg.in_channels
    P = cfg.patch_size
    N = (cfg.img_size // P) ** 2
    keys = list(jax.random.split(key, 16 + 16 * cfg.num_layers))
    kit = iter(keys)

    def nrm(shape, scale=0.02):
        return (scale * jax.random.normal(next(kit), shape)).astype(jnp.float32)

    params = {
        # conv-as-matmul weight: (C*P*P, E)
        "patch_w": nrm((C * P * P, E)),
        "patch_b": nrm((E,)),
        "cls": nrm((1, 1, E), scale=1.0),
        "pos": nrm((1, N + 1, E), scale=1.0),
        "layers": [],
        "cls_ln_g": jnp.ones((E,), jnp.float32),
        "cls_ln_b": jnp.zeros((E,), jnp.float32),
        "head_w": nrm((E, cfg.num_classes)),
        "head_b": jnp.zeros((cfg.num_classes,), jnp.float32),
    }
    for _ in range(cfg.num_layers):
        layer = {
            "ln1_g": jnp.ones((E,), jnp.float32),
            "ln1_b": jnp.zeros((E,), jnp.float32),
            "w_qkv": nrm((E, 3 * E)),
            "b_qkv": jnp.zeros((3 * E,), jnp.float32),
            "w_out": nrm((E, E)),
            "b_out": jnp.zeros((E,), jnp.float32),
            "ln2_g": jnp.ones((E,), jnp.float32),
            "ln2_b": jnp.zeros((E,), jnp.float32),
            "w_mlp1": nrm((E, cfg.mlp_size)),
            "b_mlp1": jnp.zeros((cfg.mlp_size,), jnp.float32),
            "w_mlp2": nrm((cfg.mlp_size, E)),
            "b_mlp2": jnp.zeros((E,), jnp.float32),
        }
        params["layers"].append(layer)
    return params


def vit_forward(x, params, cfg):
    B, C, H, W = x.shape
    P = cfg.patch_size
    E = cfg.embedding_dim
    Mlp = cfg.mlp_size
    L = cfg.num_layers
    NC = cfg.num_classes
    nH, nW = H // P, W // P
    N = nH * nW
    S = N + 1
    CPP = C * P * P

    # --- plain-JAX glue: patch extraction (matches conv flatten(2,3).permute) ---
    patches = x.reshape(B, C, nH, P, nW, P).transpose(0, 2, 4, 1, 3, 5)
    patches = patches.reshape(B, N, CPP)

    # --- plain-JAX glue: stack per-layer weights on a leading layer axis ---
    def stack(name):
        return jnp.stack([lyr[name] for lyr in params["layers"]], axis=0)

    w_qkv = stack("w_qkv")                                   # (L, E, 3E)
    b_qkv = stack("b_qkv")                                   # (L, 3E)
    wq, wk, wv = w_qkv[:, :, :E], w_qkv[:, :, E:2 * E], w_qkv[:, :, 2 * E:]
    bq = b_qkv[:, :E].reshape(L, 1, E)
    bk = b_qkv[:, E:2 * E].reshape(L, 1, E)
    bv = b_qkv[:, 2 * E:].reshape(L, 1, E)
    ln1g = stack("ln1_g").reshape(L, 1, E)
    ln1b = stack("ln1_b").reshape(L, 1, E)
    wo = stack("w_out")                                      # (L, E, E)
    bo = stack("b_out").reshape(L, 1, E)
    ln2g = stack("ln2_g").reshape(L, 1, E)
    ln2b = stack("ln2_b").reshape(L, 1, E)
    wm1 = stack("w_mlp1")                                    # (L, E, Mlp)
    bm1 = stack("b_mlp1").reshape(L, 1, Mlp)
    wm2 = stack("w_mlp2")                                    # (L, Mlp, E)
    bm2 = stack("b_mlp2").reshape(L, 1, E)

    def rep(*shape):  # weight/bias block: whole array, resident across grid steps
        return pl.BlockSpec(shape, lambda b: (0,) * len(shape))

    kernel = functools.partial(
        _vit_kernel, num_layers=L, num_heads=cfg.num_heads,
        head_dim=E // cfg.num_heads)

    out = pl.pallas_call(
        kernel,
        out_shape=jax.ShapeDtypeStruct((B, 1, NC), jnp.float32),
        grid=(B,),
        in_specs=[
            pl.BlockSpec((1, N, CPP), lambda b: (b, 0, 0)),  # patches
            rep(CPP, E), rep(1, E),                          # patch_w, patch_b
            rep(1, E), rep(S, E),                            # cls, pos
            rep(L, 1, E), rep(L, 1, E),                      # ln1 gamma/beta
            rep(L, E, E), rep(L, E, E), rep(L, E, E),        # wq, wk, wv
            rep(L, 1, E), rep(L, 1, E), rep(L, 1, E),        # bq, bk, bv
            rep(L, E, E), rep(L, 1, E),                      # w_out, b_out
            rep(L, 1, E), rep(L, 1, E),                      # ln2 gamma/beta
            rep(L, E, Mlp), rep(L, 1, Mlp),                  # w_mlp1, b_mlp1
            rep(L, Mlp, E), rep(L, 1, E),                    # w_mlp2, b_mlp2
            rep(1, E), rep(1, E),                            # cls LN gamma/beta
            rep(E, NC), rep(1, NC),                          # head w/b
        ],
        out_specs=pl.BlockSpec((1, 1, NC), lambda b: (b, 0, 0)),
        compiler_params=pltpu.CompilerParams(
            dimension_semantics=("parallel",)),
    )(
        patches,
        params["patch_w"], params["patch_b"].reshape(1, E),
        params["cls"].reshape(1, E), params["pos"].reshape(S, E),
        ln1g, ln1b, wq, wk, wv, bq, bk, bv, wo, bo,
        ln2g, ln2b, wm1, bm1, wm2, bm2,
        params["cls_ln_g"].reshape(1, E), params["cls_ln_b"].reshape(1, E),
        params["head_w"], params["head_b"].reshape(1, NC),
    )
    return out[:, 0, :]


if __name__ == "__main__":
    cfg = Config()
    key = jax.random.PRNGKey(0)
    kx, kp = jax.random.split(key)
    x = jax.random.normal(kx, (2, cfg.in_channels, cfg.img_size, cfg.img_size),
                          dtype=jnp.float32)
    params = init_params(kp, cfg)

    fwd = jax.jit(functools.partial(vit_forward, cfg=cfg))
    logits = fwd(x, params)
    logits = jax.block_until_ready(logits)
    assert logits.shape == (2, cfg.num_classes)
    assert bool(jnp.all(jnp.isfinite(logits)))
    print("KERNEL_OK")
</pallas_src>

<mosaic_0001>
module attributes {stable_mosaic.version = 11 : i64} {
  func.func @_vit_kernel(%arg0: i32, %arg1: memref<1x16x48xf32, #tpu.memory_space<vmem>>, %arg2: memref<48x64xf32, #tpu.memory_space<vmem>>, %arg3: memref<1x64xf32, #tpu.memory_space<vmem>>, %arg4: memref<1x64xf32, #tpu.memory_space<vmem>>, %arg5: memref<17x64xf32, #tpu.memory_space<vmem>>, %arg6: memref<2x1x64xf32, #tpu.memory_space<vmem>>, %arg7: memref<2x1x64xf32, #tpu.memory_space<vmem>>, %arg8: memref<2x64x64xf32, #tpu.memory_space<vmem>>, %arg9: memref<2x64x64xf32, #tpu.memory_space<vmem>>, %arg10: memref<2x64x64xf32, #tpu.memory_space<vmem>>, %arg11: memref<2x1x64xf32, #tpu.memory_space<vmem>>, %arg12: memref<2x1x64xf32, #tpu.memory_space<vmem>>, %arg13: memref<2x1x64xf32, #tpu.memory_space<vmem>>, %arg14: memref<2x64x64xf32, #tpu.memory_space<vmem>>, %arg15: memref<2x1x64xf32, #tpu.memory_space<vmem>>, %arg16: memref<2x1x64xf32, #tpu.memory_space<vmem>>, %arg17: memref<2x1x64xf32, #tpu.memory_space<vmem>>, %arg18: memref<2x64x128xf32, #tpu.memory_space<vmem>>, %arg19: memref<2x1x128xf32, #tpu.memory_space<vmem>>, %arg20: memref<2x128x64xf32, #tpu.memory_space<vmem>>, %arg21: memref<2x1x64xf32, #tpu.memory_space<vmem>>, %arg22: memref<1x64xf32, #tpu.memory_space<vmem>>, %arg23: memref<1x64xf32, #tpu.memory_space<vmem>>, %arg24: memref<64x16xf32, #tpu.memory_space<vmem>>, %arg25: memref<1x16xf32, #tpu.memory_space<vmem>>, %arg26: memref<1x1x16xf32, #tpu.memory_space<vmem>>) attributes {dimension_semantics = [#tpu.dimension_semantics<parallel>], iteration_bounds = array<i64: 2>, scalar_prefetch = 0 : i64, scratch_operands = 0 : i64, tpu.core_type = #tpu.core_type<tc>, window_params = [{transform_indices = @transform_0, window_bounds = array<i64: 1, 16, 48>}, {pipeline_mode = #tpu.pipeline_mode<synchronous>, transform_indices = @transform_1, window_bounds = array<i64: 48, 64>}, {pipeline_mode = #tpu.pipeline_mode<synchronous>, transform_indices = @transform_2, window_bounds = array<i64: 1, 64>}, {pipeline_mode = #tpu.pipeline_mode<synchronous>, transform_indices = @transform_3, window_bounds = array<i64: 1, 64>}, {pipeline_mode = #tpu.pipeline_mode<synchronous>, transform_indices = @transform_4, window_bounds = array<i64: 17, 64>}, {pipeline_mode = #tpu.pipeline_mode<synchronous>, transform_indices = @transform_5, window_bounds = array<i64: 2, 1, 64>}, {pipeline_mode = #tpu.pipeline_mode<synchronous>, transform_indices = @transform_6, window_bounds = array<i64: 2, 1, 64>}, {pipeline_mode = #tpu.pipeline_mode<synchronous>, transform_indices = @transform_7, window_bounds = array<i64: 2, 64, 64>}, {pipeline_mode = #tpu.pipeline_mode<synchronous>, transform_indices = @transform_8, window_bounds = array<i64: 2, 64, 64>}, {pipeline_mode = #tpu.pipeline_mode<synchronous>, transform_indices = @transform_9, window_bounds = array<i64: 2, 64, 64>}, {pipeline_mode = #tpu.pipeline_mode<synchronous>, transform_indices = @transform_10, window_bounds = array<i64: 2, 1, 64>}, {pipeline_mode = #tpu.pipeline_mode<synchronous>, transform_indices = @transform_11, window_bounds = array<i64: 2, 1, 64>}, {pipeline_mode = #tpu.pipeline_mode<synchronous>, transform_indices = @transform_12, window_bounds = array<i64: 2, 1, 64>}, {pipeline_mode = #tpu.pipeline_mode<synchronous>, transform_indices = @transform_13, window_bounds = array<i64: 2, 64, 64>}, {pipeline_mode = #tpu.pipeline_mode<synchronous>, transform_indices = @transform_14, window_bounds = array<i64: 2, 1, 64>}, {pipeline_mode = #tpu.pipeline_mode<synchronous>, transform_indices = @transform_15, window_bounds = array<i64: 2, 1, 64>}, {pipeline_mode = #tpu.pipeline_mode<synchronous>, transform_indices = @transform_16, window_bounds = array<i64: 2, 1, 64>}, {pipeline_mode = #tpu.pipeline_mode<synchronous>, transform_indices = @transform_17, window_bounds = array<i64: 2, 64, 128>}, {pipeline_mode = #tpu.pipeline_mode<synchronous>, transform_indices = @transform_18, window_bounds = array<i64: 2, 1, 128>}, {pipeline_mode = #tpu.pipeline_mode<synchronous>, transform_indices = @transform_19, window_bounds = array<i64: 2, 128, 64>}, {pipeline_mode = #tpu.pipeline_mode<synchronous>, transform_indices = @transform_20, window_bounds = array<i64: 2, 1, 64>}, {pipeline_mode = #tpu.pipeline_mode<synchronous>, transform_indices = @transform_21, window_bounds = array<i64: 1, 64>}, {pipeline_mode = #tpu.pipeline_mode<synchronous>, transform_indices = @transform_22, window_bounds = array<i64: 1, 64>}, {pipeline_mode = #tpu.pipeline_mode<synchronous>, transform_indices = @transform_23, window_bounds = array<i64: 64, 16>}, {pipeline_mode = #tpu.pipeline_mode<synchronous>, transform_indices = @transform_24, window_bounds = array<i64: 1, 16>}, {transform_indices = @transform_25, window_bounds = array<i64: 1, 1, 16>}]} {
    %c0 = arith.constant 0 : index
    %c0_0 = arith.constant 0 : index
    %c0_1 = arith.constant 0 : index
    %0 = vector.load %arg1[%c0, %c0_0, %c0_1] : memref<1x16x48xf32, #tpu.memory_space<vmem>>, vector<1x16x48xf32>
    %1 = vector.shape_cast %0 : vector<1x16x48xf32> to vector<16x48xf32>
    %c0_2 = arith.constant 0 : index
    %c0_3 = arith.constant 0 : index
    %2 = vector.load %arg2[%c0_2, %c0_3] : memref<48x64xf32, #tpu.memory_space<vmem>>, vector<48x64xf32>
    %cst = arith.constant dense<0.000000e+00> : vector<16x64xf32>
    %3 = tpu.matmul %1, %2, %cst {dimension_numbers = #tpu.dot_dimension_numbers<[1], [0], [0], [1], [0, 0, 1, 1], [], []>} : vector<16x48xf32>, vector<48x64xf32>, vector<16x64xf32> -> vector<16x64xf32>
    %c0_4 = arith.constant 0 : index
    %c0_5 = arith.constant 0 : index
    %4 = vector.load %arg3[%c0_4, %c0_5] : memref<1x64xf32, #tpu.memory_space<vmem>>, vector<1x64xf32>
    %5 = vector.broadcast %4 : vector<1x64xf32> to vector<16x64xf32>
    %6 = arith.addf %3, %5 : vector<16x64xf32>
    %c0_6 = arith.constant 0 : index
    %c0_7 = arith.constant 0 : index
    %7 = vector.load %arg4[%c0_6, %c0_7] : memref<1x64xf32, #tpu.memory_space<vmem>>, vector<1x64xf32>
    %8 = tpu.concatenate %7, %6 in 0 : vector<1x64xf32>, vector<16x64xf32> -> vector<17x64xf32>
    %c0_8 = arith.constant 0 : index
    %c0_9 = arith.constant 0 : index
    %9 = vector.load %arg5[%c0_8, %c0_9] : memref<17x64xf32, #tpu.memory_space<vmem>>, vector<17x64xf32>
    %10 = arith.addf %8, %9 : vector<17x64xf32>
    %c0_10 = arith.constant 0 : index
    %c0_11 = arith.constant 0 : index
    %c0_12 = arith.constant 0 : index
    %11 = vector.load %arg6[%c0_10, %c0_11, %c0_12] : memref<2x1x64xf32, #tpu.memory_space<vmem>>, vector<1x1x64xf32>
    %12 = vector.shape_cast %11 : vector<1x1x64xf32> to vector<1x64xf32>
    %c0_13 = arith.constant 0 : index
    %c0_14 = arith.constant 0 : index
    %c0_15 = arith.constant 0 : index
    %13 = vector.load %arg7[%c0_13, %c0_14, %c0_15] : memref<2x1x64xf32, #tpu.memory_space<vmem>>, vector<1x1x64xf32>
    %14 = vector.shape_cast %13 : vector<1x1x64xf32> to vector<1x64xf32>
    %cst_16 = arith.constant dense<0.000000e+00> : vector<17xf32>
    %15 = vector.multi_reduction <add>, %10, %cst_16 [1] : vector<17x64xf32> to vector<17xf32>
    %16 = vector.shape_cast %15 : vector<17xf32> to vector<17x1xf32>
    %cst_17 = arith.constant 6.400000e+01 : f32
    %17 = vector.broadcast %cst_17 : f32 to vector<17x1xf32>
    %18 = arith.divf %16, %17 : vector<17x1xf32>
    %19 = vector.broadcast %18 : vector<17x1xf32> to vector<17x64xf32>
    %20 = arith.subf %10, %19 : vector<17x64xf32>
    %21 = arith.mulf %20, %20 : vector<17x64xf32>
    %cst_18 = arith.constant dense<0.000000e+00> : vector<17xf32>
    %22 = vector.multi_reduction <add>, %21, %cst_18 [1] : vector<17x64xf32> to vector<17xf32>
    %23 = vector.shape_cast %22 : vector<17xf32> to vector<17x1xf32>
    %cst_19 = arith.constant 6.400000e+01 : f32
    %24 = vector.broadcast %cst_19 : f32 to vector<17x1xf32>
    %25 = arith.divf %23, %24 : vector<17x1xf32>
    %26 = vector.broadcast %18 : vector<17x1xf32> to vector<17x64xf32>
    %27 = arith.subf %10, %26 : vector<17x64xf32>
    %cst_20 = arith.constant 9.99999974E-6 : f32
    %28 = vector.broadcast %cst_20 : f32 to vector<17x1xf32>
    %29 = arith.addf %25, %28 : vector<17x1xf32>
    %30 = math.rsqrt %29 : vector<17x1xf32>
    %31 = vector.broadcast %30 : vector<17x1xf32> to vector<17x64xf32>
    %32 = arith.mulf %27, %31 : vector<17x64xf32>
    %33 = vector.broadcast %12 : vector<1x64xf32> to vector<17x64xf32>
    %34 = arith.mulf %32, %33 : vector<17x64xf32>
    %35 = vector.broadcast %14 : vector<1x64xf32> to vector<17x64xf32>
    %36 = arith.addf %34, %35 : vector<17x64xf32>
    %c0_21 = arith.constant 0 : index
    %c0_22 = arith.constant 0 : index
    %c0_23 = arith.constant 0 : index
    %37 = vector.load %arg8[%c0_21, %c0_22, %c0_23] : memref<2x64x64xf32, #tpu.memory_space<vmem>>, vector<1x64x64xf32>
    %38 = vector.shape_cast %37 : vector<1x64x64xf32> to vector<64x64xf32>
    %cst_24 = arith.constant dense<0.000000e+00> : vector<17x64xf32>
    %39 = tpu.matmul %36, %38, %cst_24 {dimension_numbers = #tpu.dot_dimension_numbers<[1], [0], [0], [1], [0, 0, 1, 1], [], []>} : vector<17x64xf32>, vector<64x64xf32>, vector<17x64xf32> -> vector<17x64xf32>
    %c0_25 = arith.constant 0 : index
    %c0_26 = arith.constant 0 : index
    %c0_27 = arith.constant 0 : index
    %40 = vector.load %arg11[%c0_25, %c0_26, %c0_27] : memref<2x1x64xf32, #tpu.memory_space<vmem>>, vector<1x1x64xf32>
    %41 = vector.shape_cast %40 : vector<1x1x64xf32> to vector<1x64xf32>
    %42 = vector.broadcast %41 : vector<1x64xf32> to vector<17x64xf32>
    %43 = arith.addf %39, %42 : vector<17x64xf32>
    %cst_28 = arith.constant 2.500000e-01 : f32
    %44 = vector.broadcast %cst_28 : f32 to vector<17x64xf32>
    %45 = arith.mulf %43, %44 : vector<17x64xf32>
    %c0_29 = arith.constant 0 : index
    %c0_30 = arith.constant 0 : index
    %c0_31 = arith.constant 0 : index
    %46 = vector.load %arg9[%c0_29, %c0_30, %c0_31] : memref<2x64x64xf32, #tpu.memory_space<vmem>>, vector<1x64x64xf32>
    %47 = vector.shape_cast %46 : vector<1x64x64xf32> to vector<64x64xf32>
    %cst_32 = arith.constant dense<0.000000e+00> : vector<17x64xf32>
    %48 = tpu.matmul %36, %47, %cst_32 {dimension_numbers = #tpu.dot_dimension_numbers<[1], [0], [0], [1], [0, 0, 1, 1], [], []>} : vector<17x64xf32>, vector<64x64xf32>, vector<17x64xf32> -> vector<17x64xf32>
    %c0_33 = arith.constant 0 : index
    %c0_34 = arith.constant 0 : index
    %c0_35 = arith.constant 0 : index
    %49 = vector.load %arg12[%c0_33, %c0_34, %c0_35] : memref<2x1x64xf32, #tpu.memory_space<vmem>>, vector<1x1x64xf32>
    %50 = vector.shape_cast %49 : vector<1x1x64xf32> to vector<1x64xf32>
    %51 = vector.broadcast %50 : vector<1x64xf32> to vector<17x64xf32>
    %52 = arith.addf %48, %51 : vector<17x64xf32>
    %c0_36 = arith.constant 0 : index
    %c0_37 = arith.constant 0 : index
    %c0_38 = arith.constant 0 : index
    %53 = vector.load %arg10[%c0_36, %c0_37, %c0_38] : memref<2x64x64xf32, #tpu.memory_space<vmem>>, vector<1x64x64xf32>
    %54 = vector.shape_cast %53 : vector<1x64x64xf32> to vector<64x64xf32>
    %cst_39 = arith.constant dense<0.000000e+00> : vector<17x64xf32>
    %55 = tpu.matmul %36, %54, %cst_39 {dimension_numbers = #tpu.dot_dimension_numbers<[1], [0], [0], [1], [0, 0, 1, 1], [], []>} : vector<17x64xf32>, vector<64x64xf32>, vector<17x64xf32> -> vector<17x64xf32>
    %c0_40 = arith.constant 0 : index
    %c0_41 = arith.constant 0 : index
    %c0_42 = arith.constant 0 : index
    %56 = vector.load %arg13[%c0_40, %c0_41, %c0_42] : memref<2x1x64xf32, #tpu.memory_space<vmem>>, vector<1x1x64xf32>
    %57 = vector.shape_cast %56 : vector<1x1x64xf32> to vector<1x64xf32>
    %58 = vector.broadcast %57 : vector<1x64xf32> to vector<17x64xf32>
    %59 = arith.addf %55, %58 : vector<17x64xf32>
    %60 = vector.extract_strided_slice %45 {offsets = [0, 0], sizes = [17, 16], strides = [1, 1]} : vector<17x64xf32> to vector<17x16xf32>
    %61 = vector.extract_strided_slice %52 {offsets = [0, 0], sizes = [17, 16], strides = [1, 1]} : vector<17x64xf32> to vector<17x16xf32>
    %62 = tpu.transpose %61, [1, 0] : vector<17x16xf32> -> vector<16x17xf32>
    %cst_43 = arith.constant dense<0.000000e+00> : vector<17x17xf32>
    %63 = tpu.matmul %60, %62, %cst_43 {dimension_numbers = #tpu.dot_dimension_numbers<[1], [0], [0], [1], [0, 0, 1, 1], [], []>} : vector<17x16xf32>, vector<16x17xf32>, vector<17x17xf32> -> vector<17x17xf32>
    %cst_44 = arith.constant dense<0xFF800000> : vector<17xf32>
    %64 = vector.multi_reduction <maximumf>, %63, %cst_44 [1] : vector<17x17xf32> to vector<17xf32>
    %65 = vector.shape_cast %64 : vector<17xf32> to vector<17x1xf32>
    %66 = vector.broadcast %65 : vector<17x1xf32> to vector<17x17xf32>
    %67 = arith.subf %63, %66 : vector<17x17xf32>
    %68 = math.exp %67 : vector<17x17xf32>
    %cst_45 = arith.constant dense<0.000000e+00> : vector<17xf32>
    %69 = vector.multi_reduction <add>, %68, %cst_45 [1] : vector<17x17xf32> to vector<17xf32>
    %70 = vector.shape_cast %69 : vector<17xf32> to vector<17x1xf32>
    %71 = tpu.reciprocal %70 {approx = true} : vector<17x1xf32> -> vector<17x1xf32>
    %72 = vector.broadcast %71 : vector<17x1xf32> to vector<17x17xf32>
    %73 = arith.mulf %68, %72 : vector<17x17xf32>
    %74 = vector.extract_strided_slice %59 {offsets = [0, 0], sizes = [17, 16], strides = [1, 1]} : vector<17x64xf32> to vector<17x16xf32>
    %cst_46 = arith.constant dense<0.000000e+00> : vector<17x16xf32>
    %75 = tpu.matmul %73, %74, %cst_46 {dimension_numbers = #tpu.dot_dimension_numbers<[1], [0], [0], [1], [0, 0, 1, 1], [], []>} : vector<17x17xf32>, vector<17x16xf32>, vector<17x16xf32> -> vector<17x16xf32>
    %76 = vector.extract_strided_slice %45 {offsets = [0, 16], sizes = [17, 16], strides = [1, 1]} : vector<17x64xf32> to vector<17x16xf32>
    %77 = vector.extract_strided_slice %52 {offsets = [0, 16], sizes = [17, 16], strides = [1, 1]} : vector<17x64xf32> to vector<17x16xf32>
    %78 = tpu.transpose %77, [1, 0] : vector<17x16xf32> -> vector<16x17xf32>
    %cst_47 = arith.constant dense<0.000000e+00> : vector<17x17xf32>
    %79 = tpu.matmul %76, %78, %cst_47 {dimension_numbers = #tpu.dot_dimension_numbers<[1], [0], [0], [1], [0, 0, 1, 1], [], []>} : vector<17x16xf32>, vector<16x17xf32>, vector<17x17xf32> -> vector<17x17xf32>
    %cst_48 = arith.constant dense<0xFF800000> : vector<17xf32>
    %80 = vector.multi_reduction <maximumf>, %79, %cst_48 [1] : vector<17x17xf32> to vector<17xf32>
    %81 = vector.shape_cast %80 : vector<17xf32> to vector<17x1xf32>
    %82 = vector.broadcast %81 : vector<17x1xf32> to vector<17x17xf32>
    %83 = arith.subf %79, %82 : vector<17x17xf32>
    %84 = math.exp %83 : vector<17x17xf32>
    %cst_49 = arith.constant dense<0.000000e+00> : vector<17xf32>
    %85 = vector.multi_reduction <add>, %84, %cst_49 [1] : vector<17x17xf32> to vector<17xf32>
    %86 = vector.shape_cast %85 : vector<17xf32> to vector<17x1xf32>
    %87 = tpu.reciprocal %86 {approx = true} : vector<17x1xf32> -> vector<17x1xf32>
    %88 = vector.broadcast %87 : vector<17x1xf32> to vector<17x17xf32>
    %89 = arith.mulf %84, %88 : vector<17x17xf32>
    %90 = vector.extract_strided_slice %59 {offsets = [0, 16], sizes = [17, 16], strides = [1, 1]} : vector<17x64xf32> to vector<17x16xf32>
    %cst_50 = arith.constant dense<0.000000e+00> : vector<17x16xf32>
    %91 = tpu.matmul %89, %90, %cst_50 {dimension_numbers = #tpu.dot_dimension_numbers<[1], [0], [0], [1], [0, 0, 1, 1], [], []>} : vector<17x17xf32>, vector<17x16xf32>, vector<17x16xf32> -> vector<17x16xf32>
    %92 = vector.extract_strided_slice %45 {offsets = [0, 32], sizes = [17, 16], strides = [1, 1]} : vector<17x64xf32> to vector<17x16xf32>
    %93 = vector.extract_strided_slice %52 {offsets = [0, 32], sizes = [17, 16], strides = [1, 1]} : vector<17x64xf32> to vector<17x16xf32>
    %94 = tpu.transpose %93, [1, 0] : vector<17x16xf32> -> vector<16x17xf32>
    %cst_51 = arith.constant dense<0.000000e+00> : vector<17x17xf32>
    %95 = tpu.matmul %92, %94, %cst_51 {dimension_numbers = #tpu.dot_dimension_numbers<[1], [0], [0], [1], [0, 0, 1, 1], [], []>} : vector<17x16xf32>, vector<16x17xf32>, vector<17x17xf32> -> vector<17x17xf32>
    %cst_52 = arith.constant dense<0xFF800000> : vector<17xf32>
    %96 = vector.multi_reduction <maximumf>, %95, %cst_52 [1] : vector<17x17xf32> to vector<17xf32>
    %97 = vector.shape_cast %96 : vector<17xf32> to vector<17x1xf32>
    %98 = vector.broadcast %97 : vector<17x1xf32> to vector<17x17xf32>
    %99 = arith.subf %95, %98 : vector<17x17xf32>
    %100 = math.exp %99 : vector<17x17xf32>
    %cst_53 = arith.constant dense<0.000000e+00> : vector<17xf32>
    %101 = vector.multi_reduction <add>, %100, %cst_53 [1] : vector<17x17xf32> to vector<17xf32>
    %102 = vector.shape_cast %101 : vector<17xf32> to vector<17x1xf32>
    %103 = tpu.reciprocal %102 {approx = true} : vector<17x1xf32> -> vector<17x1xf32>
    %104 = vector.broadcast %103 : vector<17x1xf32> to vector<17x17xf32>
    %105 = arith.mulf %100, %104 : vector<17x17xf32>
    %106 = vector.extract_strided_slice %59 {offsets = [0, 32], sizes = [17, 16], strides = [1, 1]} : vector<17x64xf32> to vector<17x16xf32>
    %cst_54 = arith.constant dense<0.000000e+00> : vector<17x16xf32>
    %107 = tpu.matmul %105, %106, %cst_54 {dimension_numbers = #tpu.dot_dimension_numbers<[1], [0], [0], [1], [0, 0, 1, 1], [], []>} : vector<17x17xf32>, vector<17x16xf32>, vector<17x16xf32> -> vector<17x16xf32>
    %108 = vector.extract_strided_slice %45 {offsets = [0, 48], sizes = [17, 16], strides = [1, 1]} : vector<17x64xf32> to vector<17x16xf32>
    %109 = vector.extract_strided_slice %52 {offsets = [0, 48], sizes = [17, 16], strides = [1, 1]} : vector<17x64xf32> to vector<17x16xf32>
    %110 = tpu.transpose %109, [1, 0] : vector<17x16xf32> -> vector<16x17xf32>
    %cst_55 = arith.constant dense<0.000000e+00> : vector<17x17xf32>
    %111 = tpu.matmul %108, %110, %cst_55 {dimension_numbers = #tpu.dot_dimension_numbers<[1], [0], [0], [1], [0, 0, 1, 1], [], []>} : vector<17x16xf32>, vector<16x17xf32>, vector<17x17xf32> -> vector<17x17xf32>
    %cst_56 = arith.constant dense<0xFF800000> : vector<17xf32>
    %112 = vector.multi_reduction <maximumf>, %111, %cst_56 [1] : vector<17x17xf32> to vector<17xf32>
    %113 = vector.shape_cast %112 : vector<17xf32> to vector<17x1xf32>
    %114 = vector.broadcast %113 : vector<17x1xf32> to vector<17x17xf32>
    %115 = arith.subf %111, %114 : vector<17x17xf32>
    %116 = math.exp %115 : vector<17x17xf32>
    %cst_57 = arith.constant dense<0.000000e+00> : vector<17xf32>
    %117 = vector.multi_reduction <add>, %116, %cst_57 [1] : vector<17x17xf32> to vector<17xf32>
    %118 = vector.shape_cast %117 : vector<17xf32> to vector<17x1xf32>
    %119 = tpu.reciprocal %118 {approx = true} : vector<17x1xf32> -> vector<17x1xf32>
    %120 = vector.broadcast %119 : vector<17x1xf32> to vector<17x17xf32>
    %121 = arith.mulf %116, %120 : vector<17x17xf32>
    %122 = vector.extract_strided_slice %59 {offsets = [0, 48], sizes = [17, 16], strides = [1, 1]} : vector<17x64xf32> to vector<17x16xf32>
    %cst_58 = arith.constant dense<0.000000e+00> : vector<17x16xf32>
    %123 = tpu.matmul %121, %122, %cst_58 {dimension_numbers = #tpu.dot_dimension_numbers<[1], [0], [0], [1], [0, 0, 1, 1], [], []>} : vector<17x17xf32>, vector<17x16xf32>, vector<17x16xf32> -> vector<17x16xf32>
    %124 = tpu.concatenate %75, %91, %107, %123 in 1 : vector<17x16xf32>, vector<17x16xf32>, vector<17x16xf32>, vector<17x16xf32> -> vector<17x64xf32>
    %c0_59 = arith.constant 0 : index
    %c0_60 = arith.constant 0 : index
    %c0_61 = arith.constant 0 : index
    %125 = vector.load %arg14[%c0_59, %c0_60, %c0_61] : memref<2x64x64xf32, #tpu.memory_space<vmem>>, vector<1x64x64xf32>
    %126 = vector.shape_cast %125 : vector<1x64x64xf32> to vector<64x64xf32>
    %cst_62 = arith.constant dense<0.000000e+00> : vector<17x64xf32>
    %127 = tpu.matmul %124, %126, %cst_62 {dimension_numbers = #tpu.dot_dimension_numbers<[1], [0], [0], [1], [0, 0, 1, 1], [], []>} : vector<17x64xf32>, vector<64x64xf32>, vector<17x64xf32> -> vector<17x64xf32>
    %128 = arith.addf %10, %127 : vector<17x64xf32>
    %c0_63 = arith.constant 0 : index
    %c0_64 = arith.constant 0 : index
    %c0_65 = arith.constant 0 : index
    %129 = vector.load %arg15[%c0_63, %c0_64, %c0_65] : memref<2x1x64xf32, #tpu.memory_space<vmem>>, vector<1x1x64xf32>
    %130 = vector.shape_cast %129 : vector<1x1x64xf32> to vector<1x64xf32>
    %131 = vector.broadcast %130 : vector<1x64xf32> to vector<17x64xf32>
    %132 = arith.addf %128, %131 : vector<17x64xf32>
    %c0_66 = arith.constant 0 : index
    %c0_67 = arith.constant 0 : index
    %c0_68 = arith.constant 0 : index
    %133 = vector.load %arg16[%c0_66, %c0_67, %c0_68] : memref<2x1x64xf32, #tpu.memory_space<vmem>>, vector<1x1x64xf32>
    %134 = vector.shape_cast %133 : vector<1x1x64xf32> to vector<1x64xf32>
    %c0_69 = arith.constant 0 : index
    %c0_70 = arith.constant 0 : index
    %c0_71 = arith.constant 0 : index
    %135 = vector.load %arg17[%c0_69, %c0_70, %c0_71] : memref<2x1x64xf32, #tpu.memory_space<vmem>>, vector<1x1x64xf32>
    %136 = vector.shape_cast %135 : vector<1x1x64xf32> to vector<1x64xf32>
    %cst_72 = arith.constant dense<0.000000e+00> : vector<17xf32>
    %137 = vector.multi_reduction <add>, %132, %cst_72 [1] : vector<17x64xf32> to vector<17xf32>
    %138 = vector.shape_cast %137 : vector<17xf32> to vector<17x1xf32>
    %cst_73 = arith.constant 6.400000e+01 : f32
    %139 = vector.broadcast %cst_73 : f32 to vector<17x1xf32>
    %140 = arith.divf %138, %139 : vector<17x1xf32>
    %141 = vector.broadcast %140 : vector<17x1xf32> to vector<17x64xf32>
    %142 = arith.subf %132, %141 : vector<17x64xf32>
    %143 = arith.mulf %142, %142 : vector<17x64xf32>
    %cst_74 = arith.constant dense<0.000000e+00> : vector<17xf32>
    %144 = vector.multi_reduction <add>, %143, %cst_74 [1] : vector<17x64xf32> to vector<17xf32>
    %145 = vector.shape_cast %144 : vector<17xf32> to vector<17x1xf32>
    %cst_75 = arith.constant 6.400000e+01 : f32
    %146 = vector.broadcast %cst_75 : f32 to vector<17x1xf32>
    %147 = arith.divf %145, %146 : vector<17x1xf32>
    %148 = vector.broadcast %140 : vector<17x1xf32> to vector<17x64xf32>
    %149 = arith.subf %132, %148 : vector<17x64xf32>
    %cst_76 = arith.constant 9.99999974E-6 : f32
    %150 = vector.broadcast %cst_76 : f32 to vector<17x1xf32>
    %151 = arith.addf %147, %150 : vector<17x1xf32>
    %152 = math.rsqrt %151 : vector<17x1xf32>
    %153 = vector.broadcast %152 : vector<17x1xf32> to vector<17x64xf32>
    %154 = arith.mulf %149, %153 : vector<17x64xf32>
    %155 = vector.broadcast %134 : vector<1x64xf32> to vector<17x64xf32>
    %156 = arith.mulf %154, %155 : vector<17x64xf32>
    %157 = vector.broadcast %136 : vector<1x64xf32> to vector<17x64xf32>
    %158 = arith.addf %156, %157 : vector<17x64xf32>
    %c0_77 = arith.constant 0 : index
    %c0_78 = arith.constant 0 : index
    %c0_79 = arith.constant 0 : index
    %159 = vector.load %arg18[%c0_77, %c0_78, %c0_79] : memref<2x64x128xf32, #tpu.memory_space<vmem>>, vector<1x64x128xf32>
    %160 = vector.shape_cast %159 : vector<1x64x128xf32> to vector<64x128xf32>
    %cst_80 = arith.constant dense<0.000000e+00> : vector<17x128xf32>
    %161 = tpu.matmul %158, %160, %cst_80 {dimension_numbers = #tpu.dot_dimension_numbers<[1], [0], [0], [1], [0, 0, 1, 1], [], []>} : vector<17x64xf32>, vector<64x128xf32>, vector<17x128xf32> -> vector<17x128xf32>
    %c0_81 = arith.constant 0 : index
    %c0_82 = arith.constant 0 : index
    %c0_83 = arith.constant 0 : index
    %162 = vector.load %arg19[%c0_81, %c0_82, %c0_83] : memref<2x1x128xf32, #tpu.memory_space<vmem>>, vector<1x1x128xf32>
    %163 = vector.shape_cast %162 : vector<1x1x128xf32> to vector<1x128xf32>
    %164 = vector.broadcast %163 : vector<1x128xf32> to vector<17x128xf32>
    %165 = arith.addf %161, %164 : vector<17x128xf32>
    %cst_84 = arith.constant 5.000000e-01 : f32
    %166 = vector.broadcast %cst_84 : f32 to vector<17x128xf32>
    %167 = arith.mulf %166, %165 : vector<17x128xf32>
    %cst_85 = arith.constant 0.707106769 : f32
    %168 = vector.broadcast %cst_85 : f32 to vector<17x128xf32>
    %169 = arith.mulf %165, %168 : vector<17x128xf32>
    %170 = math.erf %169 : vector<17x128xf32>
    %cst_86 = arith.constant 1.000000e+00 : f32
    %171 = vector.broadcast %cst_86 : f32 to vector<17x128xf32>
    %172 = arith.addf %171, %170 : vector<17x128xf32>
    %173 = arith.mulf %167, %172 : vector<17x128xf32>
    %c0_87 = arith.constant 0 : index
    %c0_88 = arith.constant 0 : index
    %c0_89 = arith.constant 0 : index
    %174 = vector.load %arg20[%c0_87, %c0_88, %c0_89] : memref<2x128x64xf32, #tpu.memory_space<vmem>>, vector<1x128x64xf32>
    %175 = vector.shape_cast %174 : vector<1x128x64xf32> to vector<128x64xf32>
    %cst_90 = arith.constant dense<0.000000e+00> : vector<17x64xf32>
    %176 = tpu.matmul %173, %175, %cst_90 {dimension_numbers = #tpu.dot_dimension_numbers<[1], [0], [0], [1], [0, 0, 1, 1], [], []>} : vector<17x128xf32>, vector<128x64xf32>, vector<17x64xf32> -> vector<17x64xf32>
    %177 = arith.addf %132, %176 : vector<17x64xf32>
    %c0_91 = arith.constant 0 : index
    %c0_92 = arith.constant 0 : index
    %c0_93 = arith.constant 0 : index
    %178 = vector.load %arg21[%c0_91, %c0_92, %c0_93] : memref<2x1x64xf32, #tpu.memory_space<vmem>>, vector<1x1x64xf32>
    %179 = vector.shape_cast %178 : vector<1x1x64xf32> to vector<1x64xf32>
    %180 = vector.broadcast %179 : vector<1x64xf32> to vector<17x64xf32>
    %181 = arith.addf %177, %180 : vector<17x64xf32>
    %c1 = arith.constant 1 : index
    %c0_94 = arith.constant 0 : index
    %c0_95 = arith.constant 0 : index
    %182 = vector.load %arg6[%c1, %c0_94, %c0_95] : memref<2x1x64xf32, #tpu.memory_space<vmem>>, vector<1x1x64xf32>
    %183 = vector.shape_cast %182 : vector<1x1x64xf32> to vector<1x64xf32>
    %c1_96 = arith.constant 1 : index
    %c0_97 = arith.constant 0 : index
    %c0_98 = arith.constant 0 : index
    %184 = vector.load %arg7[%c1_96, %c0_97, %c0_98] : memref<2x1x64xf32, #tpu.memory_space<vmem>>, vector<1x1x64xf32>
    %185 = vector.shape_cast %184 : vector<1x1x64xf32> to vector<1x64xf32>
    %cst_99 = arith.constant dense<0.000000e+00> : vector<17xf32>
    %186 = vector.multi_reduction <add>, %181, %cst_99 [1] : vector<17x64xf32> to vector<17xf32>
    %187 = vector.shape_cast %186 : vector<17xf32> to vector<17x1xf32>
    %cst_100 = arith.constant 6.400000e+01 : f32
    %188 = vector.broadcast %cst_100 : f32 to vector<17x1xf32>
    %189 = arith.divf %187, %188 : vector<17x1xf32>
    %190 = vector.broadcast %189 : vector<17x1xf32> to vector<17x64xf32>
    %191 = arith.subf %181, %190 : vector<17x64xf32>
    %192 = arith.mulf %191, %191 : vector<17x64xf32>
    %cst_101 = arith.constant dense<0.000000e+00> : vector<17xf32>
    %193 = vector.multi_reduction <add>, %192, %cst_101 [1] : vector<17x64xf32> to vector<17xf32>
    %194 = vector.shape_cast %193 : vector<17xf32> to vector<17x1xf32>
    %cst_102 = arith.constant 6.400000e+01 : f32
    %195 = vector.broadcast %cst_102 : f32 to vector<17x1xf32>
    %196 = arith.divf %194, %195 : vector<17x1xf32>
    %197 = vector.broadcast %189 : vector<17x1xf32> to vector<17x64xf32>
    %198 = arith.subf %181, %197 : vector<17x64xf32>
    %cst_103 = arith.constant 9.99999974E-6 : f32
    %199 = vector.broadcast %cst_103 : f32 to vector<17x1xf32>
    %200 = arith.addf %196, %199 : vector<17x1xf32>
    %201 = math.rsqrt %200 : vector<17x1xf32>
    %202 = vector.broadcast %201 : vector<17x1xf32> to vector<17x64xf32>
    %203 = arith.mulf %198, %202 : vector<17x64xf32>
    %204 = vector.broadcast %183 : vector<1x64xf32> to vector<17x64xf32>
    %205 = arith.mulf %203, %204 : vector<17x64xf32>
    %206 = vector.broadcast %185 : vector<1x64xf32> to vector<17x64xf32>
    %207 = arith.addf %205, %206 : vector<17x64xf32>
    %c1_104 = arith.constant 1 : index
    %c0_105 = arith.constant 0 : index
    %c0_106 = arith.constant 0 : index
    %208 = vector.load %arg8[%c1_104, %c0_105, %c0_106] : memref<2x64x64xf32, #tpu.memory_space<vmem>>, vector<1x64x64xf32>
    %209 = vector.shape_cast %208 : vector<1x64x64xf32> to vector<64x64xf32>
    %cst_107 = arith.constant dense<0.000000e+00> : vector<17x64xf32>
    %210 = tpu.matmul %207, %209, %cst_107 {dimension_numbers = #tpu.dot_dimension_numbers<[1], [0], [0], [1], [0, 0, 1, 1], [], []>} : vector<17x64xf32>, vector<64x64xf32>, vector<17x64xf32> -> vector<17x64xf32>
    %c1_108 = arith.constant 1 : index
    %c0_109 = arith.constant 0 : index
    %c0_110 = arith.constant 0 : index
    %211 = vector.load %arg11[%c1_108, %c0_109, %c0_110] : memref<2x1x64xf32, #tpu.memory_space<vmem>>, vector<1x1x64xf32>
    %212 = vector.shape_cast %211 : vector<1x1x64xf32> to vector<1x64xf32>
    %213 = vector.broadcast %212 : vector<1x64xf32> to vector<17x64xf32>
    %214 = arith.addf %210, %213 : vector<17x64xf32>
    %cst_111 = arith.constant 2.500000e-01 : f32
    %215 = vector.broadcast %cst_111 : f32 to vector<17x64xf32>
    %216 = arith.mulf %214, %215 : vector<17x64xf32>
    %c1_112 = arith.constant 1 : index
    %c0_113 = arith.constant 0 : index
    %c0_114 = arith.constant 0 : index
    %217 = vector.load %arg9[%c1_112, %c0_113, %c0_114] : memref<2x64x64xf32, #tpu.memory_space<vmem>>, vector<1x64x64xf32>
    %218 = vector.shape_cast %217 : vector<1x64x64xf32> to vector<64x64xf32>
    %cst_115 = arith.constant dense<0.000000e+00> : vector<17x64xf32>
    %219 = tpu.matmul %207, %218, %cst_115 {dimension_numbers = #tpu.dot_dimension_numbers<[1], [0], [0], [1], [0, 0, 1, 1], [], []>} : vector<17x64xf32>, vector<64x64xf32>, vector<17x64xf32> -> vector<17x64xf32>
    %c1_116 = arith.constant 1 : index
    %c0_117 = arith.constant 0 : index
    %c0_118 = arith.constant 0 : index
    %220 = vector.load %arg12[%c1_116, %c0_117, %c0_118] : memref<2x1x64xf32, #tpu.memory_space<vmem>>, vector<1x1x64xf32>
    %221 = vector.shape_cast %220 : vector<1x1x64xf32> to vector<1x64xf32>
    %222 = vector.broadcast %221 : vector<1x64xf32> to vector<17x64xf32>
    %223 = arith.addf %219, %222 : vector<17x64xf32>
    %c1_119 = arith.constant 1 : index
    %c0_120 = arith.constant 0 : index
    %c0_121 = arith.constant 0 : index
    %224 = vector.load %arg10[%c1_119, %c0_120, %c0_121] : memref<2x64x64xf32, #tpu.memory_space<vmem>>, vector<1x64x64xf32>
    %225 = vector.shape_cast %224 : vector<1x64x64xf32> to vector<64x64xf32>
    %cst_122 = arith.constant dense<0.000000e+00> : vector<17x64xf32>
    %226 = tpu.matmul %207, %225, %cst_122 {dimension_numbers = #tpu.dot_dimension_numbers<[1], [0], [0], [1], [0, 0, 1, 1], [], []>} : vector<17x64xf32>, vector<64x64xf32>, vector<17x64xf32> -> vector<17x64xf32>
    %c1_123 = arith.constant 1 : index
    %c0_124 = arith.constant 0 : index
    %c0_125 = arith.constant 0 : index
    %227 = vector.load %arg13[%c1_123, %c0_124, %c0_125] : memref<2x1x64xf32, #tpu.memory_space<vmem>>, vector<1x1x64xf32>
    %228 = vector.shape_cast %227 : vector<1x1x64xf32> to vector<1x64xf32>
    %229 = vector.broadcast %228 : vector<1x64xf32> to vector<17x64xf32>
    %230 = arith.addf %226, %229 : vector<17x64xf32>
    %231 = vector.extract_strided_slice %216 {offsets = [0, 0], sizes = [17, 16], strides = [1, 1]} : vector<17x64xf32> to vector<17x16xf32>
    %232 = vector.extract_strided_slice %223 {offsets = [0, 0], sizes = [17, 16], strides = [1, 1]} : vector<17x64xf32> to vector<17x16xf32>
    %233 = tpu.transpose %232, [1, 0] : vector<17x16xf32> -> vector<16x17xf32>
    %cst_126 = arith.constant dense<0.000000e+00> : vector<17x17xf32>
    %234 = tpu.matmul %231, %233, %cst_126 {dimension_numbers = #tpu.dot_dimension_numbers<[1], [0], [0], [1], [0, 0, 1, 1], [], []>} : vector<17x16xf32>, vector<16x17xf32>, vector<17x17xf32> -> vector<17x17xf32>
    %cst_127 = arith.constant dense<0xFF800000> : vector<17xf32>
    %235 = vector.multi_reduction <maximumf>, %234, %cst_127 [1] : vector<17x17xf32> to vector<17xf32>
    %236 = vector.shape_cast %235 : vector<17xf32> to vector<17x1xf32>
    %237 = vector.broadcast %236 : vector<17x1xf32> to vector<17x17xf32>
    %238 = arith.subf %234, %237 : vector<17x17xf32>
    %239 = math.exp %238 : vector<17x17xf32>
    %cst_128 = arith.constant dense<0.000000e+00> : vector<17xf32>
    %240 = vector.multi_reduction <add>, %239, %cst_128 [1] : vector<17x17xf32> to vector<17xf32>
    %241 = vector.shape_cast %240 : vector<17xf32> to vector<17x1xf32>
    %242 = tpu.reciprocal %241 {approx = true} : vector<17x1xf32> -> vector<17x1xf32>
    %243 = vector.broadcast %242 : vector<17x1xf32> to vector<17x17xf32>
    %244 = arith.mulf %239, %243 : vector<17x17xf32>
    %245 = vector.extract_strided_slice %230 {offsets = [0, 0], sizes = [17, 16], strides = [1, 1]} : vector<17x64xf32> to vector<17x16xf32>
    %cst_129 = arith.constant dense<0.000000e+00> : vector<17x16xf32>
    %246 = tpu.matmul %244, %245, %cst_129 {dimension_numbers = #tpu.dot_dimension_numbers<[1], [0], [0], [1], [0, 0, 1, 1], [], []>} : vector<17x17xf32>, vector<17x16xf32>, vector<17x16xf32> -> vector<17x16xf32>
    %247 = vector.extract_strided_slice %216 {offsets = [0, 16], sizes = [17, 16], strides = [1, 1]} : vector<17x64xf32> to vector<17x16xf32>
    %248 = vector.extract_strided_slice %223 {offsets = [0, 16], sizes = [17, 16], strides = [1, 1]} : vector<17x64xf32> to vector<17x16xf32>
    %249 = tpu.transpose %248, [1, 0] : vector<17x16xf32> -> vector<16x17xf32>
    %cst_130 = arith.constant dense<0.000000e+00> : vector<17x17xf32>
    %250 = tpu.matmul %247, %249, %cst_130 {dimension_numbers = #tpu.dot_dimension_numbers<[1], [0], [0], [1], [0, 0, 1, 1], [], []>} : vector<17x16xf32>, vector<16x17xf32>, vector<17x17xf32> -> vector<17x17xf32>
    %cst_131 = arith.constant dense<0xFF800000> : vector<17xf32>
    %251 = vector.multi_reduction <maximumf>, %250, %cst_131 [1] : vector<17x17xf32> to vector<17xf32>
    %252 = vector.shape_cast %251 : vector<17xf32> to vector<17x1xf32>
    %253 = vector.broadcast %252 : vector<17x1xf32> to vector<17x17xf32>
    %254 = arith.subf %250, %253 : vector<17x17xf32>
    %255 = math.exp %254 : vector<17x17xf32>
    %cst_132 = arith.constant dense<0.000000e+00> : vector<17xf32>
    %256 = vector.multi_reduction <add>, %255, %cst_132 [1] : vector<17x17xf32> to vector<17xf32>
    %257 = vector.shape_cast %256 : vector<17xf32> to vector<17x1xf32>
    %258 = tpu.reciprocal %257 {approx = true} : vector<17x1xf32> -> vector<17x1xf32>
    %259 = vector.broadcast %258 : vector<17x1xf32> to vector<17x17xf32>
    %260 = arith.mulf %255, %259 : vector<17x17xf32>
    %261 = vector.extract_strided_slice %230 {offsets = [0, 16], sizes = [17, 16], strides = [1, 1]} : vector<17x64xf32> to vector<17x16xf32>
    %cst_133 = arith.constant dense<0.000000e+00> : vector<17x16xf32>
    %262 = tpu.matmul %260, %261, %cst_133 {dimension_numbers = #tpu.dot_dimension_numbers<[1], [0], [0], [1], [0, 0, 1, 1], [], []>} : vector<17x17xf32>, vector<17x16xf32>, vector<17x16xf32> -> vector<17x16xf32>
    %263 = vector.extract_strided_slice %216 {offsets = [0, 32], sizes = [17, 16], strides = [1, 1]} : vector<17x64xf32> to vector<17x16xf32>
    %264 = vector.extract_strided_slice %223 {offsets = [0, 32], sizes = [17, 16], strides = [1, 1]} : vector<17x64xf32> to vector<17x16xf32>
    %265 = tpu.transpose %264, [1, 0] : vector<17x16xf32> -> vector<16x17xf32>
    %cst_134 = arith.constant dense<0.000000e+00> : vector<17x17xf32>
    %266 = tpu.matmul %263, %265, %cst_134 {dimension_numbers = #tpu.dot_dimension_numbers<[1], [0], [0], [1], [0, 0, 1, 1], [], []>} : vector<17x16xf32>, vector<16x17xf32>, vector<17x17xf32> -> vector<17x17xf32>
    %cst_135 = arith.constant dense<0xFF800000> : vector<17xf32>
    %267 = vector.multi_reduction <maximumf>, %266, %cst_135 [1] : vector<17x17xf32> to vector<17xf32>
    %268 = vector.shape_cast %267 : vector<17xf32> to vector<17x1xf32>
    %269 = vector.broadcast %268 : vector<17x1xf32> to vector<17x17xf32>
    %270 = arith.subf %266, %269 : vector<17x17xf32>
    %271 = math.exp %270 : vector<17x17xf32>
    %cst_136 = arith.constant dense<0.000000e+00> : vector<17xf32>
    %272 = vector.multi_reduction <add>, %271, %cst_136 [1] : vector<17x17xf32> to vector<17xf32>
    %273 = vector.shape_cast %272 : vector<17xf32> to vector<17x1xf32>
    %274 = tpu.reciprocal %273 {approx = true} : vector<17x1xf32> -> vector<17x1xf32>
    %275 = vector.broadcast %274 : vector<17x1xf32> to vector<17x17xf32>
    %276 = arith.mulf %271, %275 : vector<17x17xf32>
    %277 = vector.extract_strided_slice %230 {offsets = [0, 32], sizes = [17, 16], strides = [1, 1]} : vector<17x64xf32> to vector<17x16xf32>
    %cst_137 = arith.constant dense<0.000000e+00> : vector<17x16xf32>
    %278 = tpu.matmul %276, %277, %cst_137 {dimension_numbers = #tpu.dot_dimension_numbers<[1], [0], [0], [1], [0, 0, 1, 1], [], []>} : vector<17x17xf32>, vector<17x16xf32>, vector<17x16xf32> -> vector<17x16xf32>
    %279 = vector.extract_strided_slice %216 {offsets = [0, 48], sizes = [17, 16], strides = [1, 1]} : vector<17x64xf32> to vector<17x16xf32>
    %280 = vector.extract_strided_slice %223 {offsets = [0, 48], sizes = [17, 16], strides = [1, 1]} : vector<17x64xf32> to vector<17x16xf32>
    %281 = tpu.transpose %280, [1, 0] : vector<17x16xf32> -> vector<16x17xf32>
    %cst_138 = arith.constant dense<0.000000e+00> : vector<17x17xf32>
    %282 = tpu.matmul %279, %281, %cst_138 {dimension_numbers = #tpu.dot_dimension_numbers<[1], [0], [0], [1], [0, 0, 1, 1], [], []>} : vector<17x16xf32>, vector<16x17xf32>, vector<17x17xf32> -> vector<17x17xf32>
    %cst_139 = arith.constant dense<0xFF800000> : vector<17xf32>
    %283 = vector.multi_reduction <maximumf>, %282, %cst_139 [1] : vector<17x17xf32> to vector<17xf32>
    %284 = vector.shape_cast %283 : vector<17xf32> to vector<17x1xf32>
    %285 = vector.broadcast %284 : vector<17x1xf32> to vector<17x17xf32>
    %286 = arith.subf %282, %285 : vector<17x17xf32>
    %287 = math.exp %286 : vector<17x17xf32>
    %cst_140 = arith.constant dense<0.000000e+00> : vector<17xf32>
    %288 = vector.multi_reduction <add>, %287, %cst_140 [1] : vector<17x17xf32> to vector<17xf32>
    %289 = vector.shape_cast %288 : vector<17xf32> to vector<17x1xf32>
    %290 = tpu.reciprocal %289 {approx = true} : vector<17x1xf32> -> vector<17x1xf32>
    %291 = vector.broadcast %290 : vector<17x1xf32> to vector<17x17xf32>
    %292 = arith.mulf %287, %291 : vector<17x17xf32>
    %293 = vector.extract_strided_slice %230 {offsets = [0, 48], sizes = [17, 16], strides = [1, 1]} : vector<17x64xf32> to vector<17x16xf32>
    %cst_141 = arith.constant dense<0.000000e+00> : vector<17x16xf32>
    %294 = tpu.matmul %292, %293, %cst_141 {dimension_numbers = #tpu.dot_dimension_numbers<[1], [0], [0], [1], [0, 0, 1, 1], [], []>} : vector<17x17xf32>, vector<17x16xf32>, vector<17x16xf32> -> vector<17x16xf32>
    %295 = tpu.concatenate %246, %262, %278, %294 in 1 : vector<17x16xf32>, vector<17x16xf32>, vector<17x16xf32>, vector<17x16xf32> -> vector<17x64xf32>
    %c1_142 = arith.constant 1 : index
    %c0_143 = arith.constant 0 : index
    %c0_144 = arith.constant 0 : index
    %296 = vector.load %arg14[%c1_142, %c0_143, %c0_144] : memref<2x64x64xf32, #tpu.memory_space<vmem>>, vector<1x64x64xf32>
    %297 = vector.shape_cast %296 : vector<1x64x64xf32> to vector<64x64xf32>
    %cst_145 = arith.constant dense<0.000000e+00> : vector<17x64xf32>
    %298 = tpu.matmul %295, %297, %cst_145 {dimension_numbers = #tpu.dot_dimension_numbers<[1], [0], [0], [1], [0, 0, 1, 1], [], []>} : vector<17x64xf32>, vector<64x64xf32>, vector<17x64xf32> -> vector<17x64xf32>
    %299 = arith.addf %181, %298 : vector<17x64xf32>
    %c1_146 = arith.constant 1 : index
    %c0_147 = arith.constant 0 : index
    %c0_148 = arith.constant 0 : index
    %300 = vector.load %arg15[%c1_146, %c0_147, %c0_148] : memref<2x1x64xf32, #tpu.memory_space<vmem>>, vector<1x1x64xf32>
    %301 = vector.shape_cast %300 : vector<1x1x64xf32> to vector<1x64xf32>
    %302 = vector.broadcast %301 : vector<1x64xf32> to vector<17x64xf32>
    %303 = arith.addf %299, %302 : vector<17x64xf32>
    %c1_149 = arith.constant 1 : index
    %c0_150 = arith.constant 0 : index
    %c0_151 = arith.constant 0 : index
    %304 = vector.load %arg16[%c1_149, %c0_150, %c0_151] : memref<2x1x64xf32, #tpu.memory_space<vmem>>, vector<1x1x64xf32>
    %305 = vector.shape_cast %304 : vector<1x1x64xf32> to vector<1x64xf32>
    %c1_152 = arith.constant 1 : index
    %c0_153 = arith.constant 0 : index
    %c0_154 = arith.constant 0 : index
    %306 = vector.load %arg17[%c1_152, %c0_153, %c0_154] : memref<2x1x64xf32, #tpu.memory_space<vmem>>, vector<1x1x64xf32>
    %307 = vector.shape_cast %306 : vector<1x1x64xf32> to vector<1x64xf32>
    %cst_155 = arith.constant dense<0.000000e+00> : vector<17xf32>
    %308 = vector.multi_reduction <add>, %303, %cst_155 [1] : vector<17x64xf32> to vector<17xf32>
    %309 = vector.shape_cast %308 : vector<17xf32> to vector<17x1xf32>
    %cst_156 = arith.constant 6.400000e+01 : f32
    %310 = vector.broadcast %cst_156 : f32 to vector<17x1xf32>
    %311 = arith.divf %309, %310 : vector<17x1xf32>
    %312 = vector.broadcast %311 : vector<17x1xf32> to vector<17x64xf32>
    %313 = arith.subf %303, %312 : vector<17x64xf32>
    %314 = arith.mulf %313, %313 : vector<17x64xf32>
    %cst_157 = arith.constant dense<0.000000e+00> : vector<17xf32>
    %315 = vector.multi_reduction <add>, %314, %cst_157 [1] : vector<17x64xf32> to vector<17xf32>
    %316 = vector.shape_cast %315 : vector<17xf32> to vector<17x1xf32>
    %cst_158 = arith.constant 6.400000e+01 : f32
    %317 = vector.broadcast %cst_158 : f32 to vector<17x1xf32>
    %318 = arith.divf %316, %317 : vector<17x1xf32>
    %319 = vector.broadcast %311 : vector<17x1xf32> to vector<17x64xf32>
    %320 = arith.subf %303, %319 : vector<17x64xf32>
    %cst_159 = arith.constant 9.99999974E-6 : f32
    %321 = vector.broadcast %cst_159 : f32 to vector<17x1xf32>
    %322 = arith.addf %318, %321 : vector<17x1xf32>
    %323 = math.rsqrt %322 : vector<17x1xf32>
    %324 = vector.broadcast %323 : vector<17x1xf32> to vector<17x64xf32>
    %325 = arith.mulf %320, %324 : vector<17x64xf32>
    %326 = vector.broadcast %305 : vector<1x64xf32> to vector<17x64xf32>
    %327 = arith.mulf %325, %326 : vector<17x64xf32>
    %328 = vector.broadcast %307 : vector<1x64xf32> to vector<17x64xf32>
    %329 = arith.addf %327, %328 : vector<17x64xf32>
    %c1_160 = arith.constant 1 : index
    %c0_161 = arith.constant 0 : index
    %c0_162 = arith.constant 0 : index
    %330 = vector.load %arg18[%c1_160, %c0_161, %c0_162] : memref<2x64x128xf32, #tpu.memory_space<vmem>>, vector<1x64x128xf32>
    %331 = vector.shape_cast %330 : vector<1x64x128xf32> to vector<64x128xf32>
    %cst_163 = arith.constant dense<0.000000e+00> : vector<17x128xf32>
    %332 = tpu.matmul %329, %331, %cst_163 {dimension_numbers = #tpu.dot_dimension_numbers<[1], [0], [0], [1], [0, 0, 1, 1], [], []>} : vector<17x64xf32>, vector<64x128xf32>, vector<17x128xf32> -> vector<17x128xf32>
    %c1_164 = arith.constant 1 : index
    %c0_165 = arith.constant 0 : index
    %c0_166 = arith.constant 0 : index
    %333 = vector.load %arg19[%c1_164, %c0_165, %c0_166] : memref<2x1x128xf32, #tpu.memory_space<vmem>>, vector<1x1x128xf32>
    %334 = vector.shape_cast %333 : vector<1x1x128xf32> to vector<1x128xf32>
    %335 = vector.broadcast %334 : vector<1x128xf32> to vector<17x128xf32>
    %336 = arith.addf %332, %335 : vector<17x128xf32>
    %cst_167 = arith.constant 5.000000e-01 : f32
    %337 = vector.broadcast %cst_167 : f32 to vector<17x128xf32>
    %338 = arith.mulf %337, %336 : vector<17x128xf32>
    %cst_168 = arith.constant 0.707106769 : f32
    %339 = vector.broadcast %cst_168 : f32 to vector<17x128xf32>
    %340 = arith.mulf %336, %339 : vector<17x128xf32>
    %341 = math.erf %340 : vector<17x128xf32>
    %cst_169 = arith.constant 1.000000e+00 : f32
    %342 = vector.broadcast %cst_169 : f32 to vector<17x128xf32>
    %343 = arith.addf %342, %341 : vector<17x128xf32>
    %344 = arith.mulf %338, %343 : vector<17x128xf32>
    %c1_170 = arith.constant 1 : index
    %c0_171 = arith.constant 0 : index
    %c0_172 = arith.constant 0 : index
    %345 = vector.load %arg20[%c1_170, %c0_171, %c0_172] : memref<2x128x64xf32, #tpu.memory_space<vmem>>, vector<1x128x64xf32>
    %346 = vector.shape_cast %345 : vector<1x128x64xf32> to vector<128x64xf32>
    %cst_173 = arith.constant dense<0.000000e+00> : vector<17x64xf32>
    %347 = tpu.matmul %344, %346, %cst_173 {dimension_numbers = #tpu.dot_dimension_numbers<[1], [0], [0], [1], [0, 0, 1, 1], [], []>} : vector<17x128xf32>, vector<128x64xf32>, vector<17x64xf32> -> vector<17x64xf32>
    %348 = arith.addf %303, %347 : vector<17x64xf32>
    %c1_174 = arith.constant 1 : index
    %c0_175 = arith.constant 0 : index
    %c0_176 = arith.constant 0 : index
    %349 = vector.load %arg21[%c1_174, %c0_175, %c0_176] : memref<2x1x64xf32, #tpu.memory_space<vmem>>, vector<1x1x64xf32>
    %350 = vector.shape_cast %349 : vector<1x1x64xf32> to vector<1x64xf32>
    %351 = vector.broadcast %350 : vector<1x64xf32> to vector<17x64xf32>
    %352 = arith.addf %348, %351 : vector<17x64xf32>
    %353 = vector.extract_strided_slice %352 {offsets = [0, 0], sizes = [1, 64], strides = [1, 1]} : vector<17x64xf32> to vector<1x64xf32>
    %c0_177 = arith.constant 0 : index
    %c0_178 = arith.constant 0 : index
    %354 = vector.load %arg22[%c0_177, %c0_178] : memref<1x64xf32, #tpu.memory_space<vmem>>, vector<1x64xf32>
    %c0_179 = arith.constant 0 : index
    %c0_180 = arith.constant 0 : index
    %355 = vector.load %arg23[%c0_179, %c0_180] : memref<1x64xf32, #tpu.memory_space<vmem>>, vector<1x64xf32>
    %cst_181 = arith.constant dense<0.000000e+00> : vector<1xf32>
    %356 = vector.multi_reduction <add>, %353, %cst_181 [1] : vector<1x64xf32> to vector<1xf32>
    %357 = vector.shape_cast %356 : vector<1xf32> to vector<1x1xf32>
    %cst_182 = arith.constant 6.400000e+01 : f32
    %358 = vector.broadcast %cst_182 : f32 to vector<1x1xf32>
    %359 = arith.divf %357, %358 : vector<1x1xf32>
    %360 = vector.broadcast %359 : vector<1x1xf32> to vector<1x64xf32>
    %361 = arith.subf %353, %360 : vector<1x64xf32>
    %362 = arith.mulf %361, %361 : vector<1x64xf32>
    %cst_183 = arith.constant dense<0.000000e+00> : vector<1xf32>
    %363 = vector.multi_reduction <add>, %362, %cst_183 [1] : vector<1x64xf32> to vector<1xf32>
    %364 = vector.shape_cast %363 : vector<1xf32> to vector<1x1xf32>
    %cst_184 = arith.constant 6.400000e+01 : f32
    %365 = vector.broadcast %cst_184 : f32 to vector<1x1xf32>
    %366 = arith.divf %364, %365 : vector<1x1xf32>
    %367 = vector.broadcast %359 : vector<1x1xf32> to vector<1x64xf32>
    %368 = arith.subf %353, %367 : vector<1x64xf32>
    %cst_185 = arith.constant 9.99999974E-6 : f32
    %369 = vector.broadcast %cst_185 : f32 to vector<1x1xf32>
    %370 = arith.addf %366, %369 : vector<1x1xf32>
    %371 = math.rsqrt %370 : vector<1x1xf32>
    %372 = vector.broadcast %371 : vector<1x1xf32> to vector<1x64xf32>
    %373 = arith.mulf %368, %372 : vector<1x64xf32>
    %374 = arith.mulf %373, %354 : vector<1x64xf32>
    %375 = arith.addf %374, %355 : vector<1x64xf32>
    %c0_186 = arith.constant 0 : index
    %c0_187 = arith.constant 0 : index
    %376 = vector.load %arg24[%c0_186, %c0_187] : memref<64x16xf32, #tpu.memory_space<vmem>>, vector<64x16xf32>
    %cst_188 = arith.constant dense<0.000000e+00> : vector<1x16xf32>
    %377 = tpu.matmul %375, %376, %cst_188 {dimension_numbers = #tpu.dot_dimension_numbers<[1], [0], [0], [1], [0, 0, 1, 1], [], []>} : vector<1x64xf32>, vector<64x16xf32>, vector<1x16xf32> -> vector<1x16xf32>
    %c0_189 = arith.constant 0 : index
    %c0_190 = arith.constant 0 : index
    %378 = vector.load %arg25[%c0_189, %c0_190] : memref<1x16xf32, #tpu.memory_space<vmem>>, vector<1x16xf32>
    %379 = arith.addf %377, %378 : vector<1x16xf32>
    %c0_191 = arith.constant 0 : index
    %c0_192 = arith.constant 0 : index
    %c0_193 = arith.constant 0 : index
    %380 = vector.load %arg26[%c0_191, %c0_192, %c0_193] : memref<1x1x16xf32, #tpu.memory_space<vmem>>, vector<1x1x16xf32>
    %381 = vector.shape_cast %380 : vector<1x1x16xf32> to vector<1x16xf32>
    %382 = vector.shape_cast %379 : vector<1x16xf32> to vector<1x1x16xf32>
    tpu.vector_store %arg26[%c0_191, %c0_192, %c0_193], %382 {strides = array<i32>} : memref<1x1x16xf32, #tpu.memory_space<vmem>>, vector<1x1x16xf32>,
    return
  }
  func.func @transform_0(%arg0: i32) -> (i32, i32, i32) {
    %c0_i32 = arith.constant 0 : i32
    %c0_i32_0 = arith.constant 0 : i32
    %c0_i32_1 = arith.constant 0 : i32
    return %arg0, %c0_i32, %c0_i32_0 : i32, i32, i32
  }
  func.func @transform_1(%arg0: i32) -> (i32, i32) {
    %c0_i32 = arith.constant 0 : i32
    %c0_i32_0 = arith.constant 0 : i32
    %c0_i32_1 = arith.constant 0 : i32
    return %c0_i32, %c0_i32_0 : i32, i32
  }
  func.func @transform_2(%arg0: i32) -> (i32, i32) {
    %c0_i32 = arith.constant 0 : i32
    %c0_i32_0 = arith.constant 0 : i32
    %c0_i32_1 = arith.constant 0 : i32
    return %c0_i32, %c0_i32_0 : i32, i32
  }
  func.func @transform_3(%arg0: i32) -> (i32, i32) {
    %c0_i32 = arith.constant 0 : i32
    %c0_i32_0 = arith.constant 0 : i32
    %c0_i32_1 = arith.constant 0 : i32
    return %c0_i32, %c0_i32_0 : i32, i32
  }
  func.func @transform_4(%arg0: i32) -> (i32, i32) {
    %c0_i32 = arith.constant 0 : i32
    %c0_i32_0 = arith.constant 0 : i32
    %c0_i32_1 = arith.constant 0 : i32
    return %c0_i32, %c0_i32_0 : i32, i32
  }
  func.func @transform_5(%arg0: i32) -> (i32, i32, i32) {
    %c0_i32 = arith.constant 0 : i32
    %c0_i32_0 = arith.constant 0 : i32
    %c0_i32_1 = arith.constant 0 : i32
    %c0_i32_2 = arith.constant 0 : i32
    return %c0_i32, %c0_i32_0, %c0_i32_1 : i32, i32, i32
  }
  func.func @transform_6(%arg0: i32) -> (i32, i32, i32) {
    %c0_i32 = arith.constant 0 : i32
    %c0_i32_0 = arith.constant 0 : i32
    %c0_i32_1 = arith.constant 0 : i32
    %c0_i32_2 = arith.constant 0 : i32
    return %c0_i32, %c0_i32_0, %c0_i32_1 : i32, i32, i32
  }
  func.func @transform_7(%arg0: i32) -> (i32, i32, i32) {
    %c0_i32 = arith.constant 0 : i32
    %c0_i32_0 = arith.constant 0 : i32
    %c0_i32_1 = arith.constant 0 : i32
    %c0_i32_2 = arith.constant 0 : i32
    return %c0_i32, %c0_i32_0, %c0_i32_1 : i32, i32, i32
  }
  func.func @transform_8(%arg0: i32) -> (i32, i32, i32) {
    %c0_i32 = arith.constant 0 : i32
    %c0_i32_0 = arith.constant 0 : i32
    %c0_i32_1 = arith.constant 0 : i32
    %c0_i32_2 = arith.constant 0 : i32
    return %c0_i32, %c0_i32_0, %c0_i32_1 : i32, i32, i32
  }
  func.func @transform_9(%arg0: i32) -> (i32, i32, i32) {
    %c0_i32 = arith.constant 0 : i32
    %c0_i32_0 = arith.constant 0 : i32
    %c0_i32_1 = arith.constant 0 : i32
    %c0_i32_2 = arith.constant 0 : i32
    return %c0_i32, %c0_i32_0, %c0_i32_1 : i32, i32, i32
  }
  func.func @transform_10(%arg0: i32) -> (i32, i32, i32) {
    %c0_i32 = arith.constant 0 : i32
    %c0_i32_0 = arith.constant 0 : i32
    %c0_i32_1 = arith.constant 0 : i32
    %c0_i32_2 = arith.constant 0 : i32
    return %c0_i32, %c0_i32_0, %c0_i32_1 : i32, i32, i32
  }
  func.func @transform_11(%arg0: i32) -> (i32, i32, i32) {
    %c0_i32 = arith.constant 0 : i32
    %c0_i32_0 = arith.constant 0 : i32
    %c0_i32_1 = arith.constant 0 : i32
    %c0_i32_2 = arith.constant 0 : i32
    return %c0_i32, %c0_i32_0, %c0_i32_1 : i32, i32, i32
  }
  func.func @transform_12(%arg0: i32) -> (i32, i32, i32) {
    %c0_i32 = arith.constant 0 : i32
    %c0_i32_0 = arith.constant 0 : i32
    %c0_i32_1 = arith.constant 0 : i32
    %c0_i32_2 = arith.constant 0 : i32
    return %c0_i32, %c0_i32_0, %c0_i32_1 : i32, i32, i32
  }
  func.func @transform_13(%arg0: i32) -> (i32, i32, i32) {
    %c0_i32 = arith.constant 0 : i32
    %c0_i32_0 = arith.constant 0 : i32
    %c0_i32_1 = arith.constant 0 : i32
    %c0_i32_2 = arith.constant 0 : i32
    return %c0_i32, %c0_i32_0, %c0_i32_1 : i32, i32, i32
  }
  func.func @transform_14(%arg0: i32) -> (i32, i32, i32) {
    %c0_i32 = arith.constant 0 : i32
    %c0_i32_0 = arith.constant 0 : i32
    %c0_i32_1 = arith.constant 0 : i32
    %c0_i32_2 = arith.constant 0 : i32
    return %c0_i32, %c0_i32_0, %c0_i32_1 : i32, i32, i32
  }
  func.func @transform_15(%arg0: i32) -> (i32, i32, i32) {
    %c0_i32 = arith.constant 0 : i32
    %c0_i32_0 = arith.constant 0 : i32
    %c0_i32_1 = arith.constant 0 : i32
    %c0_i32_2 = arith.constant 0 : i32
    return %c0_i32, %c0_i32_0, %c0_i32_1 : i32, i32, i32
  }
  func.func @transform_16(%arg0: i32) -> (i32, i32, i32) {
    %c0_i32 = arith.constant 0 : i32
    %c0_i32_0 = arith.constant 0 : i32
    %c0_i32_1 = arith.constant 0 : i32
    %c0_i32_2 = arith.constant 0 : i32
    return %c0_i32, %c0_i32_0, %c0_i32_1 : i32, i32, i32
  }
  func.func @transform_17(%arg0: i32) -> (i32, i32, i32) {
    %c0_i32 = arith.constant 0 : i32
    %c0_i32_0 = arith.constant 0 : i32
    %c0_i32_1 = arith.constant 0 : i32
    %c0_i32_2 = arith.constant 0 : i32
    return %c0_i32, %c0_i32_0, %c0_i32_1 : i32, i32, i32
  }
  func.func @transform_18(%arg0: i32) -> (i32, i32, i32) {
    %c0_i32 = arith.constant 0 : i32
    %c0_i32_0 = arith.constant 0 : i32
    %c0_i32_1 = arith.constant 0 : i32
    %c0_i32_2 = arith.constant 0 : i32
    return %c0_i32, %c0_i32_0, %c0_i32_1 : i32, i32, i32
  }
  func.func @transform_19(%arg0: i32) -> (i32, i32, i32) {
    %c0_i32 = arith.constant 0 : i32
    %c0_i32_0 = arith.constant 0 : i32
    %c0_i32_1 = arith.constant 0 : i32
    %c0_i32_2 = arith.constant 0 : i32
    return %c0_i32, %c0_i32_0, %c0_i32_1 : i32, i32, i32
  }
  func.func @transform_20(%arg0: i32) -> (i32, i32, i32) {
    %c0_i32 = arith.constant 0 : i32
    %c0_i32_0 = arith.constant 0 : i32
    %c0_i32_1 = arith.constant 0 : i32
    %c0_i32_2 = arith.constant 0 : i32
    return %c0_i32, %c0_i32_0, %c0_i32_1 : i32, i32, i32
  }
  func.func @transform_21(%arg0: i32) -> (i32, i32) {
    %c0_i32 = arith.constant 0 : i32
    %c0_i32_0 = arith.constant 0 : i32
    %c0_i32_1 = arith.constant 0 : i32
    return %c0_i32, %c0_i32_0 : i32, i32
  }
  func.func @transform_22(%arg0: i32) -> (i32, i32) {
    %c0_i32 = arith.constant 0 : i32
    %c0_i32_0 = arith.constant 0 : i32
    %c0_i32_1 = arith.constant 0 : i32
    return %c0_i32, %c0_i32_0 : i32, i32
  }
  func.func @transform_23(%arg0: i32) -> (i32, i32) {
    %c0_i32 = arith.constant 0 : i32
    %c0_i32_0 = arith.constant 0 : i32
    %c0_i32_1 = arith.constant 0 : i32
    return %c0_i32, %c0_i32_0 : i32, i32
  }
  func.func @transform_24(%arg0: i32) -> (i32, i32) {
    %c0_i32 = arith.constant 0 : i32
    %c0_i32_0 = arith.constant 0 : i32
    %c0_i32_1 = arith.constant 0 : i32
    return %c0_i32, %c0_i32_0 : i32, i32
  }
  func.func @transform_25(%arg0: i32) -> (i32, i32, i32) {
    %c0_i32 = arith.constant 0 : i32
    %c0_i32_0 = arith.constant 0 : i32
    %c0_i32_1 = arith.constant 0 : i32
    return %arg0, %c0_i32, %c0_i32_0 : i32, i32, i32
  }
}

</mosaic_0001>

<llo_original>
// kernel: vit_forward.1
$region0: #{vit_forward.1}
  #allocation0 [shape = 'u32[]', space=smem, size = 0x4, offset = 0x4, fixed_abs, tag = 'smem constant byte address 0x4 - core index']
  #allocation1 [shape = 'u32[144,128]{1,0:T(1,128)}', space=vmem, size = 0x12000, scoped, tag = 'internal scratch']
  %s0 = inlined_call_operand.vmem [shape: f32[2,16,48], index: 0, kind: input, shape index: {}]
  %s1 = inlined_call_operand.vmem [shape: f32[48,64], index: 1, kind: input, shape index: {}]
  %s2 = inlined_call_operand.vmem [shape: f32[1,64], index: 2, kind: input, shape index: {}]
  %s3 = inlined_call_operand.vmem [shape: f32[1,64], index: 3, kind: input, shape index: {}]
  %s4 = inlined_call_operand.vmem [shape: f32[17,64], index: 4, kind: input, shape index: {}]
  %s5 = inlined_call_operand.vmem [shape: f32[2,1,64], index: 5, kind: input, shape index: {}]
  %s6 = inlined_call_operand.vmem [shape: f32[2,1,64], index: 6, kind: input, shape index: {}]
  %s7 = inlined_call_operand.vmem [shape: f32[2,64,64], index: 7, kind: input, shape index: {}]
  %s8 = inlined_call_operand.vmem [shape: f32[2,64,64], index: 8, kind: input, shape index: {}]
  %s9 = inlined_call_operand.vmem [shape: f32[2,64,64], index: 9, kind: input, shape index: {}]
  %s10 = inlined_call_operand.vmem [shape: f32[2,1,64], index: 10, kind: input, shape index: {}]
  %s11 = inlined_call_operand.vmem [shape: f32[2,1,64], index: 11, kind: input, shape index: {}]
  %s12 = inlined_call_operand.vmem [shape: f32[2,1,64], index: 12, kind: input, shape index: {}]
  %s13 = inlined_call_operand.vmem [shape: f32[2,64,64], index: 13, kind: input, shape index: {}]
  %s14 = inlined_call_operand.vmem [shape: f32[2,1,64], index: 14, kind: input, shape index: {}]
  %s15 = inlined_call_operand.vmem [shape: f32[2,1,64], index: 15, kind: input, shape index: {}]
  %s16 = inlined_call_operand.vmem [shape: f32[2,1,64], index: 16, kind: input, shape index: {}]
  %s17 = inlined_call_operand.vmem [shape: f32[2,64,128], index: 17, kind: input, shape index: {}]
  %s18 = inlined_call_operand.vmem [shape: f32[2,1,128], index: 18, kind: input, shape index: {}]
  %s19 = inlined_call_operand.vmem [shape: f32[2,128,64], index: 19, kind: input, shape index: {}]
  %s20 = inlined_call_operand.vmem [shape: f32[2,1,64], index: 20, kind: input, shape index: {}]
  %s21 = inlined_call_operand.vmem [shape: f32[1,64], index: 21, kind: input, shape index: {}]
  %s22 = inlined_call_operand.vmem [shape: f32[1,64], index: 22, kind: input, shape index: {}]
  %s23 = inlined_call_operand.vmem [shape: f32[64,16], index: 23, kind: input, shape index: {}]
  %s24 = inlined_call_operand.vmem [shape: f32[1,16], index: 24, kind: input, shape index: {}]
  %s25 = inlined_call_operand.hbm [shape: f32[2,1,16], index: 25, kind: output, shape index: {}]
  %s26 = sld [smem:[#allocation0]]
  $region133: #{vit_forward.1} parent=0
    _
  %s28 = ssub.s32 1, %s26
  %s29 = scalar_select 0, %s28, %s26
  $region1: #{vit_forward.1} parent=0
    #allocation2 [shape = 'u8[1024]{0}', space=vmem, size = 0x400, scoped, tag = 'output window, operand 0']
    #allocation3 [shape = 's32[2]{0}', space=sflag, size = 0x8, scoped, tag = 'scoped memory for vit_forward.1']
    %30 = vsyncpa [#allocation3], 0
    %s31 = scalar_lea.sflag [#allocation3], 1
    %32 = vsyncpa %s31, 0
    loop: start=0, step=1, limit=4
    $region2: #{vit_forward.1} parent=1 // loop_pre_header
      _
    $region3: #{vit_forward.1} parent=1 // loop_header
      %s34 = sphi 0, %s38
      %p35 = scmp.ge.s32.totalorder %s34, 4
      %s44 = sphi 0, %s46
      %s47 = sphi 0, %s44
      %s48 = sphi 0, %s47
      %s64 = sphi 0, %s48
      %s68 = sphi 0, %s68
      %s70 = sphi 0, %s68
      %s71 = sphi 0, %s70
      %s85 = sphi 0, %s71
      %s89 = sphi 0, %s89
      %s91 = sphi 0, %s89
      %s92 = sphi 0, %s91
      %s106 = sphi 0, %s92
      %s110 = sphi 0, %s110
      %s112 = sphi 0, %s110
      %s113 = sphi 0, %s112
      %s127 = sphi 0, %s113
      %s131 = sphi 0, %s131
      %s133 = sphi 0, %s131
      %s134 = sphi 0, %s133
      %s148 = sphi 0, %s134
      %s152 = sphi 0, %s152
      %s154 = sphi 0, %s152
      %s155 = sphi 0, %s154
      %s169 = sphi 0, %s155
      %s173 = sphi 0, %s173
      %s175 = sphi 0, %s173
      %s176 = sphi 0, %s175
      %s190 = sphi 0, %s176
      %s194 = sphi 0, %s194
      %s196 = sphi 0, %s194
      %s197 = sphi 0, %s196
      %s211 = sphi 0, %s197
      %s215 = sphi 0, %s215
      %s217 = sphi 0, %s215
      %s218 = sphi 0, %s217
      %s232 = sphi 0, %s218
      %s236 = sphi 0, %s236
      %s238 = sphi 0, %s236
      %s239 = sphi 0, %s238
      %s253 = sphi 0, %s239
      %s257 = sphi 0, %s257
      %s259 = sphi 0, %s257
      %s260 = sphi 0, %s259
      %s274 = sphi 0, %s260
      %s278 = sphi 0, %s278
      %s280 = sphi 0, %s278
      %s281 = sphi 0, %s280
      %s295 = sphi 0, %s281
      %s299 = sphi 0, %s299
      %s301 = sphi 0, %s299
      %s302 = sphi 0, %s301
      %s316 = sphi 0, %s302
      %s320 = sphi 0, %s320
      %s322 = sphi 0, %s320
      %s323 = sphi 0, %s322
      %s337 = sphi 0, %s323
      %s341 = sphi 0, %s341
      %s343 = sphi 0, %s341
      %s344 = sphi 0, %s343
      %s358 = sphi 0, %s344
      %s362 = sphi 0, %s362
      %s364 = sphi 0, %s362
      %s365 = sphi 0, %s364
      %s379 = sphi 0, %s365
      %s383 = sphi 0, %s383
      %s385 = sphi 0, %s383
      %s386 = sphi 0, %s385
      %s400 = sphi 0, %s386
      %s404 = sphi 0, %s404
      %s406 = sphi 0, %s404
      %s407 = sphi 0, %s406
      %s421 = sphi 0, %s407
      %s425 = sphi 0, %s425
      %s427 = sphi 0, %s425
      %s428 = sphi 0, %s427
      %s442 = sphi 0, %s428
      %s446 = sphi 0, %s446
      %s448 = sphi 0, %s446
      %s449 = sphi 0, %s448
      %s463 = sphi 0, %s449
      %s467 = sphi 0, %s467
      %s469 = sphi 0, %s467
      %s470 = sphi 0, %s469
      %s484 = sphi 0, %s470
      %s488 = sphi 0, %s488
      %s490 = sphi 0, %s488
      %s491 = sphi 0, %s490
      %s505 = sphi 0, %s491
      %s509 = sphi 0, %s509
      %s511 = sphi 0, %s509
      %s512 = sphi 0, %s511
      %s526 = sphi 0, %s512
      %s530 = sphi 0, %s530
      %s532 = sphi 0, %s530
      %s533 = sphi 0, %s532
      %s547 = sphi 0, %s533
      %s551 = sphi 0, %s551
      %s553 = sphi 0, %s551
      %s554 = sphi 0, %s553
      %s568 = sphi 0, %s554
      %s574 = sphi 0, %s576
      %s577 = sphi 0, %s574
      %s578 = sphi 0, %s577
      %s594 = sphi 0, %s578
    $region4: #{vit_forward.1} parent=1 // loop_header_branch
      %37 = sbr.rel (%p35) target = $region8
    $region5: #{vit_forward.1} parent=1 // loop_body
      %s39 = ssub.s32 %s34, 1
      %s40 = ssub.s32 %s34, 2
      %s41 = sadd.s32 %s34, 1
      %s42 = ssub.s32 %s34, %s41
      %p43 = scmp.eq.s32.totalorder %s42, 0
      %s45 = sadd.s32 %s44, 1
      %s46 = scalar_select %p43, %s44, %s45
      %p49 = pneg %p43
      %p50 = scmp.eq.s32.totalorder %s34, 1
      %p51 = por %p49, %p50
      %p52 = scmp.ne.s32.totalorder %s44, %s47
      %p53 = scmp.eq.s32.totalorder %s34, 0
      %p54 = por %p52, %p53
      %p55 = scmp.ne.s32.totalorder %s44, %s47
      %p56 = scmp.eq.s32.totalorder %s39, 1
      %p57 = por %p55, %p56
      %p58 = scmp.ne.s32.totalorder %s47, %s48
      %p59 = scmp.eq.s32.totalorder %s39, 0
      %p60 = por %p58, %p59
      %p61 = scmp.ne.s32.totalorder %s47, %s48
      %p62 = scmp.eq.s32.totalorder %s40, 1
      %p63 = por %p61, %p62
      %p65 = scmp.ne.s32.totalorder %s48, %s64
      %p66 = scmp.eq.s32.totalorder %s40, 0
      %p67 = por %p65, %p66
      %s69 = sadd.s32 %s68, 1
      %p72 = scmp.eq.s32.totalorder %s34, 1
      %p73 = scmp.ne.s32.totalorder %s68, %s70
      %p74 = scmp.eq.s32.totalorder %s34, 0
      %p75 = por %p73, %p74
      %p76 = scmp.ne.s32.totalorder %s68, %s70
      %p77 = scmp.eq.s32.totalorder %s39, 1
      %p78 = por %p76, %p77
      %p79 = scmp.ne.s32.totalorder %s70, %s71
      %p80 = scmp.eq.s32.totalorder %s39, 0
      %p81 = por %p79, %p80
      %p82 = scmp.ne.s32.totalorder %s70, %s71
      %p83 = scmp.eq.s32.totalorder %s40, 1
      %p84 = por %p82, %p83
      %p86 = scmp.ne.s32.totalorder %s71, %s85
      %p87 = scmp.eq.s32.totalorder %s40, 0
      %p88 = por %p86, %p87
      %s90 = sadd.s32 %s89, 1
      %p93 = scmp.eq.s32.totalorder %s34, 1
      %p94 = scmp.ne.s32.totalorder %s89, %s91
      %p95 = scmp.eq.s32.totalorder %s34, 0
      %p96 = por %p94, %p95
      %p97 = scmp.ne.s32.totalorder %s89, %s91
      %p98 = scmp.eq.s32.totalorder %s39, 1
      %p99 = por %p97, %p98
      %p100 = scmp.ne.s32.totalorder %s91, %s92
      %p101 = scmp.eq.s32.totalorder %s39, 0
      %p102 = por %p100, %p101
      %p103 = scmp.ne.s32.totalorder %s91, %s92
      %p104 = scmp.eq.s32.totalorder %s40, 1
      %p105 = por %p103, %p104
      %p107 = scmp.ne.s32.totalorder %s92, %s106
      %p108 = scmp.eq.s32.totalorder %s40, 0
      %p109 = por %p107, %p108
      %s111 = sadd.s32 %s110, 1
      %p114 = scmp.eq.s32.totalorder %s34, 1
      %p115 = scmp.ne.s32.totalorder %s110, %s112
      %p116 = scmp.eq.s32.totalorder %s34, 0
      %p117 = por %p115, %p116
      %p118 = scmp.ne.s32.totalorder %s110, %s112
      %p119 = scmp.eq.s32.totalorder %s39, 1
      %p120 = por %p118, %p119
      %p121 = scmp.ne.s32.totalorder %s112, %s113
      %p122 = scmp.eq.s32.totalorder %s39, 0
      %p123 = por %p121, %p122
      %p124 = scmp.ne.s32.totalorder %s112, %s113
      %p125 = scmp.eq.s32.totalorder %s40, 1
      %p126 = por %p124, %p125
      %p128 = scmp.ne.s32.totalorder %s113, %s127
      %p129 = scmp.eq.s32.totalorder %s40, 0
      %p130 = por %p128, %p129
      %s132 = sadd.s32 %s131, 1
      %p135 = scmp.eq.s32.totalorder %s34, 1
      %p136 = scmp.ne.s32.totalorder %s131, %s133
      %p137 = scmp.eq.s32.totalorder %s34, 0
      %p138 = por %p136, %p137
      %p139 = scmp.ne.s32.totalorder %s131, %s133
      %p140 = scmp.eq.s32.totalorder %s39, 1
      %p141 = por %p139, %p140
      %p142 = scmp.ne.s32.totalorder %s133, %s134
      %p143 = scmp.eq.s32.totalorder %s39, 0
      %p144 = por %p142, %p143
      %p145 = scmp.ne.s32.totalorder %s133, %s134
      %p146 = scmp.eq.s32.totalorder %s40, 1
      %p147 = por %p145, %p146
      %p149 = scmp.ne.s32.totalorder %s134, %s148
      %p150 = scmp.eq.s32.totalorder %s40, 0
      %p151 = por %p149, %p150
      %s153 = sadd.s32 %s152, 1
      %p156 = scmp.eq.s32.totalorder %s34, 1
      %p157 = scmp.ne.s32.totalorder %s152, %s154
      %p158 = scmp.eq.s32.totalorder %s34, 0
      %p159 = por %p157, %p158
      %p160 = scmp.ne.s32.totalorder %s152, %s154
      %p161 = scmp.eq.s32.totalorder %s39, 1
      %p162 = por %p160, %p161
      %p163 = scmp.ne.s32.totalorder %s154, %s155
      %p164 = scmp.eq.s32.totalorder %s39, 0
      %p165 = por %p163, %p164
      %p166 = scmp.ne.s32.totalorder %s154, %s155
      %p167 = scmp.eq.s32.totalorder %s40, 1
      %p168 = por %p166, %p167
      %p170 = scmp.ne.s32.totalorder %s155, %s169
      %p171 = scmp.eq.s32.totalorder %s40, 0
      %p172 = por %p170, %p171
      %s174 = sadd.s32 %s173, 1
      %p177 = scmp.eq.s32.totalorder %s34, 1
      %p178 = scmp.ne.s32.totalorder %s173, %s175
      %p179 = scmp.eq.s32.totalorder %s34, 0
      %p180 = por %p178, %p179
      %p181 = scmp.ne.s32.totalorder %s173, %s175
      %p182 = scmp.eq.s32.totalorder %s39, 1
      %p183 = por %p181, %p182
      %p184 = scmp.ne.s32.totalorder %s175, %s176
      %p185 = scmp.eq.s32.totalorder %s39, 0
      %p186 = por %p184, %p185
      %p187 = scmp.ne.s32.totalorder %s175, %s176
      %p188 = scmp.eq.s32.totalorder %s40, 1
      %p189 = por %p187, %p188
      %p191 = scmp.ne.s32.totalorder %s176, %s190
      %p192 = scmp.eq.s32.totalorder %s40, 0
      %p193 = por %p191, %p192
      %s195 = sadd.s32 %s194, 1
      %p198 = scmp.eq.s32.totalorder %s34, 1
      %p199 = scmp.ne.s32.totalorder %s194, %s196
      %p200 = scmp.eq.s32.totalorder %s34, 0
      %p201 = por %p199, %p200
      %p202 = scmp.ne.s32.totalorder %s194, %s196
      %p203 = scmp.eq.s32.totalorder %s39, 1
      %p204 = por %p202, %p203
      %p205 = scmp.ne.s32.totalorder %s196, %s197
      %p206 = scmp.eq.s32.totalorder %s39, 0
      %p207 = por %p205, %p206
      %p208 = scmp.ne.s32.totalorder %s196, %s197
      %p209 = scmp.eq.s32.totalorder %s40, 1
      %p210 = por %p208, %p209
      %p212 = scmp.ne.s32.totalorder %s197, %s211
      %p213 = scmp.eq.s32.totalorder %s40, 0
      %p214 = por %p212, %p213
      %s216 = sadd.s32 %s215, 1
      %p219 = scmp.eq.s32.totalorder %s34, 1
      %p220 = scmp.ne.s32.totalorder %s215, %s217
      %p221 = scmp.eq.s32.totalorder %s34, 0
      %p222 = por %p220, %p221
      %p223 = scmp.ne.s32.totalorder %s215, %s217
      %p224 = scmp.eq.s32.totalorder %s39, 1
      %p225 = por %p223, %p224
      %p226 = scmp.ne.s32.totalorder %s217, %s218
      %p227 = scmp.eq.s32.totalorder %s39, 0
      %p228 = por %p226, %p227
      %p229 = scmp.ne.s32.totalorder %s217, %s218
      %p230 = scmp.eq.s32.totalorder %s40, 1
      %p231 = por %p229, %p230
      %p233 = scmp.ne.s32.totalorder %s218, %s232
      %p234 = scmp.eq.s32.totalorder %s40, 0
      %p235 = por %p233, %p234
      %s237 = sadd.s32 %s236, 1
      %p240 = scmp.eq.s32.totalorder %s34, 1
      %p241 = scmp.ne.s32.totalorder %s236, %s238
      %p242 = scmp.eq.s32.totalorder %s34, 0
      %p243 = por %p241, %p242
      %p244 = scmp.ne.s32.totalorder %s236, %s238
      %p245 = scmp.eq.s32.totalorder %s39, 1
      %p246 = por %p244, %p245
      %p247 = scmp.ne.s32.totalorder %s238, %s239
      %p248 = scmp.eq.s32.totalorder %s39, 0
      %p249 = por %p247, %p248
      %p250 = scmp.ne.s32.totalorder %s238, %s239
      %p251 = scmp.eq.s32.totalorder %s40, 1
      %p252 = por %p250, %p251
      %p254 = scmp.ne.s32.totalorder %s239, %s253
      %p255 = scmp.eq.s32.totalorder %s40, 0
      %p256 = por %p254, %p255
      %s258 = sadd.s32 %s257, 1
      %p261 = scmp.eq.s32.totalorder %s34, 1
      %p262 = scmp.ne.s32.totalorder %s257, %s259
      %p263 = scmp.eq.s32.totalorder %s34, 0
      %p264 = por %p262, %p263
      %p265 = scmp.ne.s32.totalorder %s257, %s259
      %p266 = scmp.eq.s32.totalorder %s39, 1
      %p267 = por %p265, %p266
      %p268 = scmp.ne.s32.totalorder %s259, %s260
      %p269 = scmp.eq.s32.totalorder %s39, 0
      %p270 = por %p268, %p269
      %p271 = scmp.ne.s32.totalorder %s259, %s260
      %p272 = scmp.eq.s32.totalorder %s40, 1
      %p273 = por %p271, %p272
      %p275 = scmp.ne.s32.totalorder %s260, %s274
      %p276 = scmp.eq.s32.totalorder %s40, 0
      %p277 = por %p275, %p276
      %s279 = sadd.s32 %s278, 1
      %p282 = scmp.eq.s32.totalorder %s34, 1
      %p283 = scmp.ne.s32.totalorder %s278, %s280
      %p284 = scmp.eq.s32.totalorder %s34, 0
      %p285 = por %p283, %p284
      %p286 = scmp.ne.s32.totalorder %s278, %s280
      %p287 = scmp.eq.s32.totalorder %s39, 1
      %p288 = por %p286, %p287
      %p289 = scmp.ne.s32.totalorder %s280, %s281
      %p290 = scmp.eq.s32.totalorder %s39, 0
      %p291 = por %p289, %p290
      %p292 = scmp.ne.s32.totalorder %s280, %s281
      %p293 = scmp.eq.s32.totalorder %s40, 1
      %p294 = por %p292, %p293
      %p296 = scmp.ne.s32.totalorder %s281, %s295
      %p297 = scmp.eq.s32.totalorder %s40, 0
      %p298 = por %p296, %p297
      %s300 = sadd.s32 %s299, 1
      %p303 = scmp.eq.s32.totalorder %s34, 1
      %p304 = scmp.ne.s32.totalorder %s299, %s301
      %p305 = scmp.eq.s32.totalorder %s34, 0
      %p306 = por %p304, %p305
      %p307 = scmp.ne.s32.totalorder %s299, %s301
      %p308 = scmp.eq.s32.totalorder %s39, 1
      %p309 = por %p307, %p308
      %p310 = scmp.ne.s32.totalorder %s301, %s302
      %p311 = scmp.eq.s32.totalorder %s39, 0
      %p312 = por %p310, %p311
      %p313 = scmp.ne.s32.totalorder %s301, %s302
      %p314 = scmp.eq.s32.totalorder %s40, 1
      %p315 = por %p313, %p314
      %p317 = scmp.ne.s32.totalorder %s302, %s316
      %p318 = scmp.eq.s32.totalorder %s40, 0
      %p319 = por %p317, %p318
      %s321 = sadd.s32 %s320, 1
      %p324 = scmp.eq.s32.totalorder %s34, 1
      %p325 = scmp.ne.s32.totalorder %s320, %s322
      %p326 = scmp.eq.s32.totalorder %s34, 0
      %p327 = por %p325, %p326
      %p328 = scmp.ne.s32.totalorder %s320, %s322
      %p329 = scmp.eq.s32.totalorder %s39, 1
      %p330 = por %p328, %p329
      %p331 = scmp.ne.s32.totalorder %s322, %s323
      %p332 = scmp.eq.s32.totalorder %s39, 0
      %p333 = por %p331, %p332
      %p334 = scmp.ne.s32.totalorder %s322, %s323
      %p335 = scmp.eq.s32.totalorder %s40, 1
      %p336 = por %p334, %p335
      %p338 = scmp.ne.s32.totalorder %s323, %s337
      %p339 = scmp.eq.s32.totalorder %s40, 0
      %p340 = por %p338, %p339
      %s342 = sadd.s32 %s341, 1
      %p345 = scmp.eq.s32.totalorder %s34, 1
      %p346 = scmp.ne.s32.totalorder %s341, %s343
      %p347 = scmp.eq.s32.totalorder %s34, 0
      %p348 = por %p346, %p347
      %p349 = scmp.ne.s32.totalorder %s341, %s343
      %p350 = scmp.eq.s32.totalorder %s39, 1
      %p351 = por %p349, %p350
      %p352 = scmp.ne.s32.totalorder %s343, %s344
      %p353 = scmp.eq.s32.totalorder %s39, 0
      %p354 = por %p352, %p353
      %p355 = scmp.ne.s32.totalorder %s343, %s344
      %p356 = scmp.eq.s32.totalorder %s40, 1
      %p357 = por %p355, %p356
      %p359 = scmp.ne.s32.totalorder %s344, %s358
      %p360 = scmp.eq.s32.totalorder %s40, 0
      %p361 = por %p359, %p360
      %s363 = sadd.s32 %s362, 1
      %p366 = scmp.eq.s32.totalorder %s34, 1
      %p367 = scmp.ne.s32.totalorder %s362, %s364
      %p368 = scmp.eq.s32.totalorder %s34, 0
      %p369 = por %p367, %p368
      %p370 = scmp.ne.s32.totalorder %s362, %s364
      %p371 = scmp.eq.s32.totalorder %s39, 1
      %p372 = por %p370, %p371
      %p373 = scmp.ne.s32.totalorder %s364, %s365
      %p374 = scmp.eq.s32.totalorder %s39, 0
      %p375 = por %p373, %p374
      %p376 = scmp.ne.s32.totalorder %s364, %s365
      %p377 = scmp.eq.s32.totalorder %s40, 1
      %p378 = por %p376, %p377
      %p380 = scmp.ne.s32.totalorder %s365, %s379
      %p381 = scmp.eq.s32.totalorder %s40, 0
      %p382 = por %p380, %p381
      %s384 = sadd.s32 %s383, 1
      %p387 = scmp.eq.s32.totalorder %s34, 1
      %p388 = scmp.ne.s32.totalorder %s383, %s385
      %p389 = scmp.eq.s32.totalorder %s34, 0
      %p390 = por %p388, %p389
      %p391 = scmp.ne.s32.totalorder %s383, %s385
      %p392 = scmp.eq.s32.totalorder %s39, 1
      %p393 = por %p391, %p392
      %p394 = scmp.ne.s32.totalorder %s385, %s386
      %p395 = scmp.eq.s32.totalorder %s39, 0
      %p396 = por %p394, %p395
      %p397 = scmp.ne.s32.totalorder %s385, %s386
      %p398 = scmp.eq.s32.totalorder %s40, 1
      %p399 = por %p397, %p398
      %p401 = scmp.ne.s32.totalorder %s386, %s400
      %p402 = scmp.eq.s32.totalorder %s40, 0
      %p403 = por %p401, %p402
      %s405 = sadd.s32 %s404, 1
      %p408 = scmp.eq.s32.totalorder %s34, 1
      %p409 = scmp.ne.s32.totalorder %s404, %s406
      %p410 = scmp.eq.s32.totalorder %s34, 0
      %p411 = por %p409, %p410
      %p412 = scmp.ne.s32.totalorder %s404, %s406
      %p413 = scmp.eq.s32.totalorder %s39, 1
      %p414 = por %p412, %p413
      %p415 = scmp.ne.s32.totalorder %s406, %s407
      %p416 = scmp.eq.s32.totalorder %s39, 0
      %p417 = por %p415, %p416
      %p418 = scmp.ne.s32.totalorder %s406, %s407
      %p419 = scmp.eq.s32.totalorder %s40, 1
      %p420 = por %p418, %p419
      %p422 = scmp.ne.s32.totalorder %s407, %s421
      %p423 = scmp.eq.s32.totalorder %s40, 0
      %p424 = por %p422, %p423
      %s426 = sadd.s32 %s425, 1
      %p429 = scmp.eq.s32.totalorder %s34, 1
      %p430 = scmp.ne.s32.totalorder %s425, %s427
      %p431 = scmp.eq.s32.totalorder %s34, 0
      %p432 = por %p430, %p431
      %p433 = scmp.ne.s32.totalorder %s425, %s427
      %p434 = scmp.eq.s32.totalorder %s39, 1
      %p435 = por %p433, %p434
      %p436 = scmp.ne.s32.totalorder %s427, %s428
      %p437 = scmp.eq.s32.totalorder %s39, 0
      %p438 = por %p436, %p437
      %p439 = scmp.ne.s32.totalorder %s427, %s428
      %p440 = scmp.eq.s32.totalorder %s40, 1
      %p441 = por %p439, %p440
      %p443 = scmp.ne.s32.totalorder %s428, %s442
      %p444 = scmp.eq.s32.totalorder %s40, 0
      %p445 = por %p443, %p444
      %s447 = sadd.s32 %s446, 1
      %p450 = scmp.eq.s32.totalorder %s34, 1
      %p451 = scmp.ne.s32.totalorder %s446, %s448
      %p452 = scmp.eq.s32.totalorder %s34, 0
      %p453 = por %p451, %p452
      %p454 = scmp.ne.s32.totalorder %s446, %s448
      %p455 = scmp.eq.s32.totalorder %s39, 1
      %p456 = por %p454, %p455
      %p457 = scmp.ne.s32.totalorder %s448, %s449
      %p458 = scmp.eq.s32.totalorder %s39, 0
      %p459 = por %p457, %p458
      %p460 = scmp.ne.s32.totalorder %s448, %s449
      %p461 = scmp.eq.s32.totalorder %s40, 1
      %p462 = por %p460, %p461
      %p464 = scmp.ne.s32.totalorder %s449, %s463
      %p465 = scmp.eq.s32.totalorder %s40, 0
      %p466 = por %p464, %p465
      %s468 = sadd.s32 %s467, 1
      %p471 = scmp.eq.s32.totalorder %s34, 1
      %p472 = scmp.ne.s32.totalorder %s467, %s469
      %p473 = scmp.eq.s32.totalorder %s34, 0
      %p474 = por %p472, %p473
      %p475 = scmp.ne.s32.totalorder %s467, %s469
      %p476 = scmp.eq.s32.totalorder %s39, 1
      %p477 = por %p475, %p476
      %p478 = scmp.ne.s32.totalorder %s469, %s470
      %p479 = scmp.eq.s32.totalorder %s39, 0
      %p480 = por %p478, %p479
      %p481 = scmp.ne.s32.totalorder %s469, %s470
      %p482 = scmp.eq.s32.totalorder %s40, 1
      %p483 = por %p481, %p482
      %p485 = scmp.ne.s32.totalorder %s470, %s484
      %p486 = scmp.eq.s32.totalorder %s40, 0
      %p487 = por %p485, %p486
      %s489 = sadd.s32 %s488, 1
      %p492 = scmp.eq.s32.totalorder %s34, 1
      %p493 = scmp.ne.s32.totalorder %s488, %s490
      %p494 = scmp.eq.s32.totalorder %s34, 0
      %p495 = por %p493, %p494
      %p496 = scmp.ne.s32.totalorder %s488, %s490
      %p497 = scmp.eq.s32.totalorder %s39, 1
      %p498 = por %p496, %p497
      %p499 = scmp.ne.s32.totalorder %s490, %s491
      %p500 = scmp.eq.s32.totalorder %s39, 0
      %p501 = por %p499, %p500
      %p502 = scmp.ne.s32.totalorder %s490, %s491
      %p503 = scmp.eq.s32.totalorder %s40, 1
      %p504 = por %p502, %p503
      %p506 = scmp.ne.s32.totalorder %s491, %s505
      %p507 = scmp.eq.s32.totalorder %s40, 0
      %p508 = por %p506, %p507
      %s510 = sadd.s32 %s509, 1
      %p513 = scmp.eq.s32.totalorder %s34, 1
      %p514 = scmp.ne.s32.totalorder %s509, %s511
      %p515 = scmp.eq.s32.totalorder %s34, 0
      %p516 = por %p514, %p515
      %p517 = scmp.ne.s32.totalorder %s509, %s511
      %p518 = scmp.eq.s32.totalorder %s39, 1
      %p519 = por %p517, %p518
      %p520 = scmp.ne.s32.totalorder %s511, %s512
      %p521 = scmp.eq.s32.totalorder %s39, 0
      %p522 = por %p520, %p521
      %p523 = scmp.ne.s32.totalorder %s511, %s512
      %p524 = scmp.eq.s32.totalorder %s40, 1
      %p525 = por %p523, %p524
      %p527 = scmp.ne.s32.totalorder %s512, %s526
      %p528 = scmp.eq.s32.totalorder %s40, 0
      %p529 = por %p527, %p528
      %s531 = sadd.s32 %s530, 1
      %p534 = scmp.eq.s32.totalorder %s34, 1
      %p535 = scmp.ne.s32.totalorder %s530, %s532
      %p536 = scmp.eq.s32.totalorder %s34, 0
      %p537 = por %p535, %p536
      %p538 = scmp.ne.s32.totalorder %s530, %s532
      %p539 = scmp.eq.s32.totalorder %s39, 1
      %p540 = por %p538, %p539
      %p541 = scmp.ne.s32.totalorder %s532, %s533
      %p542 = scmp.eq.s32.totalorder %s39, 0
      %p543 = por %p541, %p542
      %p544 = scmp.ne.s32.totalorder %s532, %s533
      %p545 = scmp.eq.s32.totalorder %s40, 1
      %p546 = por %p544, %p545
      %p548 = scmp.ne.s32.totalorder %s533, %s547
      %p549 = scmp.eq.s32.totalorder %s40, 0
      %p550 = por %p548, %p549
      %s552 = sadd.s32 %s551, 1
      %p555 = scmp.eq.s32.totalorder %s34, 1
      %p556 = scmp.ne.s32.totalorder %s551, %s553
      %p557 = scmp.eq.s32.totalorder %s34, 0
      %p558 = por %p556, %p557
      %p559 = scmp.ne.s32.totalorder %s551, %s553
      %p560 = scmp.eq.s32.totalorder %s39, 1
      %p561 = por %p559, %p560
      %p562 = scmp.ne.s32.totalorder %s553, %s554
      %p563 = scmp.eq.s32.totalorder %s39, 0
      %p564 = por %p562, %p563
      %p565 = scmp.ne.s32.totalorder %s553, %s554
      %p566 = scmp.eq.s32.totalorder %s40, 1
      %p567 = por %p565, %p566
      %p569 = scmp.ne.s32.totalorder %s554, %s568
      %p570 = scmp.eq.s32.totalorder %s40, 0
      %p571 = por %p569, %p570
      %s572 = ssub.s32 %s34, %s41
      %p573 = scmp.eq.s32.totalorder %s572, 0
      %s575 = sadd.s32 %s574, 1
      %s576 = scalar_select %p573, %s574, %s575
      %p579 = pneg %p573
      %p580 = scmp.eq.s32.totalorder %s34, 1
      %p581 = por %p579, %p580
      %p582 = scmp.ne.s32.totalorder %s574, %s577
      %p583 = scmp.eq.s32.totalorder %s34, 0
      %p584 = por %p582, %p583
      %p585 = scmp.ne.s32.totalorder %s574, %s577
      %p586 = scmp.eq.s32.totalorder %s39, 1
      %p587 = por %p585, %p586
      %p588 = scmp.ne.s32.totalorder %s577, %s578
      %p589 = scmp.eq.s32.totalorder %s39, 0
      %p590 = por %p588, %p589
      %p591 = scmp.ne.s32.totalorder %s577, %s578
      %p592 = scmp.eq.s32.totalorder %s40, 1
      %p593 = por %p591, %p592
      %p595 = scmp.ne.s32.totalorder %s578, %s594
      %p596 = scmp.eq.s32.totalorder %s40, 0
      %p597 = por %p595, %p596
      %p598 = scmp.le.s32.totalorder 1, %s34
      %p599 = scmp.lt.s32.totalorder %s34, 3
      %p600 = pnand %p598, %p599
      %p601 = pneg %p600
      // Predicated region
      $region9: #{vit_forward.1} parent=5 // pred_check
        _
      $region10: #{vit_forward.1} parent=5 // pred_check_branch
        %603 = sbr.rel (%p600) target = $region12
      $region11: #{vit_forward.1} parent=5 // pred_region
        %s604 = ssub.s32 %s34, 1
        // Predicated region
        $region13: #{vit_forward.1} parent=11 // pred_check
          %p605 = pneg %p81
        $region14: #{vit_forward.1} parent=11 // pred_check_branch
          %607 = sbr.rel (%p605) target = $region16
        $region15: #{vit_forward.1} parent=11 // pred_region
          _
        $region16: #{vit_forward.1} parent=11 // pred_fallthru
          _
        // Predicated region
        $region17: #{vit_forward.1} parent=11 // pred_check
          %p608 = pneg %p102
        $region18: #{vit_forward.1} parent=11 // pred_check_branch
          %610 = sbr.rel (%p608) target = $region20
        $region19: #{vit_forward.1} parent=11 // pred_region
          _
        $region20: #{vit_forward.1} parent=11 // pred_fallthru
          _
        // Predicated region
        $region21: #{vit_forward.1} parent=11 // pred_check
          %p611 = pneg %p123
        $region22: #{vit_forward.1} parent=11 // pred_check_branch
          %613 = sbr.rel (%p611) target = $region24
        $region23: #{vit_forward.1} parent=11 // pred_region
          _
        $region24: #{vit_forward.1} parent=11 // pred_fallthru
          _
        // Predicated region
        $region25: #{vit_forward.1} parent=11 // pred_check
          %p614 = pneg %p144
        $region26: #{vit_forward.1} parent=11 // pred_check_branch
          %616 = sbr.rel (%p614) target = $region28
        $region27: #{vit_forward.1} parent=11 // pred_region
          _
        $region28: #{vit_forward.1} parent=11 // pred_fallthru
          _
        // Predicated region
        $region29: #{vit_forward.1} parent=11 // pred_check
          %p617 = pneg %p165
        $region30: #{vit_forward.1} parent=11 // pred_check_branch
          %619 = sbr.rel (%p617) target = $region32
        $region31: #{vit_forward.1} parent=11 // pred_region
          _
        $region32: #{vit_forward.1} parent=11 // pred_fallthru
          _
        // Predicated region
        $region33: #{vit_forward.1} parent=11 // pred_check
          %p620 = pneg %p186
        $region34: #{vit_forward.1} parent=11 // pred_check_branch
          %622 = sbr.rel (%p620) target = $region36
        $region35: #{vit_forward.1} parent=11 // pred_region
          _
        $region36: #{vit_forward.1} parent=11 // pred_fallthru
          _
        // Predicated region
        $region37: #{vit_forward.1} parent=11 // pred_check
          %p623 = pneg %p207
        $region38: #{vit_forward.1} parent=11 // pred_check_branch
          %625 = sbr.rel (%p623) target = $region40
        $region39: #{vit_forward.1} parent=11 // pred_region
          _
        $region40: #{vit_forward.1} parent=11 // pred_fallthru
          _
        // Predicated region
        $region41: #{vit_forward.1} parent=11 // pred_check
          %p626 = pneg %p228
        $region42: #{vit_forward.1} parent=11 // pred_check_branch
          %628 = sbr.rel (%p626) target = $region44
        $region43: #{vit_forward.1} parent=11 // pred_region
          _
        $region44: #{vit_forward.1} parent=11 // pred_fallthru
          _
        // Predicated region
        $region45: #{vit_forward.1} parent=11 // pred_check
          %p629 = pneg %p249
        $region46: #{vit_forward.1} parent=11 // pred_check_branch
          %631 = sbr.rel (%p629) target = $region48
        $region47: #{vit_forward.1} parent=11 // pred_region
          _
        $region48: #{vit_forward.1} parent=11 // pred_fallthru
          _
        // Predicated region
        $region49: #{vit_forward.1} parent=11 // pred_check
          %p632 = pneg %p270
        $region50: #{vit_forward.1} parent=11 // pred_check_branch
          %634 = sbr.rel (%p632) target = $region52
        $region51: #{vit_forward.1} parent=11 // pred_region
          _
        $region52: #{vit_forward.1} parent=11 // pred_fallthru
          _
        // Predicated region
        $region53: #{vit_forward.1} parent=11 // pred_check
          %p635 = pneg %p291
        $region54: #{vit_forward.1} parent=11 // pred_check_branch
          %637 = sbr.rel (%p635) target = $region56
        $region55: #{vit_forward.1} parent=11 // pred_region
          _
        $region56: #{vit_forward.1} parent=11 // pred_fallthru
          _
        // Predicated region
        $region57: #{vit_forward.1} parent=11 // pred_check
          %p638 = pneg %p312
        $region58: #{vit_forward.1} parent=11 // pred_check_branch
          %640 = sbr.rel (%p638) target = $region60
        $region59: #{vit_forward.1} parent=11 // pred_region
          _
        $region60: #{vit_forward.1} parent=11 // pred_fallthru
          _
        // Predicated region
        $region61: #{vit_forward.1} parent=11 // pred_check
          %p641 = pneg %p333
        $region62: #{vit_forward.1} parent=11 // pred_check_branch
          %643 = sbr.rel (%p641) target = $region64
        $region63: #{vit_forward.1} parent=11 // pred_region
          _
        $region64: #{vit_forward.1} parent=11 // pred_fallthru
          _
        // Predicated region
        $region65: #{vit_forward.1} parent=11 // pred_check
          %p644 = pneg %p354
        $region66: #{vit_forward.1} parent=11 // pred_check_branch
          %646 = sbr.rel (%p644) target = $region68
        $region67: #{vit_forward.1} parent=11 // pred_region
          _
        $region68: #{vit_forward.1} parent=11 // pred_fallthru
          _
        // Predicated region
        $region69: #{vit_forward.1} parent=11 // pred_check
          %p647 = pneg %p375
        $region70: #{vit_forward.1} parent=11 // pred_check_branch
          %649 = sbr.rel (%p647) target = $region72
        $region71: #{vit_forward.1} parent=11 // pred_region
          _
        $region72: #{vit_forward.1} parent=11 // pred_fallthru
          _
        // Predicated region
        $region73: #{vit_forward.1} parent=11 // pred_check
          %p650 = pneg %p396
        $region74: #{vit_forward.1} parent=11 // pred_check_branch
          %652 = sbr.rel (%p650) target = $region76
        $region75: #{vit_forward.1} parent=11 // pred_region
          _
        $region76: #{vit_forward.1} parent=11 // pred_fallthru
          _
        // Predicated region
        $region77: #{vit_forward.1} parent=11 // pred_check
          %p653 = pneg %p417
        $region78: #{vit_forward.1} parent=11 // pred_check_branch
          %655 = sbr.rel (%p653) target = $region80
        $region79: #{vit_forward.1} parent=11 // pred_region
          _
        $region80: #{vit_forward.1} parent=11 // pred_fallthru
          _
        // Predicated region
        $region81: #{vit_forward.1} parent=11 // pred_check
          %p656 = pneg %p438
        $region82: #{vit_forward.1} parent=11 // pred_check_branch
          %658 = sbr.rel (%p656) target = $region84
        $region83: #{vit_forward.1} parent=11 // pred_region
          _
        $region84: #{vit_forward.1} parent=11 // pred_fallthru
          _
        // Predicated region
        $region85: #{vit_forward.1} parent=11 // pred_check
          %p659 = pneg %p459
        $region86: #{vit_forward.1} parent=11 // pred_check_branch
          %661 = sbr.rel (%p659) target = $region88
        $region87: #{vit_forward.1} parent=11 // pred_region
          _
        $region88: #{vit_forward.1} parent=11 // pred_fallthru
          _
        // Predicated region
        $region89: #{vit_forward.1} parent=11 // pred_check
          %p662 = pneg %p480
        $region90: #{vit_forward.1} parent=11 // pred_check_branch
          %664 = sbr.rel (%p662) target = $region92
        $region91: #{vit_forward.1} parent=11 // pred_region
          _
        $region92: #{vit_forward.1} parent=11 // pred_fallthru
          _
        // Predicated region
        $region93: #{vit_forward.1} parent=11 // pred_check
          %p665 = pneg %p501
        $region94: #{vit_forward.1} parent=11 // pred_check_branch
          %667 = sbr.rel (%p665) target = $region96
        $region95: #{vit_forward.1} parent=11 // pred_region
          _
        $region96: #{vit_forward.1} parent=11 // pred_fallthru
          _
        // Predicated region
        $region97: #{vit_forward.1} parent=11 // pred_check
          %p668 = pneg %p522
        $region98: #{vit_forward.1} parent=11 // pred_check_branch
          %670 = sbr.rel (%p668) target = $region100
        $region99: #{vit_forward.1} parent=11 // pred_region
          _
        $region100: #{vit_forward.1} parent=11 // pred_fallthru
          _
        // Predicated region
        $region101: #{vit_forward.1} parent=11 // pred_check
          %p671 = pneg %p543
        $region102: #{vit_forward.1} parent=11 // pred_check_branch
          %673 = sbr.rel (%p671) target = $region104
        $region103: #{vit_forward.1} parent=11 // pred_region
          _
        $region104: #{vit_forward.1} parent=11 // pred_fallthru
          _
        // Predicated region
        $region105: #{vit_forward.1} parent=11 // pred_check
          %p674 = pneg %p564
        $region106: #{vit_forward.1} parent=11 // pred_check_branch
          %676 = sbr.rel (%p674) target = $region108
        $region107: #{vit_forward.1} parent=11 // pred_region
          _
        $region108: #{vit_forward.1} parent=11 // pred_fallthru
          _
      $region12: #{vit_forward.1} parent=5 // pred_fallthru
        _
      %p677 = scmp.lt.s32.totalorder %s34, 2
      // Predicated region
      $region109: #{vit_forward.1} parent=5 // pred_check
        %p678 = pneg %p677
      $region110: #{vit_forward.1} parent=5 // pred_check_branch
        %680 = sbr.rel (%p678) target = $region112
      $region111: #{vit_forward.1} parent=5 // pred_region
        // Predicated region
        $region113: #{vit_forward.1} parent=111 // pred_check
          %p681 = pneg %p54
        $region114: #{vit_forward.1} parent=111 // pred_check_branch
          %683 = sbr.rel (%p681) target = $region116
        $region115: #{vit_forward.1} parent=111 // pred_region
          %p684 = scmp.lt.s32.totalorder %s34, 1
          %s685 = scalar_select %p684, %s34, 1
          %s686 = smul.addr %s685, 2
          %s687 = smul.addr %s686, 8
          %s688 = scalar_lea.vmem %s0, %s687
        $region116: #{vit_forward.1} parent=111 // pred_fallthru
          _
      $region112: #{vit_forward.1} parent=5 // pred_fallthru
        _
      %p689 = scmp.le.s32.totalorder 1, %s34
      %p690 = scmp.lt.s32.totalorder %s34, 3
      %p691 = pnand %p689, %p690
      %p692 = pneg %p691
      // Predicated region
      $region117: #{vit_forward.1} parent=5 // pred_check
        _
      $region118: #{vit_forward.1} parent=5 // pred_check_branch
        %694 = sbr.rel (%p691) target = $region120
      $region119: #{vit_forward.1} parent=5 // pred_region
        %s695 = ssub.s32 %s34, 1
        %p696 = scmp.lt.s32.totalorder %s39, 1
        %s697 = scalar_select %p696, %s39, 1
        %s698 = smul.addr %s697, 2
        %s699 = smul.addr %s698, 8
        %s700 = scalar_lea.vmem %s0, %s699
        %p701 = pneg %p60
        %p702 = pneg %p57
        %p703 = pneg %p81
        %p704 = pneg %p78
        %p705 = pneg %p102
        %p706 = pneg %p99
        %p707 = pneg %p123
        %p708 = pneg %p120
        %p709 = pneg %p144
        %p710 = pneg %p141
        %p711 = pneg %p165
        %p712 = pneg %p162
        %p713 = pneg %p186
        %p714 = pneg %p183
        %p715 = pneg %p207
        %p716 = pneg %p204
        %p717 = pneg %p228
        %p718 = pneg %p225
        %p719 = pneg %p249
        %p720 = pneg %p246
        %p721 = pneg %p270
        %p722 = pneg %p267
        %p723 = pneg %p291
        %p724 = pneg %p288
        %p725 = pneg %p312
        %p726 = pneg %p309
        %p727 = pneg %p333
        %p728 = pneg %p330
        %p729 = pneg %p354
        %p730 = pneg %p351
        %p731 = pneg %p375
        %p732 = pneg %p372
        %p733 = pneg %p396
        %p734 = pneg %p393
        %p735 = pneg %p417
        %p736 = pneg %p414
        %p737 = pneg %p438
        %p738 = pneg %p435
        %p739 = pneg %p459
        %p740 = pneg %p456
        %p741 = pneg %p480
        %p742 = pneg %p477
        %p743 = pneg %p501
        %p744 = pneg %p498
        %p745 = pneg %p522
        %p746 = pneg %p519
        %p747 = pneg %p543
        %p748 = pneg %p540
        %p749 = pneg %p564
        %p750 = pneg %p561
        %p751 = pneg %p590
        %p752 = pneg %p587
        %s753 = sand.u32 %s577, 1
        %s754 = scalar_lea.sflag [#allocation3], %s753
        %s755 = sand.u32 %s577, 1
        %s756 = scalar_lea.vmem [#allocation2], %s755
        %p757 = scmp.lt.s32.totalorder %s39, 1
        %s758 = scalar_select %p757, %s39, 1
        %s759 = smul.addr %s758, 2
        %s760 = smul.addr %s759, 8
        %s761 = scalar_lea.vmem %s0, %s760
        %v762 = vld [vmem:[%s761] sm:$0xff]
        %v763 = vld [vmem:[%s761 + $0x8] sm:$0xff]
        %v764 = vld [vmem:[%s1] sm:$0xff]
        %v765 = vld [vmem:[%s1 + $0x8] sm:$0xff]
        %v766 = vld [vmem:[%s1 + $0x10] sm:$0xff]
        %v767 = vld [vmem:[%s1 + $0x18] sm:$0xff]
        %v768 = vld [vmem:[%s1 + $0x20] sm:$0xff]
        %v769 = vld [vmem:[%s1 + $0x28] sm:$0xff]
        %v770 = vld [vmem:[%s2] sm:$0x1]
        %v772 = vlaneseq
        %v773 = vshrl.u32 %v772, 7
        %v774 = vsub.s32 0, %v773
        %v775 = vrot.slane %v770, %v774
        %vm777 = vcmask 392192
        %v779 = vsel %vm777, %v762, 0
        %v782 = vsel %vm777, %v763, 0
        %784 = vmatprep.subr.mxu0 0.0
        %785 = vmatpush1.msra.mxu0 0.0
        %786 = vmatprep.subr.mxu0 0.0
        %787 = vmatpush1.msra.mxu0 0.0
        %788 = vmatprep.subr.mxu0 0.0
        %789 = vmatpush1.msra.mxu0 0.0
        %790 = vmatprep.subr.mxu0 0.0
        %791 = vmatpush1.msra.mxu0 0.0
        %792 = vmatprep.subr.mxu0 0.0
        %793 = vmatpush1.msra.mxu0 0.0
        %794 = vmatprep.subr.mxu0 0.0
        %795 = vmatpush1.msra.mxu0 0.0
        %796 = vmatprep.subr.mxu0 0.0
        %797 = vmatpush1.msra.mxu0 0.0
        %798 = vmatprep.subr.mxu0 0.0
        %799 = vmatpush1.msra.mxu0 0.0
        %800 = vmatprep.subr.mxu0 0.0
        %801 = vmatpush1.msra.mxu0 0.0
        %802 = vmatprep.subr.mxu0 0.0
        %803 = vmatpush1.msra.mxu0 0.0
        %804 = vmatprep.subr.mxu0 0.0
        %805 = vmatpush1.msra.mxu0 %v769
        %806 = vmatprep.subr.mxu0 0.0
        %807 = vmatpush1.msra.mxu0 %v768
        %808 = vmatprep.subr.mxu0 0.0
        %809 = vmatpush1.msra.mxu0 %v767
        %810 = vmatprep.subr.mxu0 0.0
        %811 = vmatpush1.msra.mxu0 %v766
        %812 = vmatprep.subr.mxu0 0.0
        %813 = vmatpush1.msra.mxu0 %v765
        %814 = vmatprep.subr.mxu0 0.0
        %815 = vmatpush1.msra.mxu0 %v764
        %816 = vmatprep.subr.mxu0 0.0
        %817 = vmatpush2.msra.mxu0 0.0
        %818 = vmatprep.subr.mxu0 0.0
        %819 = vmatpush2.msra.mxu0 0.0
        %820 = vmatprep.subr.mxu0 0.0
        %821 = vmatpush2.msra.mxu0 0.0
        %822 = vmatprep.subr.mxu0 0.0
        %823 = vmatpush2.msra.mxu0 0.0
        %824 = vmatprep.subr.mxu0 0.0
        %825 = vmatpush2.msra.mxu0 0.0
        %826 = vmatprep.subr.mxu0 0.0
        %827 = vmatpush2.msra.mxu0 0.0
        %828 = vmatprep.subr.mxu0 0.0
        %829 = vmatpush2.msra.mxu0 0.0
        %830 = vmatprep.subr.mxu0 0.0
        %831 = vmatpush2.msra.mxu0 0.0
        %832 = vmatprep.subr.mxu0 0.0
        %833 = vmatpush2.msra.mxu0 0.0
        %834 = vmatprep.subr.mxu0 0.0
        %835 = vmatpush2.msra.mxu0 0.0
        %836 = vmatprep.subr.mxu0 0.0
        %837 = vmatpush2.msra.mxu0 0.0
        %838 = vmatprep.subr.mxu0 0.0
        %839 = vmatpush2.msra.mxu0 0.0
        %840 = vmatprep.subr.mxu0 0.0
        %841 = vmatpush2.msra.mxu0 0.0
        %842 = vmatprep.subr.mxu0 0.0
        %843 = vmatpush2.msra.mxu0 0.0
        %844 = vmatprep.subr.mxu0 0.0
        %845 = vmatpush2.msra.mxu0 0.0
        %846 = vmatprep.subr.mxu0 0.0
        %847 = vmatpush2.msra.mxu0 0.0
        %848 = vmatprep.mubr.f32.mxu0 0.0
        %849 = vmatmul.mubr.f32.gmra.mxu0 %v779
        %v850 = vpop.f32.mrf.mxu0
        %v851 = vadd.f32 %v775, %v850
        %v852 = vpop.f32.mrf.mxu0
        %853 = vmatprep.mubr.f32.mxu0 0.0
        %854 = vmatmul.mubr.f32.gmra.mxu0 %v782
        %v855 = vpop.f32.mrf.mxu0
        %v856 = vadd.f32 %v775, %v855
        %v857 = vpop.f32.mrf.mxu0
        %858 = vdwg.mxu0
        %v859 = vld [vmem:[%s3] sm:$0x1]
        %vm862 = vcmask 1040384
        %v863 = vrot.slane %v851, 7
        %v864 = vrot.slane %v856, 7
        %v865 = vsel %vm862, %v863, %v864
        %v869 = vsel %vm862, %v859, %v863
        %v870 = vld [vmem:[%s4] sm:$0xff]
        %v871 = vld [vmem:[%s4 + $0x8] sm:$0xff]
        %v872 = vld [vmem:[%s4 + $0x10] sm:$0x1]
        %v873 = vadd.f32 %v869, %v870
        %v874 = vadd.f32 %v865, %v871
        %v875 = vadd.f32 %v864, %v872
        %v876 = vld [vmem:[%s5] sm:$0x1]
        %v877 = vld [vmem:[%s6] sm:$0x1]
        %vm878 = vcmask 523264
        %v879 = vsel %vm878, %v873, 0.0
        %880 = vadd.xlane.f32.xlu0 %v879
        %v881 = vpop.xlane.xlu0 %880
        %v882 = vsel %vm878, %v874, 0.0
        %883 = vadd.xlane.f32.xlu0 %v882
        %v884 = vpop.xlane.xlu0 %883
        %vm885 = vcmask 516096
        %v886 = vsel %vm885, %v875, 0.0
        %887 = vadd.xlane.f32.xlu0 %v886
        %v888 = vpop.xlane.xlu0 %887
        %v889 = vrcp.pop 64.0
        %v890 = vmul.f32 %v881, %v889
        %v891 = vmul.f32 %v884, %v889
        %v892 = vmul.f32 %v888, %v889
        %v893 = vsub.f32 %v873, %v890
        %v894 = vsub.f32 %v874, %v891
        %v895 = vsub.f32 %v875, %v892
        %v896 = vmul.f32 %v893, %v893
        %v897 = vmul.f32 %v894, %v894
        %v898 = vmul.f32 %v895, %v895
        %v899 = vsel %vm878, %v896, 0.0
        %900 = vadd.xlane.f32.xlu0 %v899
        %v901 = vpop.xlane.xlu0 %900
        %v902 = vsel %vm878, %v897, 0.0
        %903 = vadd.xlane.f32.xlu0 %v902
        %v904 = vpop.xlane.xlu0 %903
        %v905 = vsel %vm885, %v898, 0.0
        %906 = vadd.xlane.f32.xlu0 %v905
        %v907 = vpop.xlane.xlu0 %906
        %v908 = vmul.f32 %v901, %v889
        %v909 = vmul.f32 %v904, %v889
        %v910 = vmul.f32 %v907, %v889
        %v911 = vadd.f32 %v908, 1e-05
        %v912 = vadd.f32 %v909, 1e-05
        %v913 = vadd.f32 %v910, 1e-05
        %v914 = vrsqrt.pop %v911
        %v915 = vrsqrt.pop %v912
        %v916 = vrsqrt.pop %v913
        %v917 = vmul.f32 %v893, %v914
        %v918 = vmul.f32 %v894, %v915
        %v919 = vmul.f32 %v895, %v916
        %v921 = vlaneseq
        %v922 = vshrl.u32 %v921, 7
        %v923 = vsub.s32 0, %v922
        %v924 = vrot.slane %v876, %v923
        %v926 = vmul.f32 %v917, %v924
        %v927 = vmul.f32 %v918, %v924
        %v928 = vmul.f32 %v919, %v924
        %v930 = vlaneseq
        %v931 = vshrl.u32 %v930, 7
        %v932 = vsub.s32 0, %v931
        %v933 = vrot.slane %v877, %v932
        %v935 = vadd.f32 %v926, %v933
        %v936 = vadd.f32 %v927, %v933
        %v937 = vadd.f32 %v928, %v933
        %v938 = vld [vmem:[%s7] sm:$0xff]
        %v939 = vld [vmem:[%s7 + $0x8] sm:$0xff]
        %v940 = vld [vmem:[%s7 + $0x10] sm:$0xff]
        %v941 = vld [vmem:[%s7 + $0x18] sm:$0xff]
        %v942 = vld [vmem:[%s7 + $0x20] sm:$0xff]
        %v943 = vld [vmem:[%s7 + $0x28] sm:$0xff]
        %v944 = vld [vmem:[%s7 + $0x30] sm:$0xff]
        %v945 = vld [vmem:[%s7 + $0x38] sm:$0xff]
        %v946 = vld [vmem:[%s10] sm:$0x1]
        %v948 = vlaneseq
        %v949 = vshrl.u32 %v948, 7
        %v950 = vsub.s32 0, %v949
        %v951 = vrot.slane %v946, %v950
        %v954 = vsel %vm878, %v935, 0
        %v957 = vsel %vm878, %v936, 0
        %v960 = vsel %vm878, %v937, 0
        %962 = vmatprep.subr.mxu0 0.0
        %963 = vmatpush1.msra.mxu0 0.0
        %964 = vmatprep.subr.mxu0 0.0
        %965 = vmatpush1.msra.mxu0 0.0
        %966 = vmatprep.subr.mxu0 0.0
        %967 = vmatpush1.msra.mxu0 0.0
        %968 = vmatprep.subr.mxu0 0.0
        %969 = vmatpush1.msra.mxu0 0.0
        %970 = vmatprep.subr.mxu0 0.0
        %971 = vmatpush1.msra.mxu0 0.0
        %972 = vmatprep.subr.mxu0 0.0
        %973 = vmatpush1.msra.mxu0 0.0
        %974 = vmatprep.subr.mxu0 0.0
        %975 = vmatpush1.msra.mxu0 0.0
        %976 = vmatprep.subr.mxu0 0.0
        %977 = vmatpush1.msra.mxu0 0.0
        %978 = vmatprep.subr.mxu0 0.0
        %979 = vmatpush1.msra.mxu0 %v945
        %980 = vmatprep.subr.mxu0 0.0
        %981 = vmatpush1.msra.mxu0 %v944
        %982 = vmatprep.subr.mxu0 0.0
        %983 = vmatpush1.msra.mxu0 %v943
        %984 = vmatprep.subr.mxu0 0.0
        %985 = vmatpush1.msra.mxu0 %v942
        %986 = vmatprep.subr.mxu0 0.0
        %987 = vmatpush1.msra.mxu0 %v941
        %988 = vmatprep.subr.mxu0 0.0
        %989 = vmatpush1.msra.mxu0 %v940
        %990 = vmatprep.subr.mxu0 0.0
        %991 = vmatpush1.msra.mxu0 %v939
        %992 = vmatprep.subr.mxu0 0.0
        %993 = vmatpush1.msra.mxu0 %v938
        %994 = vmatprep.subr.mxu0 0.0
        %995 = vmatpush2.msra.mxu0 0.0
        %996 = vmatprep.subr.mxu0 0.0
        %997 = vmatpush2.msra.mxu0 0.0
        %998 = vmatprep.subr.mxu0 0.0
        %999 = vmatpush2.msra.mxu0 0.0
        %1000 = vmatprep.subr.mxu0 0.0
        %1001 = vmatpush2.msra.mxu0 0.0
        %1002 = vmatprep.subr.mxu0 0.0
        %1003 = vmatpush2.msra.mxu0 0.0
        %1004 = vmatprep.subr.mxu0 0.0
        %1005 = vmatpush2.msra.mxu0 0.0
        %1006 = vmatprep.subr.mxu0 0.0
        %1007 = vmatpush2.msra.mxu0 0.0
        %1008 = vmatprep.subr.mxu0 0.0
        %1009 = vmatpush2.msra.mxu0 0.0
        %1010 = vmatprep.subr.mxu0 0.0
        %1011 = vmatpush2.msra.mxu0 0.0
        %1012 = vmatprep.subr.mxu0 0.0
        %1013 = vmatpush2.msra.mxu0 0.0
        %1014 = vmatprep.subr.mxu0 0.0
        %1015 = vmatpush2.msra.mxu0 0.0
        %1016 = vmatprep.subr.mxu0 0.0
        %1017 = vmatpush2.msra.mxu0 0.0
        %1018 = vmatprep.subr.mxu0 0.0
        %1019 = vmatpush2.msra.mxu0 0.0
        %1020 = vmatprep.subr.mxu0 0.0
        %1021 = vmatpush2.msra.mxu0 0.0
        %1022 = vmatprep.subr.mxu0 0.0
        %1023 = vmatpush2.msra.mxu0 0.0
        %1024 = vmatprep.subr.mxu0 0.0
        %1025 = vmatpush2.msra.mxu0 0.0
        %1026 = vmatprep.mubr.f32.mxu0 0.0
        %1027 = vmatmul.mubr.f32.gmra.mxu0 %v954
        %v1028 = vpop.f32.mrf.mxu0
        %v1029 = vadd.f32 %v951, %v1028
        %v1030 = vpop.f32.mrf.mxu0
        %1031 = vmatprep.mubr.f32.mxu0 0.0
        %1032 = vmatmul.mubr.f32.gmra.mxu0 %v957
        %v1033 = vpop.f32.mrf.mxu0
        %v1034 = vadd.f32 %v951, %v1033
        %v1035 = vpop.f32.mrf.mxu0
        %1036 = vmatprep.mubr.f32.mxu0 0.0
        %1037 = vmatmul.mubr.f32.gmra.mxu0 %v960
        %v1038 = vpop.f32.mrf.mxu0
        %v1039 = vadd.f32 %v951, %v1038
        %v1040 = vpop.f32.mrf.mxu0
        %1041 = vdwg.mxu0
        %v1042 = vmul.f32 %v1029, 0.25
        %v1043 = vmul.f32 %v1034, 0.25
        %v1044 = vmul.f32 %v1039, 0.25
        %v1045 = vld [vmem:[%s8] sm:$0xff]
        %v1046 = vld [vmem:[%s8 + $0x8] sm:$0xff]
        %v1047 = vld [vmem:[%s8 + $0x10] sm:$0xff]
        %v1048 = vld [vmem:[%s8 + $0x18] sm:$0xff]
        %v1049 = vld [vmem:[%s8 + $0x20] sm:$0xff]
        %v1050 = vld [vmem:[%s8 + $0x28] sm:$0xff]
        %v1051 = vld [vmem:[%s8 + $0x30] sm:$0xff]
        %v1052 = vld [vmem:[%s8 + $0x38] sm:$0xff]
        %v1053 = vld [vmem:[%s11] sm:$0x1]
        %v1055 = vlaneseq
        %v1056 = vshrl.u32 %v1055, 7
        %v1057 = vsub.s32 0, %v1056
        %v1058 = vrot.slane %v1053, %v1057
        %1060 = vmatprep.subr.mxu0 0.0
        %1061 = vmatpush1.msra.mxu0 0.0
        %1062 = vmatprep.subr.mxu0 0.0
        %1063 = vmatpush1.msra.mxu0 0.0
        %1064 = vmatprep.subr.mxu0 0.0
        %1065 = vmatpush1.msra.mxu0 0.0
        %1066 = vmatprep.subr.mxu0 0.0
        %1067 = vmatpush1.msra.mxu0 0.0
        %1068 = vmatprep.subr.mxu0 0.0
        %1069 = vmatpush1.msra.mxu0 0.0
        %1070 = vmatprep.subr.mxu0 0.0
        %1071 = vmatpush1.msra.mxu0 0.0
        %1072 = vmatprep.subr.mxu0 0.0
        %1073 = vmatpush1.msra.mxu0 0.0
        %1074 = vmatprep.subr.mxu0 0.0
        %1075 = vmatpush1.msra.mxu0 0.0
        %1076 = vmatprep.subr.mxu0 0.0
        %1077 = vmatpush1.msra.mxu0 %v1052
        %1078 = vmatprep.subr.mxu0 0.0
        %1079 = vmatpush1.msra.mxu0 %v1051
        %1080 = vmatprep.subr.mxu0 0.0
        %1081 = vmatpush1.msra.mxu0 %v1050
        %1082 = vmatprep.subr.mxu0 0.0
        %1083 = vmatpush1.msra.mxu0 %v1049
        %1084 = vmatprep.subr.mxu0 0.0
        %1085 = vmatpush1.msra.mxu0 %v1048
        %1086 = vmatprep.subr.mxu0 0.0
        %1087 = vmatpush1.msra.mxu0 %v1047
        %1088 = vmatprep.subr.mxu0 0.0
        %1089 = vmatpush1.msra.mxu0 %v1046
        %1090 = vmatprep.subr.mxu0 0.0
        %1091 = vmatpush1.msra.mxu0 %v1045
        %1092 = vmatprep.subr.mxu0 0.0
        %1093 = vmatpush2.msra.mxu0 0.0
        %1094 = vmatprep.subr.mxu0 0.0
        %1095 = vmatpush2.msra.mxu0 0.0
        %1096 = vmatprep.subr.mxu0 0.0
        %1097 = vmatpush2.msra.mxu0 0.0
        %1098 = vmatprep.subr.mxu0 0.0
        %1099 = vmatpush2.msra.mxu0 0.0
        %1100 = vmatprep.subr.mxu0 0.0
        %1101 = vmatpush2.msra.mxu0 0.0
        %1102 = vmatprep.subr.mxu0 0.0
        %1103 = vmatpush2.msra.mxu0 0.0
        %1104 = vmatprep.subr.mxu0 0.0
        %1105 = vmatpush2.msra.mxu0 0.0
        %1106 = vmatprep.subr.mxu0 0.0
        %1107 = vmatpush2.msra.mxu0 0.0
        %1108 = vmatprep.subr.mxu0 0.0
        %1109 = vmatpush2.msra.mxu0 0.0
        %1110 = vmatprep.subr.mxu0 0.0
        %1111 = vmatpush2.msra.mxu0 0.0
        %1112 = vmatprep.subr.mxu0 0.0
        %1113 = vmatpush2.msra.mxu0 0.0
        %1114 = vmatprep.subr.mxu0 0.0
        %1115 = vmatpush2.msra.mxu0 0.0
        %1116 = vmatprep.subr.mxu0 0.0
        %1117 = vmatpush2.msra.mxu0 0.0
        %1118 = vmatprep.subr.mxu0 0.0
        %1119 = vmatpush2.msra.mxu0 0.0
        %1120 = vmatprep.subr.mxu0 0.0
        %1121 = vmatpush2.msra.mxu0 0.0
        %1122 = vmatprep.subr.mxu0 0.0
        %1123 = vmatpush2.msra.mxu0 0.0
        %1124 = vmatprep.mubr.f32.mxu0 0.0
        %1125 = vmatmul.mubr.f32.gmra.mxu0 %v954
        %v1126 = vpop.f32.mrf.mxu0
        %v1127 = vadd.f32 %v1058, %v1126
        %v1128 = vpop.f32.mrf.mxu0
        %1129 = vmatprep.mubr.f32.mxu0 0.0
        %1130 = vmatmul.mubr.f32.gmra.mxu0 %v957
        %v1131 = vpop.f32.mrf.mxu0
        %v1132 = vadd.f32 %v1058, %v1131
        %v1133 = vpop.f32.mrf.mxu0
        %1134 = vmatprep.mubr.f32.mxu0 0.0
        %1135 = vmatmul.mubr.f32.gmra.mxu0 %v960
        %v1136 = vpop.f32.mrf.mxu0
        %v1137 = vadd.f32 %v1058, %v1136
        %v1138 = vpop.f32.mrf.mxu0
        %1139 = vdwg.mxu0
        %v1140 = vld [vmem:[%s9] sm:$0xff]
        %v1141 = vld [vmem:[%s9 + $0x8] sm:$0xff]
        %v1142 = vld [vmem:[%s9 + $0x10] sm:$0xff]
        %v1143 = vld [vmem:[%s9 + $0x18] sm:$0xff]
        %v1144 = vld [vmem:[%s9 + $0x20] sm:$0xff]
        %v1145 = vld [vmem:[%s9 + $0x28] sm:$0xff]
        %v1146 = vld [vmem:[%s9 + $0x30] sm:$0xff]
        %v1147 = vld [vmem:[%s9 + $0x38] sm:$0xff]
        %v1148 = vld [vmem:[%s12] sm:$0x1]
        %v1150 = vlaneseq
        %v1151 = vshrl.u32 %v1150, 7
        %v1152 = vsub.s32 0, %v1151
        %v1153 = vrot.slane %v1148, %v1152
        %1155 = vmatprep.subr.mxu0 0.0
        %1156 = vmatpush1.msra.mxu0 0.0
        %1157 = vmatprep.subr.mxu0 0.0
        %1158 = vmatpush1.msra.mxu0 0.0
        %1159 = vmatprep.subr.mxu0 0.0
        %1160 = vmatpush1.msra.mxu0 0.0
        %1161 = vmatprep.subr.mxu0 0.0
        %1162 = vmatpush1.msra.mxu0 0.0
        %1163 = vmatprep.subr.mxu0 0.0
        %1164 = vmatpush1.msra.mxu0 0.0
        %1165 = vmatprep.subr.mxu0 0.0
        %1166 = vmatpush1.msra.mxu0 0.0
        %1167 = vmatprep.subr.mxu0 0.0
        %1168 = vmatpush1.msra.mxu0 0.0
        %1169 = vmatprep.subr.mxu0 0.0
        %1170 = vmatpush1.msra.mxu0 0.0
        %1171 = vmatprep.subr.mxu0 0.0
        %1172 = vmatpush1.msra.mxu0 %v1147
        %1173 = vmatprep.subr.mxu0 0.0
        %1174 = vmatpush1.msra.mxu0 %v1146
        %1175 = vmatprep.subr.mxu0 0.0
        %1176 = vmatpush1.msra.mxu0 %v1145
        %1177 = vmatprep.subr.mxu0 0.0
        %1178 = vmatpush1.msra.mxu0 %v1144
        %1179 = vmatprep.subr.mxu0 0.0
        %1180 = vmatpush1.msra.mxu0 %v1143
        %1181 = vmatprep.subr.mxu0 0.0
        %1182 = vmatpush1.msra.mxu0 %v1142
        %1183 = vmatprep.subr.mxu0 0.0
        %1184 = vmatpush1.msra.mxu0 %v1141
        %1185 = vmatprep.subr.mxu0 0.0
        %1186 = vmatpush1.msra.mxu0 %v1140
        %1187 = vmatprep.subr.mxu0 0.0
        %1188 = vmatpush2.msra.mxu0 0.0
        %1189 = vmatprep.subr.mxu0 0.0
        %1190 = vmatpush2.msra.mxu0 0.0
        %1191 = vmatprep.subr.mxu0 0.0
        %1192 = vmatpush2.msra.mxu0 0.0
        %1193 = vmatprep.subr.mxu0 0.0
        %1194 = vmatpush2.msra.mxu0 0.0
        %1195 = vmatprep.subr.mxu0 0.0
        %1196 = vmatpush2.msra.mxu0 0.0
        %1197 = vmatprep.subr.mxu0 0.0
        %1198 = vmatpush2.msra.mxu0 0.0
        %1199 = vmatprep.subr.mxu0 0.0
        %1200 = vmatpush2.msra.mxu0 0.0
        %1201 = vmatprep.subr.mxu0 0.0
        %1202 = vmatpush2.msra.mxu0 0.0
        %1203 = vmatprep.subr.mxu0 0.0
        %1204 = vmatpush2.msra.mxu0 0.0
        %1205 = vmatprep.subr.mxu0 0.0
        %1206 = vmatpush2.msra.mxu0 0.0
        %1207 = vmatprep.subr.mxu0 0.0
        %1208 = vmatpush2.msra.mxu0 0.0
        %1209 = vmatprep.subr.mxu0 0.0
        %1210 = vmatpush2.msra.mxu0 0.0
        %1211 = vmatprep.subr.mxu0 0.0
        %1212 = vmatpush2.msra.mxu0 0.0
        %1213 = vmatprep.subr.mxu0 0.0
        %1214 = vmatpush2.msra.mxu0 0.0
        %1215 = vmatprep.subr.mxu0 0.0
        %1216 = vmatpush2.msra.mxu0 0.0
        %1217 = vmatprep.subr.mxu0 0.0
        %1218 = vmatpush2.msra.mxu0 0.0
        %1219 = vmatprep.mubr.f32.mxu0 0.0
        %1220 = vmatmul.mubr.f32.gmra.mxu0 %v954
        %v1221 = vpop.f32.mrf.mxu0
        %v1222 = vadd.f32 %v1153, %v1221
        %v1223 = vpop.f32.mrf.mxu0
        %1224 = vmatprep.mubr.f32.mxu0 0.0
        %1225 = vmatmul.mubr.f32.gmra.mxu0 %v957
        %v1226 = vpop.f32.mrf.mxu0
        %v1227 = vadd.f32 %v1153, %v1226
        %v1228 = vpop.f32.mrf.mxu0
        %1229 = vmatprep.mubr.f32.mxu0 0.0
        %1230 = vmatmul.mubr.f32.gmra.mxu0 %v960
        %v1231 = vpop.f32.mrf.mxu0
        %v1232 = vadd.f32 %v1153, %v1231
        %v1233 = vpop.f32.mrf.mxu0
        %1234 = vdwg.mxu0
        %vm1235 = vcmask 130048
        %v1237 = vsel %vm1235, %v1042, 0
        %v1240 = vsel %vm1235, %v1043, 0
        %v1243 = vsel %vm1235, %v1044, 0
        %v1246 = vsel %vm1235, %v1127, 0
        %v1249 = vsel %vm1235, %v1132, 0
        %v1252 = vsel %vm1235, %v1137, 0
        %1254 = vmatprep.subr.mxu0 0.0
        %1255 = vmatpush1.xpose.msra.mxu0 0.0
        %1256 = vmatprep.subr.mxu0 0.0
        %1257 = vmatpush1.xpose.msra.mxu0 0.0
        %1258 = vmatprep.subr.mxu0 0.0
        %1259 = vmatpush1.xpose.msra.mxu0 0.0
        %1260 = vmatprep.subr.mxu0 0.0
        %1261 = vmatpush1.xpose.msra.mxu0 0.0
        %1262 = vmatprep.subr.mxu0 0.0
        %1263 = vmatpush1.xpose.msra.mxu0 0.0
        %1264 = vmatprep.subr.mxu0 0.0
        %1265 = vmatpush1.xpose.msra.mxu0 0.0
        %1266 = vmatprep.subr.mxu0 0.0
        %1267 = vmatpush1.xpose.msra.mxu0 0.0
        %1268 = vmatprep.subr.mxu0 0.0
        %1269 = vmatpush1.xpose.msra.mxu0 0.0
        %1270 = vmatprep.subr.mxu0 0.0
        %1271 = vmatpush1.xpose.msra.mxu0 0.0
        %1272 = vmatprep.subr.mxu0 0.0
        %1273 = vmatpush1.xpose.msra.mxu0 0.0
        %1274 = vmatprep.subr.mxu0 0.0
        %1275 = vmatpush1.xpose.msra.mxu0 0.0
        %1276 = vmatprep.subr.mxu0 0.0
        %1277 = vmatpush1.xpose.msra.mxu0 0.0
        %1278 = vmatprep.subr.mxu0 0.0
        %1279 = vmatpush1.xpose.msra.mxu0 0.0
        %1280 = vmatprep.subr.mxu0 0.0
        %1281 = vmatpush1.xpose.msra.mxu0 %v1252
        %1282 = vmatprep.subr.mxu0 0.0
        %1283 = vmatpush1.xpose.msra.mxu0 %v1249
        %1284 = vmatprep.subr.mxu0 0.0
        %1285 = vmatpush1.xpose.msra.mxu0 %v1246
        %1286 = vmatprep.subr.mxu0 0.0
        %1287 = vmatpush2.xpose.msra.mxu0 0.0
        %1288 = vmatprep.subr.mxu0 0.0
        %1289 = vmatpush2.xpose.msra.mxu0 0.0
        %1290 = vmatprep.subr.mxu0 0.0
        %1291 = vmatpush2.xpose.msra.mxu0 0.0
        %1292 = vmatprep.subr.mxu0 0.0
        %1293 = vmatpush2.xpose.msra.mxu0 0.0
        %1294 = vmatprep.subr.mxu0 0.0
        %1295 = vmatpush2.xpose.msra.mxu0 0.0
        %1296 = vmatprep.subr.mxu0 0.0
        %1297 = vmatpush2.xpose.msra.mxu0 0.0
        %1298 = vmatprep.subr.mxu0 0.0
        %1299 = vmatpush2.xpose.msra.mxu0 0.0
        %1300 = vmatprep.subr.mxu0 0.0
        %1301 = vmatpush2.xpose.msra.mxu0 0.0
        %1302 = vmatprep.subr.mxu0 0.0
        %1303 = vmatpush2.xpose.msra.mxu0 0.0
        %1304 = vmatprep.subr.mxu0 0.0
        %1305 = vmatpush2.xpose.msra.mxu0 0.0
        %1306 = vmatprep.subr.mxu0 0.0
        %1307 = vmatpush2.xpose.msra.mxu0 0.0
        %1308 = vmatprep.subr.mxu0 0.0
        %1309 = vmatpush2.xpose.msra.mxu0 0.0
        %1310 = vmatprep.subr.mxu0 0.0
        %1311 = vmatpush2.xpose.msra.mxu0 0.0
        %1312 = vmatprep.subr.mxu0 0.0
        %1313 = vmatpush2.xpose.msra.mxu0 0.0
        %1314 = vmatprep.subr.mxu0 0.0
        %1315 = vmatpush2.xpose.msra.mxu0 0.0
        %1316 = vmatprep.subr.mxu0 0.0
        %1317 = vmatpush2.xpose.msra.mxu0 0.0
        %1318 = vmatprep.mubr.f32.mxu0 0.0
        %1319 = vmatmul.mubr.f32.gmra.mxu0 %v1237
        %v1320 = vpop.f32.mrf.mxu0
        %v1321 = vadd.f32 0.0, %v1320
        %v1322 = vpop.f32.mrf.mxu0
        %1323 = vmatprep.mubr.f32.mxu0 0.0
        %1324 = vmatmul.mubr.f32.gmra.mxu0 %v1240
        %v1325 = vpop.f32.mrf.mxu0
        %v1326 = vadd.f32 0.0, %v1325
        %v1327 = vpop.f32.mrf.mxu0
        %1328 = vmatprep.mubr.f32.mxu0 0.0
        %1329 = vmatmul.mubr.f32.gmra.mxu0 %v1243
        %v1330 = vpop.f32.mrf.mxu0
        %v1331 = vadd.f32 0.0, %v1330
        %v1332 = vpop.f32.mrf.mxu0
        %1333 = vdwg.mxu0
        %vm1334 = vcmask 138240
        %v1335 = vsel %vm1334, %v1321, -inf
        %1336 = vmax.xlane.f32.xlu0 %v1335
        %v1337 = vpop.xlane.xlu0 %1336
        %v1338 = vsel %vm1334, %v1326, -inf
        %1339 = vmax.xlane.f32.xlu0 %v1338
        %v1340 = vpop.xlane.xlu0 %1339
        %vm1341 = vcmask 131072
        %v1342 = vsel %vm1341, %v1331, -inf
        %1343 = vmax.xlane.f32.xlu0 %v1342
        %v1344 = vpop.xlane.xlu0 %1343
        %v1345 = vsub.f32 %v1321, %v1337
        %v1346 = vsub.f32 %v1326, %v1340
        %v1347 = vsub.f32 %v1331, %v1344
        %v1348 = vmul.f32 %v1345, 1.442695
        %v1349 = vpow.pop %v1348
        %v1350 = vmul.f32 %v1346, 1.442695
        %v1351 = vpow.pop %v1350
        %v1352 = vmul.f32 %v1347, 1.442695
        %v1353 = vpow.pop %v1352
        %v1354 = vsel %vm1334, %v1349, 0.0
        %1355 = vadd.xlane.f32.xlu0 %v1354
        %v1356 = vpop.xlane.xlu0 %1355
        %v1357 = vsel %vm1334, %v1351, 0.0
        %1358 = vadd.xlane.f32.xlu0 %v1357
        %v1359 = vpop.xlane.xlu0 %1358
        %v1360 = vsel %vm1341, %v1353, 0.0
        %1361 = vadd.xlane.f32.xlu0 %v1360
        %v1362 = vpop.xlane.xlu0 %1361
        %v1363 = vrcp.pop %v1356
        %v1364 = vrcp.pop %v1359
        %v1365 = vrcp.pop %v1362
        %v1366 = vmul.f32 %v1349, %v1363
        %v1367 = vmul.f32 %v1351, %v1364
        %v1368 = vmul.f32 %v1353, %v1365
        %v1370 = vsel %vm1334, %v1366, 0
        %v1373 = vsel %vm1334, %v1367, 0
        %v1376 = vsel %vm1334, %v1368, 0
        %v1379 = vsel %vm862, %v1232, 0
        %1381 = vmatprep.subr.mxu0 0.0
        %1382 = vmatpush1.msra.mxu0 0.0
        %1383 = vmatprep.subr.mxu0 0.0
        %1384 = vmatpush1.msra.mxu0 0.0
        %1385 = vmatprep.subr.mxu0 0.0
        %1386 = vmatpush1.msra.mxu0 0.0
        %1387 = vmatprep.subr.mxu0 0.0
        %1388 = vmatpush1.msra.mxu0 0.0
        %1389 = vmatprep.subr.mxu0 0.0
        %1390 = vmatpush1.msra.mxu0 0.0
        %1391 = vmatprep.subr.mxu0 0.0
        %1392 = vmatpush1.msra.mxu0 0.0
        %1393 = vmatprep.subr.mxu0 0.0
        %1394 = vmatpush1.msra.mxu0 0.0
        %1395 = vmatprep.subr.mxu0 0.0
        %1396 = vmatpush1.msra.mxu0 0.0
        %1397 = vmatprep.subr.mxu0 0.0
        %1398 = vmatpush1.msra.mxu0 0.0
        %1399 = vmatprep.subr.mxu0 0.0
        %1400 = vmatpush1.msra.mxu0 0.0
        %1401 = vmatprep.subr.mxu0 0.0
        %1402 = vmatpush1.msra.mxu0 0.0
        %1403 = vmatprep.subr.mxu0 0.0
        %1404 = vmatpush1.msra.mxu0 0.0
        %1405 = vmatprep.subr.mxu0 0.0
        %1406 = vmatpush1.msra.mxu0 0.0
        %1407 = vmatprep.subr.mxu0 0.0
        %1408 = vmatpush1.msra.mxu0 %v1379
        %1409 = vmatprep.subr.mxu0 0.0
        %1410 = vmatpush1.msra.mxu0 %v1227
        %1411 = vmatprep.subr.mxu0 0.0
        %1412 = vmatpush1.msra.mxu0 %v1222
        %1413 = vmatprep.subr.mxu0 0.0
        %1414 = vmatpush2.msra.mxu0 0.0
        %1415 = vmatprep.subr.mxu0 0.0
        %1416 = vmatpush2.msra.mxu0 0.0
        %1417 = vmatprep.subr.mxu0 0.0
        %1418 = vmatpush2.msra.mxu0 0.0
        %1419 = vmatprep.subr.mxu0 0.0
        %1420 = vmatpush2.msra.mxu0 0.0
        %1421 = vmatprep.subr.mxu0 0.0
        %1422 = vmatpush2.msra.mxu0 0.0
        %1423 = vmatprep.subr.mxu0 0.0
        %1424 = vmatpush2.msra.mxu0 0.0
        %1425 = vmatprep.subr.mxu0 0.0
        %1426 = vmatpush2.msra.mxu0 0.0
        %1427 = vmatprep.subr.mxu0 0.0
        %1428 = vmatpush2.msra.mxu0 0.0
        %1429 = vmatprep.subr.mxu0 0.0
        %1430 = vmatpush2.msra.mxu0 0.0
        %1431 = vmatprep.subr.mxu0 0.0
        %1432 = vmatpush2.msra.mxu0 0.0
        %1433 = vmatprep.subr.mxu0 0.0
        %1434 = vmatpush2.msra.mxu0 0.0
        %1435 = vmatprep.subr.mxu0 0.0
        %1436 = vmatpush2.msra.mxu0 0.0
        %1437 = vmatprep.subr.mxu0 0.0
        %1438 = vmatpush2.msra.mxu0 0.0
        %1439 = vmatprep.subr.mxu0 0.0
        %1440 = vmatpush2.msra.mxu0 0.0
        %1441 = vmatprep.subr.mxu0 0.0
        %1442 = vmatpush2.msra.mxu0 0.0
        %1443 = vmatprep.subr.mxu0 0.0
        %1444 = vmatpush2.msra.mxu0 0.0
        %1445 = vmatprep.mubr.f32.mxu0 0.0
        %1446 = vmatmul.mubr.f32.gmra.mxu0 %v1370
        %v1447 = vpop.f32.mrf.mxu0
        %v1448 = vadd.f32 0.0, %v1447
        %v1449 = vpop.f32.mrf.mxu0
        %1450 = vmatprep.mubr.f32.mxu0 0.0
        %1451 = vmatmul.mubr.f32.gmra.mxu0 %v1373
        %v1452 = vpop.f32.mrf.mxu0
        %v1453 = vadd.f32 0.0, %v1452
        %v1454 = vpop.f32.mrf.mxu0
        %1455 = vmatprep.mubr.f32.mxu0 0.0
        %1456 = vmatmul.mubr.f32.gmra.mxu0 %v1376
        %v1457 = vpop.f32.mrf.mxu0
        %v1458 = vadd.f32 0.0, %v1457
        %v1459 = vpop.f32.mrf.mxu0
        %1460 = vdwg.mxu0
        %1461 = vrot.lane.b32.xlu0 %v1042, 112
        %v1462 = vpop.permute.xlu0 %1461
        %1463 = vrot.lane.b32.xlu0 %v1043, 112
        %v1464 = vpop.permute.xlu0 %1463
        %1465 = vrot.lane.b32.xlu0 %v1044, 112
        %v1466 = vpop.permute.xlu0 %1465
        %1467 = vrot.lane.b32.xlu0 %v1127, 112
        %v1468 = vpop.permute.xlu0 %1467
        %1469 = vrot.lane.b32.xlu0 %v1132, 112
        %v1470 = vpop.permute.xlu0 %1469
        %1471 = vrot.lane.b32.xlu0 %v1137, 112
        %v1472 = vpop.permute.xlu0 %1471
        %v1473 = vsel %vm1235, %v1462, 0
        %v1475 = vsel %vm1235, %v1464, 0
        %v1477 = vsel %vm1235, %v1466, 0
        %v1479 = vsel %vm1235, %v1468, 0
        %v1481 = vsel %vm1235, %v1470, 0
        %v1483 = vsel %vm1235, %v1472, 0
        %1485 = vmatprep.subr.mxu0 0.0
        %1486 = vmatpush1.xpose.msra.mxu0 0.0
        %1487 = vmatprep.subr.mxu0 0.0
        %1488 = vmatpush1.xpose.msra.mxu0 0.0
        %1489 = vmatprep.subr.mxu0 0.0
        %1490 = vmatpush1.xpose.msra.mxu0 0.0
        %1491 = vmatprep.subr.mxu0 0.0
        %1492 = vmatpush1.xpose.msra.mxu0 0.0
        %1493 = vmatprep.subr.mxu0 0.0
        %1494 = vmatpush1.xpose.msra.mxu0 0.0
        %1495 = vmatprep.subr.mxu0 0.0
        %1496 = vmatpush1.xpose.msra.mxu0 0.0
        %1497 = vmatprep.subr.mxu0 0.0
        %1498 = vmatpush1.xpose.msra.mxu0 0.0
        %1499 = vmatprep.subr.mxu0 0.0
        %1500 = vmatpush1.xpose.msra.mxu0 0.0
        %1501 = vmatprep.subr.mxu0 0.0
        %1502 = vmatpush1.xpose.msra.mxu0 0.0
        %1503 = vmatprep.subr.mxu0 0.0
        %1504 = vmatpush1.xpose.msra.mxu0 0.0
        %1505 = vmatprep.subr.mxu0 0.0
        %1506 = vmatpush1.xpose.msra.mxu0 0.0
        %1507 = vmatprep.subr.mxu0 0.0
        %1508 = vmatpush1.xpose.msra.mxu0 0.0
        %1509 = vmatprep.subr.mxu0 0.0
        %1510 = vmatpush1.xpose.msra.mxu0 0.0
        %1511 = vmatprep.subr.mxu0 0.0
        %1512 = vmatpush1.xpose.msra.mxu0 %v1483
        %1513 = vmatprep.subr.mxu0 0.0
        %1514 = vmatpush1.xpose.msra.mxu0 %v1481
        %1515 = vmatprep.subr.mxu0 0.0
        %1516 = vmatpush1.xpose.msra.mxu0 %v1479
        %1517 = vmatprep.subr.mxu0 0.0
        %1518 = vmatpush2.xpose.msra.mxu0 0.0
        %1519 = vmatprep.subr.mxu0 0.0
        %1520 = vmatpush2.xpose.msra.mxu0 0.0
        %1521 = vmatprep.subr.mxu0 0.0
        %1522 = vmatpush2.xpose.msra.mxu0 0.0
        %1523 = vmatprep.subr.mxu0 0.0
        %1524 = vmatpush2.xpose.msra.mxu0 0.0
        %1525 = vmatprep.subr.mxu0 0.0
        %1526 = vmatpush2.xpose.msra.mxu0 0.0
        %1527 = vmatprep.subr.mxu0 0.0
        %1528 = vmatpush2.xpose.msra.mxu0 0.0
        %1529 = vmatprep.subr.mxu0 0.0
        %1530 = vmatpush2.xpose.msra.mxu0 0.0
        %1531 = vmatprep.subr.mxu0 0.0
        %1532 = vmatpush2.xpose.msra.mxu0 0.0
        %1533 = vmatprep.subr.mxu0 0.0
        %1534 = vmatpush2.xpose.msra.mxu0 0.0
        %1535 = vmatprep.subr.mxu0 0.0
        %1536 = vmatpush2.xpose.msra.mxu0 0.0
        %1537 = vmatprep.subr.mxu0 0.0
        %1538 = vmatpush2.xpose.msra.mxu0 0.0
        %1539 = vmatprep.subr.mxu0 0.0
        %1540 = vmatpush2.xpose.msra.mxu0 0.0
        %1541 = vmatprep.subr.mxu0 0.0
        %1542 = vmatpush2.xpose.msra.mxu0 0.0
        %1543 = vmatprep.subr.mxu0 0.0
        %1544 = vmatpush2.xpose.msra.mxu0 0.0
        %1545 = vmatprep.subr.mxu0 0.0
        %1546 = vmatpush2.xpose.msra.mxu0 0.0
        %1547 = vmatprep.subr.mxu0 0.0
        %1548 = vmatpush2.xpose.msra.mxu0 0.0
        %1549 = vmatprep.mubr.f32.mxu0 0.0
        %1550 = vmatmul.mubr.f32.gmra.mxu0 %v1473
        %v1551 = vpop.f32.mrf.mxu0
        %v1552 = vadd.f32 0.0, %v1551
        %v1553 = vpop.f32.mrf.mxu0
        %1554 = vmatprep.mubr.f32.mxu0 0.0
        %1555 = vmatmul.mubr.f32.gmra.mxu0 %v1475
        %v1556 = vpop.f32.mrf.mxu0
        %v1557 = vadd.f32 0.0, %v1556
        %v1558 = vpop.f32.mrf.mxu0
        %1559 = vmatprep.mubr.f32.mxu0 0.0
        %1560 = vmatmul.mubr.f32.gmra.mxu0 %v1477
        %v1561 = vpop.f32.mrf.mxu0
        %v1562 = vadd.f32 0.0, %v1561
        %v1563 = vpop.f32.mrf.mxu0
        %1564 = vdwg.mxu0
        %v1565 = vsel %vm1334, %v1552, -inf
        %1566 = vmax.xlane.f32.xlu0 %v1565
        %v1567 = vpop.xlane.xlu0 %1566
        %v1568 = vsel %vm1334, %v1557, -inf
        %1569 = vmax.xlane.f32.xlu0 %v1568
        %v1570 = vpop.xlane.xlu0 %1569
        %v1571 = vsel %vm1341, %v1562, -inf
        %1572 = vmax.xlane.f32.xlu0 %v1571
        %v1573 = vpop.xlane.xlu0 %1572
        %v1574 = vsub.f32 %v1552, %v1567
        %v1575 = vsub.f32 %v1557, %v1570
        %v1576 = vsub.f32 %v1562, %v1573
        %v1577 = vmul.f32 %v1574, 1.442695
        %v1578 = vpow.pop %v1577
        %v1579 = vmul.f32 %v1575, 1.442695
        %v1580 = vpow.pop %v1579
        %v1581 = vmul.f32 %v1576, 1.442695
        %v1582 = vpow.pop %v1581
        %v1583 = vsel %vm1334, %v1578, 0.0
        %1584 = vadd.xlane.f32.xlu0 %v1583
        %v1585 = vpop.xlane.xlu0 %1584
        %v1586 = vsel %vm1334, %v1580, 0.0
        %1587 = vadd.xlane.f32.xlu0 %v1586
        %v1588 = vpop.xlane.xlu0 %1587
        %v1589 = vsel %vm1341, %v1582, 0.0
        %1590 = vadd.xlane.f32.xlu0 %v1589
        %v1591 = vpop.xlane.xlu0 %1590
        %v1592 = vrcp.pop %v1585
        %v1593 = vrcp.pop %v1588
        %v1594 = vrcp.pop %v1591
        %v1595 = vmul.f32 %v1578, %v1592
        %v1596 = vmul.f32 %v1580, %v1593
        %v1597 = vmul.f32 %v1582, %v1594
        %1600 = vrot.lane.b32.xlu0 %v1222, 112
        %v1601 = vpop.permute.xlu0 %1600
        %1602 = vrot.lane.b32.xlu0 %v1227, 112
        %v1603 = vpop.permute.xlu0 %1602
        %1604 = vrot.lane.b32.xlu0 %v1232, 112
        %v1605 = vpop.permute.xlu0 %1604
        %v1609 = vsel %vm1334, %v1595, 0
        %v1612 = vsel %vm1334, %v1596, 0
        %v1615 = vsel %vm1334, %v1597, 0
        %v1617 = vsel %vm862, %v1605, 0
        %1619 = vmatprep.subr.mxu0 0.0
        %1620 = vmatpush1.msra.mxu0 0.0
        %1621 = vmatprep.subr.mxu0 0.0
        %1622 = vmatpush1.msra.mxu0 0.0
        %1623 = vmatprep.subr.mxu0 0.0
        %1624 = vmatpush1.msra.mxu0 0.0
        %1625 = vmatprep.subr.mxu0 0.0
        %1626 = vmatpush1.msra.mxu0 0.0
        %1627 = vmatprep.subr.mxu0 0.0
        %1628 = vmatpush1.msra.mxu0 0.0
        %1629 = vmatprep.subr.mxu0 0.0
        %1630 = vmatpush1.msra.mxu0 0.0
        %1631 = vmatprep.subr.mxu0 0.0
        %1632 = vmatpush1.msra.mxu0 0.0
        %1633 = vmatprep.subr.mxu0 0.0
        %1634 = vmatpush1.msra.mxu0 0.0
        %1635 = vmatprep.subr.mxu0 0.0
        %1636 = vmatpush1.msra.mxu0 0.0
        %1637 = vmatprep.subr.mxu0 0.0
        %1638 = vmatpush1.msra.mxu0 0.0
        %1639 = vmatprep.subr.mxu0 0.0
        %1640 = vmatpush1.msra.mxu0 0.0
        %1641 = vmatprep.subr.mxu0 0.0
        %1642 = vmatpush1.msra.mxu0 0.0
        %1643 = vmatprep.subr.mxu0 0.0
        %1644 = vmatpush1.msra.mxu0 0.0
        %1645 = vmatprep.subr.mxu0 0.0
        %1646 = vmatpush1.msra.mxu0 %v1617
        %1647 = vmatprep.subr.mxu0 0.0
        %1648 = vmatpush1.msra.mxu0 %v1603
        %1649 = vmatprep.subr.mxu0 0.0
        %1650 = vmatpush1.msra.mxu0 %v1601
        %1651 = vmatprep.subr.mxu0 0.0
        %1652 = vmatpush2.msra.mxu0 0.0
        %1653 = vmatprep.subr.mxu0 0.0
        %1654 = vmatpush2.msra.mxu0 0.0
        %1655 = vmatprep.subr.mxu0 0.0
        %1656 = vmatpush2.msra.mxu0 0.0
        %1657 = vmatprep.subr.mxu0 0.0
        %1658 = vmatpush2.msra.mxu0 0.0
        %1659 = vmatprep.subr.mxu0 0.0
        %1660 = vmatpush2.msra.mxu0 0.0
        %1661 = vmatprep.subr.mxu0 0.0
        %1662 = vmatpush2.msra.mxu0 0.0
        %1663 = vmatprep.subr.mxu0 0.0
        %1664 = vmatpush2.msra.mxu0 0.0
        %1665 = vmatprep.subr.mxu0 0.0
        %1666 = vmatpush2.msra.mxu0 0.0
        %1667 = vmatprep.subr.mxu0 0.0
        %1668 = vmatpush2.msra.mxu0 0.0
        %1669 = vmatprep.subr.mxu0 0.0
        %1670 = vmatpush2.msra.mxu0 0.0
        %1671 = vmatprep.subr.mxu0 0.0
        %1672 = vmatpush2.msra.mxu0 0.0
        %1673 = vmatprep.subr.mxu0 0.0
        %1674 = vmatpush2.msra.mxu0 0.0
        %1675 = vmatprep.subr.mxu0 0.0
        %1676 = vmatpush2.msra.mxu0 0.0
        %1677 = vmatprep.subr.mxu0 0.0
        %1678 = vmatpush2.msra.mxu0 0.0
        %1679 = vmatprep.subr.mxu0 0.0
        %1680 = vmatpush2.msra.mxu0 0.0
        %1681 = vmatprep.subr.mxu0 0.0
        %1682 = vmatpush2.msra.mxu0 0.0
        %1683 = vmatprep.mubr.f32.mxu0 0.0
        %1684 = vmatmul.mubr.f32.gmra.mxu0 %v1609
        %v1685 = vpop.f32.mrf.mxu0
        %v1686 = vadd.f32 0.0, %v1685
        %v1687 = vpop.f32.mrf.mxu0
        %1688 = vmatprep.mubr.f32.mxu0 0.0
        %1689 = vmatmul.mubr.f32.gmra.mxu0 %v1612
        %v1690 = vpop.f32.mrf.mxu0
        %v1691 = vadd.f32 0.0, %v1690
        %v1692 = vpop.f32.mrf.mxu0
        %1693 = vmatprep.mubr.f32.mxu0 0.0
        %1694 = vmatmul.mubr.f32.gmra.mxu0 %v1615
        %v1695 = vpop.f32.mrf.mxu0
        %v1696 = vadd.f32 0.0, %v1695
        %v1697 = vpop.f32.mrf.mxu0
        %1698 = vdwg.mxu0
        %1699 = vrot.lane.b32.xlu0 %v1042, 96
        %v1700 = vpop.permute.xlu0 %1699
        %1701 = vrot.lane.b32.xlu0 %v1043, 96
        %v1702 = vpop.permute.xlu0 %1701
        %1703 = vrot.lane.b32.xlu0 %v1044, 96
        %v1704 = vpop.permute.xlu0 %1703
        %1705 = vrot.lane.b32.xlu0 %v1127, 96
        %v1706 = vpop.permute.xlu0 %1705
        %1707 = vrot.lane.b32.xlu0 %v1132, 96
        %v1708 = vpop.permute.xlu0 %1707
        %1709 = vrot.lane.b32.xlu0 %v1137, 96
        %v1710 = vpop.permute.xlu0 %1709
        %v1711 = vsel %vm1235, %v1700, 0
        %v1713 = vsel %vm1235, %v1702, 0
        %v1715 = vsel %vm1235, %v1704, 0
        %v1717 = vsel %vm1235, %v1706, 0
        %v1719 = vsel %vm1235, %v1708, 0
        %v1721 = vsel %vm1235, %v1710, 0
        %1723 = vmatprep.subr.mxu0 0.0
        %1724 = vmatpush1.xpose.msra.mxu0 0.0
        %1725 = vmatprep.subr.mxu0 0.0
        %1726 = vmatpush1.xpose.msra.mxu0 0.0
        %1727 = vmatprep.subr.mxu0 0.0
        %1728 = vmatpush1.xpose.msra.mxu0 0.0
        %1729 = vmatprep.subr.mxu0 0.0
        %1730 = vmatpush1.xpose.msra.mxu0 0.0
        %1731 = vmatprep.subr.mxu0 0.0
        %1732 = vmatpush1.xpose.msra.mxu0 0.0
        %1733 = vmatprep.subr.mxu0 0.0
        %1734 = vmatpush1.xpose.msra.mxu0 0.0
        %1735 = vmatprep.subr.mxu0 0.0
        %1736 = vmatpush1.xpose.msra.mxu0 0.0
        %1737 = vmatprep.subr.mxu0 0.0
        %1738 = vmatpush1.xpose.msra.mxu0 0.0
        %1739 = vmatprep.subr.mxu0 0.0
        %1740 = vmatpush1.xpose.msra.mxu0 0.0
        %1741 = vmatprep.subr.mxu0 0.0
        %1742 = vmatpush1.xpose.msra.mxu0 0.0
        %1743 = vmatprep.subr.mxu0 0.0
        %1744 = vmatpush1.xpose.msra.mxu0 0.0
        %1745 = vmatprep.subr.mxu0 0.0
        %1746 = vmatpush1.xpose.msra.mxu0 0.0
        %1747 = vmatprep.subr.mxu0 0.0
        %1748 = vmatpush1.xpose.msra.mxu0 0.0
        %1749 = vmatprep.subr.mxu0 0.0
        %1750 = vmatpush1.xpose.msra.mxu0 %v1721
        %1751 = vmatprep.subr.mxu0 0.0
        %1752 = vmatpush1.xpose.msra.mxu0 %v1719
        %1753 = vmatprep.subr.mxu0 0.0
        %1754 = vmatpush1.xpose.msra.mxu0 %v1717
        %1755 = vmatprep.subr.mxu0 0.0
        %1756 = vmatpush2.xpose.msra.mxu0 0.0
        %1757 = vmatprep.subr.mxu0 0.0
        %1758 = vmatpush2.xpose.msra.mxu0 0.0
        %1759 = vmatprep.subr.mxu0 0.0
        %1760 = vmatpush2.xpose.msra.mxu0 0.0
        %1761 = vmatprep.subr.mxu0 0.0
        %1762 = vmatpush2.xpose.msra.mxu0 0.0
        %1763 = vmatprep.subr.mxu0 0.0
        %1764 = vmatpush2.xpose.msra.mxu0 0.0
        %1765 = vmatprep.subr.mxu0 0.0
        %1766 = vmatpush2.xpose.msra.mxu0 0.0
        %1767 = vmatprep.subr.mxu0 0.0
        %1768 = vmatpush2.xpose.msra.mxu0 0.0
        %1769 = vmatprep.subr.mxu0 0.0
        %1770 = vmatpush2.xpose.msra.mxu0 0.0
        %1771 = vmatprep.subr.mxu0 0.0
        %1772 = vmatpush2.xpose.msra.mxu0 0.0
        %1773 = vmatprep.subr.mxu0 0.0
        %1774 = vmatpush2.xpose.msra.mxu0 0.0
        %1775 = vmatprep.subr.mxu0 0.0
        %1776 = vmatpush2.xpose.msra.mxu0 0.0
        %1777 = vmatprep.subr.mxu0 0.0
        %1778 = vmatpush2.xpose.msra.mxu0 0.0
        %1779 = vmatprep.subr.mxu0 0.0
        %1780 = vmatpush2.xpose.msra.mxu0 0.0
        %1781 = vmatprep.subr.mxu0 0.0
        %1782 = vmatpush2.xpose.msra.mxu0 0.0
        %1783 = vmatprep.subr.mxu0 0.0
        %1784 = vmatpush2.xpose.msra.mxu0 0.0
        %1785 = vmatprep.subr.mxu0 0.0
        %1786 = vmatpush2.xpose.msra.mxu0 0.0
        %1787 = vmatprep.mubr.f32.mxu0 0.0
        %1788 = vmatmul.mubr.f32.gmra.mxu0 %v1711
        %v1789 = vpop.f32.mrf.mxu0
        %v1790 = vadd.f32 0.0, %v1789
        %v1791 = vpop.f32.mrf.mxu0
        %1792 = vmatprep.mubr.f32.mxu0 0.0
        %1793 = vmatmul.mubr.f32.gmra.mxu0 %v1713
        %v1794 = vpop.f32.mrf.mxu0
        %v1795 = vadd.f32 0.0, %v1794
        %v1796 = vpop.f32.mrf.mxu0
        %1797 = vmatprep.mubr.f32.mxu0 0.0
        %1798 = vmatmul.mubr.f32.gmra.mxu0 %v1715
        %v1799 = vpop.f32.mrf.mxu0
        %v1800 = vadd.f32 0.0, %v1799
        %v1801 = vpop.f32.mrf.mxu0
        %1802 = vdwg.mxu0
        %v1803 = vsel %vm1334, %v1790, -inf
        %1804 = vmax.xlane.f32.xlu0 %v1803
        %v1805 = vpop.xlane.xlu0 %1804
        %v1806 = vsel %vm1334, %v1795, -inf
        %1807 = vmax.xlane.f32.xlu0 %v1806
        %v1808 = vpop.xlane.xlu0 %1807
        %v1809 = vsel %vm1341, %v1800, -inf
        %1810 = vmax.xlane.f32.xlu0 %v1809
        %v1811 = vpop.xlane.xlu0 %1810
        %v1812 = vsub.f32 %v1790, %v1805
        %v1813 = vsub.f32 %v1795, %v1808
        %v1814 = vsub.f32 %v1800, %v1811
        %v1815 = vmul.f32 %v1812, 1.442695
        %v1816 = vpow.pop %v1815
        %v1817 = vmul.f32 %v1813, 1.442695
        %v1818 = vpow.pop %v1817
        %v1819 = vmul.f32 %v1814, 1.442695
        %v1820 = vpow.pop %v1819
        %v1821 = vsel %vm1334, %v1816, 0.0
        %1822 = vadd.xlane.f32.xlu0 %v1821
        %v1823 = vpop.xlane.xlu0 %1822
        %v1824 = vsel %vm1334, %v1818, 0.0
        %1825 = vadd.xlane.f32.xlu0 %v1824
        %v1826 = vpop.xlane.xlu0 %1825
        %v1827 = vsel %vm1341, %v1820, 0.0
        %1828 = vadd.xlane.f32.xlu0 %v1827
        %v1829 = vpop.xlane.xlu0 %1828
        %v1830 = vrcp.pop %v1823
        %v1831 = vrcp.pop %v1826
        %v1832 = vrcp.pop %v1829
        %v1833 = vmul.f32 %v1816, %v1830
        %v1834 = vmul.f32 %v1818, %v1831
        %v1835 = vmul.f32 %v1820, %v1832
        %1836 = vrot.lane.b32.xlu0 %v1222, 96
        %v1837 = vpop.permute.xlu0 %1836
        %1838 = vrot.lane.b32.xlu0 %v1227, 96
        %v1839 = vpop.permute.xlu0 %1838
        %1840 = vrot.lane.b32.xlu0 %v1232, 96
        %v1841 = vpop.permute.xlu0 %1840
        %v1845 = vsel %vm1334, %v1833, 0
        %v1848 = vsel %vm1334, %v1834, 0
        %v1851 = vsel %vm1334, %v1835, 0
        %v1853 = vsel %vm862, %v1841, 0
        %1855 = vmatprep.subr.mxu0 0.0
        %1856 = vmatpush1.msra.mxu0 0.0
        %1857 = vmatprep.subr.mxu0 0.0
        %1858 = vmatpush1.msra.mxu0 0.0
        %1859 = vmatprep.subr.mxu0 0.0
        %1860 = vmatpush1.msra.mxu0 0.0
        %1861 = vmatprep.subr.mxu0 0.0
        %1862 = vmatpush1.msra.mxu0 0.0
        %1863 = vmatprep.subr.mxu0 0.0
        %1864 = vmatpush1.msra.mxu0 0.0
        %1865 = vmatprep.subr.mxu0 0.0
        %1866 = vmatpush1.msra.mxu0 0.0
        %1867 = vmatprep.subr.mxu0 0.0
        %1868 = vmatpush1.msra.mxu0 0.0
        %1869 = vmatprep.subr.mxu0 0.0
        %1870 = vmatpush1.msra.mxu0 0.0
        %1871 = vmatprep.subr.mxu0 0.0
        %1872 = vmatpush1.msra.mxu0 0.0
        %1873 = vmatprep.subr.mxu0 0.0
        %1874 = vmatpush1.msra.mxu0 0.0
        %1875 = vmatprep.subr.mxu0 0.0
        %1876 = vmatpush1.msra.mxu0 0.0
        %1877 = vmatprep.subr.mxu0 0.0
        %1878 = vmatpush1.msra.mxu0 0.0
        %1879 = vmatprep.subr.mxu0 0.0
        %1880 = vmatpush1.msra.mxu0 0.0
        %1881 = vmatprep.subr.mxu0 0.0
        %1882 = vmatpush1.msra.mxu0 %v1853
        %1883 = vmatprep.subr.mxu0 0.0
        %1884 = vmatpush1.msra.mxu0 %v1839
        %1885 = vmatprep.subr.mxu0 0.0
        %1886 = vmatpush1.msra.mxu0 %v1837
        %1887 = vmatprep.subr.mxu0 0.0
        %1888 = vmatpush2.msra.mxu0 0.0
        %1889 = vmatprep.subr.mxu0 0.0
        %1890 = vmatpush2.msra.mxu0 0.0
        %1891 = vmatprep.subr.mxu0 0.0
        %1892 = vmatpush2.msra.mxu0 0.0
        %1893 = vmatprep.subr.mxu0 0.0
        %1894 = vmatpush2.msra.mxu0 0.0
        %1895 = vmatprep.subr.mxu0 0.0
        %1896 = vmatpush2.msra.mxu0 0.0
        %1897 = vmatprep.subr.mxu0 0.0
        %1898 = vmatpush2.msra.mxu0 0.0
        %1899 = vmatprep.subr.mxu0 0.0
        %1900 = vmatpush2.msra.mxu0 0.0
        %1901 = vmatprep.subr.mxu0 0.0
        %1902 = vmatpush2.msra.mxu0 0.0
        %1903 = vmatprep.subr.mxu0 0.0
        %1904 = vmatpush2.msra.mxu0 0.0
        %1905 = vmatprep.subr.mxu0 0.0
        %1906 = vmatpush2.msra.mxu0 0.0
        %1907 = vmatprep.subr.mxu0 0.0
        %1908 = vmatpush2.msra.mxu0 0.0
        %1909 = vmatprep.subr.mxu0 0.0
        %1910 = vmatpush2.msra.mxu0 0.0
        %1911 = vmatprep.subr.mxu0 0.0
        %1912 = vmatpush2.msra.mxu0 0.0
        %1913 = vmatprep.subr.mxu0 0.0
        %1914 = vmatpush2.msra.mxu0 0.0
        %1915 = vmatprep.subr.mxu0 0.0
        %1916 = vmatpush2.msra.mxu0 0.0
        %1917 = vmatprep.subr.mxu0 0.0
        %1918 = vmatpush2.msra.mxu0 0.0
        %1919 = vmatprep.mubr.f32.mxu0 0.0
        %1920 = vmatmul.mubr.f32.gmra.mxu0 %v1845
        %v1921 = vpop.f32.mrf.mxu0
        %v1922 = vadd.f32 0.0, %v1921
        %v1923 = vpop.f32.mrf.mxu0
        %1924 = vmatprep.mubr.f32.mxu0 0.0
        %1925 = vmatmul.mubr.f32.gmra.mxu0 %v1848
        %v1926 = vpop.f32.mrf.mxu0
        %v1927 = vadd.f32 0.0, %v1926
        %v1928 = vpop.f32.mrf.mxu0
        %1929 = vmatprep.mubr.f32.mxu0 0.0
        %1930 = vmatmul.mubr.f32.gmra.mxu0 %v1851
        %v1931 = vpop.f32.mrf.mxu0
        %v1932 = vadd.f32 0.0, %v1931
        %v1933 = vpop.f32.mrf.mxu0
        %1934 = vdwg.mxu0
        %1935 = vrot.lane.b32.xlu0 %v1042, 80
        %v1936 = vpop.permute.xlu0 %1935
        %1937 = vrot.lane.b32.xlu0 %v1043, 80
        %v1938 = vpop.permute.xlu0 %1937
        %1939 = vrot.lane.b32.xlu0 %v1044, 80
        %v1940 = vpop.permute.xlu0 %1939
        %1941 = vrot.lane.b32.xlu0 %v1127, 80
        %v1942 = vpop.permute.xlu0 %1941
        %1943 = vrot.lane.b32.xlu0 %v1132, 80
        %v1944 = vpop.permute.xlu0 %1943
        %1945 = vrot.lane.b32.xlu0 %v1137, 80
        %v1946 = vpop.permute.xlu0 %1945
        %v1947 = vsel %vm1235, %v1936, 0
        %v1949 = vsel %vm1235, %v1938, 0
        %v1951 = vsel %vm1235, %v1940, 0
        %v1953 = vsel %vm1235, %v1942, 0
        %v1955 = vsel %vm1235, %v1944, 0
        %v1957 = vsel %vm1235, %v1946, 0
        %1959 = vmatprep.subr.mxu0 0.0
        %1960 = vmatpush1.xpose.msra.mxu0 0.0
        %1961 = vmatprep.subr.mxu0 0.0
        %1962 = vmatpush1.xpose.msra.mxu0 0.0
        %1963 = vmatprep.subr.mxu0 0.0
        %1964 = vmatpush1.xpose.msra.mxu0 0.0
        %1965 = vmatprep.subr.mxu0 0.0
        %1966 = vmatpush1.xpose.msra.mxu0 0.0
        %1967 = vmatprep.subr.mxu0 0.0
        %1968 = vmatpush1.xpose.msra.mxu0 0.0
        %1969 = vmatprep.subr.mxu0 0.0
        %1970 = vmatpush1.xpose.msra.mxu0 0.0
        %1971 = vmatprep.subr.mxu0 0.0
        %1972 = vmatpush1.xpose.msra.mxu0 0.0
        %1973 = vmatprep.subr.mxu0 0.0
        %1974 = vmatpush1.xpose.msra.mxu0 0.0
        %1975 = vmatprep.subr.mxu0 0.0
        %1976 = vmatpush1.xpose.msra.mxu0 0.0
        %1977 = vmatprep.subr.mxu0 0.0
        %1978 = vmatpush1.xpose.msra.mxu0 0.0
        %1979 = vmatprep.subr.mxu0 0.0
        %1980 = vmatpush1.xpose.msra.mxu0 0.0
        %1981 = vmatprep.subr.mxu0 0.0
        %1982 = vmatpush1.xpose.msra.mxu0 0.0
        %1983 = vmatprep.subr.mxu0 0.0
        %1984 = vmatpush1.xpose.msra.mxu0 0.0
        %1985 = vmatprep.subr.mxu0 0.0
        %1986 = vmatpush1.xpose.msra.mxu0 %v1957
        %1987 = vmatprep.subr.mxu0 0.0
        %1988 = vmatpush1.xpose.msra.mxu0 %v1955
        %1989 = vmatprep.subr.mxu0 0.0
        %1990 = vmatpush1.xpose.msra.mxu0 %v1953
        %1991 = vmatprep.subr.mxu0 0.0
        %1992 = vmatpush2.xpose.msra.mxu0 0.0
        %1993 = vmatprep.subr.mxu0 0.0
        %1994 = vmatpush2.xpose.msra.mxu0 0.0
        %1995 = vmatprep.subr.mxu0 0.0
        %1996 = vmatpush2.xpose.msra.mxu0 0.0
        %1997 = vmatprep.subr.mxu0 0.0
        %1998 = vmatpush2.xpose.msra.mxu0 0.0
        %1999 = vmatprep.subr.mxu0 0.0
        %2000 = vmatpush2.xpose.msra.mxu0 0.0
        %2001 = vmatprep.subr.mxu0 0.0
        %2002 = vmatpush2.xpose.msra.mxu0 0.0
        %2003 = vmatprep.subr.mxu0 0.0
        %2004 = vmatpush2.xpose.msra.mxu0 0.0
        %2005 = vmatprep.subr.mxu0 0.0
        %2006 = vmatpush2.xpose.msra.mxu0 0.0
        %2007 = vmatprep.subr.mxu0 0.0
        %2008 = vmatpush2.xpose.msra.mxu0 0.0
        %2009 = vmatprep.subr.mxu0 0.0
        %2010 = vmatpush2.xpose.msra.mxu0 0.0
        %2011 = vmatprep.subr.mxu0 0.0
        %2012 = vmatpush2.xpose.msra.mxu0 0.0
        %2013 = vmatprep.subr.mxu0 0.0
        %2014 = vmatpush2.xpose.msra.mxu0 0.0
        %2015 = vmatprep.subr.mxu0 0.0
        %2016 = vmatpush2.xpose.msra.mxu0 0.0
        %2017 = vmatprep.subr.mxu0 0.0
        %2018 = vmatpush2.xpose.msra.mxu0 0.0
        %2019 = vmatprep.subr.mxu0 0.0
        %2020 = vmatpush2.xpose.msra.mxu0 0.0
        %2021 = vmatprep.subr.mxu0 0.0
        %2022 = vmatpush2.xpose.msra.mxu0 0.0
        %2023 = vmatprep.mubr.f32.mxu0 0.0
        %2024 = vmatmul.mubr.f32.gmra.mxu0 %v1947
        %v2025 = vpop.f32.mrf.mxu0
        %v2026 = vadd.f32 0.0, %v2025
        %v2027 = vpop.f32.mrf.mxu0
        %2028 = vmatprep.mubr.f32.mxu0 0.0
        %2029 = vmatmul.mubr.f32.gmra.mxu0 %v1949
        %v2030 = vpop.f32.mrf.mxu0
        %v2031 = vadd.f32 0.0, %v2030
        %v2032 = vpop.f32.mrf.mxu0
        %2033 = vmatprep.mubr.f32.mxu0 0.0
        %2034 = vmatmul.mubr.f32.gmra.mxu0 %v1951
        %v2035 = vpop.f32.mrf.mxu0
        %v2036 = vadd.f32 0.0, %v2035
        %v2037 = vpop.f32.mrf.mxu0
        %2038 = vdwg.mxu0
        %v2039 = vsel %vm1334, %v2026, -inf
        %2040 = vmax.xlane.f32.xlu0 %v2039
        %v2041 = vpop.xlane.xlu0 %2040
        %v2042 = vsel %vm1334, %v2031, -inf
        %2043 = vmax.xlane.f32.xlu0 %v2042
        %v2044 = vpop.xlane.xlu0 %2043
        %v2045 = vsel %vm1341, %v2036, -inf
        %2046 = vmax.xlane.f32.xlu0 %v2045
        %v2047 = vpop.xlane.xlu0 %2046
        %v2048 = vsub.f32 %v2026, %v2041
        %v2049 = vsub.f32 %v2031, %v2044
        %v2050 = vsub.f32 %v2036, %v2047
        %v2051 = vmul.f32 %v2048, 1.442695
        %v2052 = vpow.pop %v2051
        %v2053 = vmul.f32 %v2049, 1.442695
        %v2054 = vpow.pop %v2053
        %v2055 = vmul.f32 %v2050, 1.442695
        %v2056 = vpow.pop %v2055
        %v2057 = vsel %vm1334, %v2052, 0.0
        %2058 = vadd.xlane.f32.xlu0 %v2057
        %v2059 = vpop.xlane.xlu0 %2058
        %v2060 = vsel %vm1334, %v2054, 0.0
        %2061 = vadd.xlane.f32.xlu0 %v2060
        %v2062 = vpop.xlane.xlu0 %2061
        %v2063 = vsel %vm1341, %v2056, 0.0
        %2064 = vadd.xlane.f32.xlu0 %v2063
        %v2065 = vpop.xlane.xlu0 %2064
        %v2066 = vrcp.pop %v2059
        %v2067 = vrcp.pop %v2062
        %v2068 = vrcp.pop %v2065
        %v2069 = vmul.f32 %v2052, %v2066
        %v2070 = vmul.f32 %v2054, %v2067
        %v2071 = vmul.f32 %v2056, %v2068
        %2072 = vrot.lane.b32.xlu0 %v1222, 80
        %v2073 = vpop.permute.xlu0 %2072
        %2074 = vrot.lane.b32.xlu0 %v1227, 80
        %v2075 = vpop.permute.xlu0 %2074
        %2076 = vrot.lane.b32.xlu0 %v1232, 80
        %v2077 = vpop.permute.xlu0 %2076
        %v2081 = vsel %vm1334, %v2069, 0
        %v2084 = vsel %vm1334, %v2070, 0
        %v2087 = vsel %vm1334, %v2071, 0
        %v2089 = vsel %vm862, %v2077, 0
        %2091 = vmatprep.subr.mxu0 0.0
        %2092 = vmatpush1.msra.mxu0 0.0
        %2093 = vmatprep.subr.mxu0 0.0
        %2094 = vmatpush1.msra.mxu0 0.0
        %2095 = vmatprep.subr.mxu0 0.0
        %2096 = vmatpush1.msra.mxu0 0.0
        %2097 = vmatprep.subr.mxu0 0.0
        %2098 = vmatpush1.msra.mxu0 0.0
        %2099 = vmatprep.subr.mxu0 0.0
        %2100 = vmatpush1.msra.mxu0 0.0
        %2101 = vmatprep.subr.mxu0 0.0
        %2102 = vmatpush1.msra.mxu0 0.0
        %2103 = vmatprep.subr.mxu0 0.0
        %2104 = vmatpush1.msra.mxu0 0.0
        %2105 = vmatprep.subr.mxu0 0.0
        %2106 = vmatpush1.msra.mxu0 0.0
        %2107 = vmatprep.subr.mxu0 0.0
        %2108 = vmatpush1.msra.mxu0 0.0
        %2109 = vmatprep.subr.mxu0 0.0
        %2110 = vmatpush1.msra.mxu0 0.0
        %2111 = vmatprep.subr.mxu0 0.0
        %2112 = vmatpush1.msra.mxu0 0.0
        %2113 = vmatprep.subr.mxu0 0.0
        %2114 = vmatpush1.msra.mxu0 0.0
        %2115 = vmatprep.subr.mxu0 0.0
        %2116 = vmatpush1.msra.mxu0 0.0
        %2117 = vmatprep.subr.mxu0 0.0
        %2118 = vmatpush1.msra.mxu0 %v2089
        %2119 = vmatprep.subr.mxu0 0.0
        %2120 = vmatpush1.msra.mxu0 %v2075
        %2121 = vmatprep.subr.mxu0 0.0
        %2122 = vmatpush1.msra.mxu0 %v2073
        %2123 = vmatprep.subr.mxu0 0.0
        %2124 = vmatpush2.msra.mxu0 0.0
        %2125 = vmatprep.subr.mxu0 0.0
        %2126 = vmatpush2.msra.mxu0 0.0
        %2127 = vmatprep.subr.mxu0 0.0
        %2128 = vmatpush2.msra.mxu0 0.0
        %2129 = vmatprep.subr.mxu0 0.0
        %2130 = vmatpush2.msra.mxu0 0.0
        %2131 = vmatprep.subr.mxu0 0.0
        %2132 = vmatpush2.msra.mxu0 0.0
        %2133 = vmatprep.subr.mxu0 0.0
        %2134 = vmatpush2.msra.mxu0 0.0
        %2135 = vmatprep.subr.mxu0 0.0
        %2136 = vmatpush2.msra.mxu0 0.0
        %2137 = vmatprep.subr.mxu0 0.0
        %2138 = vmatpush2.msra.mxu0 0.0
        %2139 = vmatprep.subr.mxu0 0.0
        %2140 = vmatpush2.msra.mxu0 0.0
        %2141 = vmatprep.subr.mxu0 0.0
        %2142 = vmatpush2.msra.mxu0 0.0
        %2143 = vmatprep.subr.mxu0 0.0
        %2144 = vmatpush2.msra.mxu0 0.0
        %2145 = vmatprep.subr.mxu0 0.0
        %2146 = vmatpush2.msra.mxu0 0.0
        %2147 = vmatprep.subr.mxu0 0.0
        %2148 = vmatpush2.msra.mxu0 0.0
        %2149 = vmatprep.subr.mxu0 0.0
        %2150 = vmatpush2.msra.mxu0 0.0
        %2151 = vmatprep.subr.mxu0 0.0
        %2152 = vmatpush2.msra.mxu0 0.0
        %2153 = vmatprep.subr.mxu0 0.0
        %2154 = vmatpush2.msra.mxu0 0.0
        %2155 = vmatprep.mubr.f32.mxu0 0.0
        %2156 = vmatmul.mubr.f32.gmra.mxu0 %v2081
        %v2157 = vpop.f32.mrf.mxu0
        %v2158 = vadd.f32 0.0, %v2157
        %v2159 = vpop.f32.mrf.mxu0
        %2160 = vmatprep.mubr.f32.mxu0 0.0
        %2161 = vmatmul.mubr.f32.gmra.mxu0 %v2084
        %v2162 = vpop.f32.mrf.mxu0
        %v2163 = vadd.f32 0.0, %v2162
        %v2164 = vpop.f32.mrf.mxu0
        %2165 = vmatprep.mubr.f32.mxu0 0.0
        %2166 = vmatmul.mubr.f32.gmra.mxu0 %v2087
        %v2167 = vpop.f32.mrf.mxu0
        %v2168 = vadd.f32 0.0, %v2167
        %v2169 = vpop.f32.mrf.mxu0
        %2170 = vdwg.mxu0
        %2174 = vrot.lane.b32.xlu0 %v1686, 16
        %v2175 = vpop.permute.xlu0 %2174
        %2176 = vrot.lane.b32.xlu0 %v1691, 16
        %v2177 = vpop.permute.xlu0 %2176
        %2178 = vrot.lane.b32.xlu0 %v1696, 16
        %v2179 = vpop.permute.xlu0 %2178
        %2186 = vrot.lane.b32.xlu0 %v1922, 32
        %v2187 = vpop.permute.xlu0 %2186
        %2188 = vrot.lane.b32.xlu0 %v1927, 32
        %v2189 = vpop.permute.xlu0 %2188
        %2190 = vrot.lane.b32.xlu0 %v1932, 32
        %v2191 = vpop.permute.xlu0 %2190
        %2198 = vrot.lane.b32.xlu0 %v2158, 48
        %v2199 = vpop.permute.xlu0 %2198
        %2200 = vrot.lane.b32.xlu0 %v2163, 48
        %v2201 = vpop.permute.xlu0 %2200
        %2202 = vrot.lane.b32.xlu0 %v2168, 48
        %v2203 = vpop.permute.xlu0 %2202
        %v2207 = vsel %vm1235, %v1448, %v2175
        %v2208 = vsel %vm1235, %v1453, %v2177
        %v2209 = vsel %vm1235, %v1458, %v2179
        %vm2210 = vcmask 261120
        %v2211 = vsel %vm2210, %v2207, %v2187
        %v2212 = vsel %vm2210, %v2208, %v2189
        %v2213 = vsel %vm2210, %v2209, %v2191
        %v2214 = vsel %vm777, %v2211, %v2199
        %v2215 = vsel %vm777, %v2212, %v2201
        %v2216 = vsel %vm777, %v2213, %v2203
        %v2217 = vld [vmem:[%s13] sm:$0xff]
        %v2218 = vld [vmem:[%s13 + $0x8] sm:$0xff]
        %v2219 = vld [vmem:[%s13 + $0x10] sm:$0xff]
        %v2220 = vld [vmem:[%s13 + $0x18] sm:$0xff]
        %v2221 = vld [vmem:[%s13 + $0x20] sm:$0xff]
        %v2222 = vld [vmem:[%s13 + $0x28] sm:$0xff]
        %v2223 = vld [vmem:[%s13 + $0x30] sm:$0xff]
        %v2224 = vld [vmem:[%s13 + $0x38] sm:$0xff]
        %v2226 = vsel %vm878, %v2214, 0
        %v2229 = vsel %vm878, %v2215, 0
        %v2232 = vsel %vm878, %v2216, 0
        %2234 = vmatprep.subr.mxu0 0.0
        %2235 = vmatpush1.msra.mxu0 0.0
        %2236 = vmatprep.subr.mxu0 0.0
        %2237 = vmatpush1.msra.mxu0 0.0
        %2238 = vmatprep.subr.mxu0 0.0
        %2239 = vmatpush1.msra.mxu0 0.0
        %2240 = vmatprep.subr.mxu0 0.0
        %2241 = vmatpush1.msra.mxu0 0.0
        %2242 = vmatprep.subr.mxu0 0.0
        %2243 = vmatpush1.msra.mxu0 0.0
        %2244 = vmatprep.subr.mxu0 0.0
        %2245 = vmatpush1.msra.mxu0 0.0
        %2246 = vmatprep.subr.mxu0 0.0
        %2247 = vmatpush1.msra.mxu0 0.0
        %2248 = vmatprep.subr.mxu0 0.0
        %2249 = vmatpush1.msra.mxu0 0.0
        %2250 = vmatprep.subr.mxu0 0.0
        %2251 = vmatpush1.msra.mxu0 %v2224
        %2252 = vmatprep.subr.mxu0 0.0
        %2253 = vmatpush1.msra.mxu0 %v2223
        %2254 = vmatprep.subr.mxu0 0.0
        %2255 = vmatpush1.msra.mxu0 %v2222
        %2256 = vmatprep.subr.mxu0 0.0
        %2257 = vmatpush1.msra.mxu0 %v2221
        %2258 = vmatprep.subr.mxu0 0.0
        %2259 = vmatpush1.msra.mxu0 %v2220
        %2260 = vmatprep.subr.mxu0 0.0
        %2261 = vmatpush1.msra.mxu0 %v2219
        %2262 = vmatprep.subr.mxu0 0.0
        %2263 = vmatpush1.msra.mxu0 %v2218
        %2264 = vmatprep.subr.mxu0 0.0
        %2265 = vmatpush1.msra.mxu0 %v2217
        %2266 = vmatprep.subr.mxu0 0.0
        %2267 = vmatpush2.msra.mxu0 0.0
        %2268 = vmatprep.subr.mxu0 0.0
        %2269 = vmatpush2.msra.mxu0 0.0
        %2270 = vmatprep.subr.mxu0 0.0
        %2271 = vmatpush2.msra.mxu0 0.0
        %2272 = vmatprep.subr.mxu0 0.0
        %2273 = vmatpush2.msra.mxu0 0.0
        %2274 = vmatprep.subr.mxu0 0.0
        %2275 = vmatpush2.msra.mxu0 0.0
        %2276 = vmatprep.subr.mxu0 0.0
        %2277 = vmatpush2.msra.mxu0 0.0
        %2278 = vmatprep.subr.mxu0 0.0
        %2279 = vmatpush2.msra.mxu0 0.0
        %2280 = vmatprep.subr.mxu0 0.0
        %2281 = vmatpush2.msra.mxu0 0.0
        %2282 = vmatprep.subr.mxu0 0.0
        %2283 = vmatpush2.msra.mxu0 0.0
        %2284 = vmatprep.subr.mxu0 0.0
        %2285 = vmatpush2.msra.mxu0 0.0
        %2286 = vmatprep.subr.mxu0 0.0
        %2287 = vmatpush2.msra.mxu0 0.0
        %2288 = vmatprep.subr.mxu0 0.0
        %2289 = vmatpush2.msra.mxu0 0.0
        %2290 = vmatprep.subr.mxu0 0.0
        %2291 = vmatpush2.msra.mxu0 0.0
        %2292 = vmatprep.subr.mxu0 0.0
        %2293 = vmatpush2.msra.mxu0 0.0
        %2294 = vmatprep.subr.mxu0 0.0
        %2295 = vmatpush2.msra.mxu0 0.0
        %2296 = vmatprep.subr.mxu0 0.0
        %2297 = vmatpush2.msra.mxu0 0.0
        %2298 = vmatprep.mubr.f32.mxu0 0.0
        %2299 = vmatmul.mubr.f32.gmra.mxu0 %v2226
        %v2300 = vpop.f32.mrf.mxu0
        %v2301 = vadd.f32 0.0, %v2300
        %v2302 = vpop.f32.mrf.mxu0
        %2303 = vmatprep.mubr.f32.mxu0 0.0
        %2304 = vmatmul.mubr.f32.gmra.mxu0 %v2229
        %v2305 = vpop.f32.mrf.mxu0
        %v2306 = vadd.f32 0.0, %v2305
        %v2307 = vpop.f32.mrf.mxu0
        %2308 = vmatprep.mubr.f32.mxu0 0.0
        %2309 = vmatmul.mubr.f32.gmra.mxu0 %v2232
        %v2310 = vpop.f32.mrf.mxu0
        %v2311 = vadd.f32 0.0, %v2310
        %v2312 = vpop.f32.mrf.mxu0
        %2313 = vdwg.mxu0
        %v2314 = vadd.f32 %v873, %v2301
        %v2315 = vadd.f32 %v874, %v2306
        %v2316 = vadd.f32 %v875, %v2311
        %v2317 = vld [vmem:[%s14] sm:$0x1]
        %v2319 = vlaneseq
        %v2320 = vshrl.u32 %v2319, 7
        %v2321 = vsub.s32 0, %v2320
        %v2322 = vrot.slane %v2317, %v2321
        %v2324 = vadd.f32 %v2314, %v2322
        %v2325 = vadd.f32 %v2315, %v2322
        %v2326 = vadd.f32 %v2316, %v2322
        %v2327 = vld [vmem:[%s15] sm:$0x1]
        %v2328 = vld [vmem:[%s16] sm:$0x1]
        %v2329 = vsel %vm878, %v2324, 0.0
        %2330 = vadd.xlane.f32.xlu0 %v2329
        %v2331 = vpop.xlane.xlu0 %2330
        %v2332 = vsel %vm878, %v2325, 0.0
        %2333 = vadd.xlane.f32.xlu0 %v2332
        %v2334 = vpop.xlane.xlu0 %2333
        %v2335 = vsel %vm885, %v2326, 0.0
        %2336 = vadd.xlane.f32.xlu0 %v2335
        %v2337 = vpop.xlane.xlu0 %2336
        %v2338 = vmul.f32 %v2331, %v889
        %v2339 = vmul.f32 %v2334, %v889
        %v2340 = vmul.f32 %v2337, %v889
        %v2341 = vsub.f32 %v2324, %v2338
        %v2342 = vsub.f32 %v2325, %v2339
        %v2343 = vsub.f32 %v2326, %v2340
        %v2344 = vmul.f32 %v2341, %v2341
        %v2345 = vmul.f32 %v2342, %v2342
        %v2346 = vmul.f32 %v2343, %v2343
        %v2347 = vsel %vm878, %v2344, 0.0
        %2348 = vadd.xlane.f32.xlu0 %v2347
        %v2349 = vpop.xlane.xlu0 %2348
        %v2350 = vsel %vm878, %v2345, 0.0
        %2351 = vadd.xlane.f32.xlu0 %v2350
        %v2352 = vpop.xlane.xlu0 %2351
        %v2353 = vsel %vm885, %v2346, 0.0
        %2354 = vadd.xlane.f32.xlu0 %v2353
        %v2355 = vpop.xlane.xlu0 %2354
        %v2356 = vmul.f32 %v2349, %v889
        %v2357 = vmul.f32 %v2352, %v889
        %v2358 = vmul.f32 %v2355, %v889
        %v2359 = vadd.f32 %v2356, 1e-05
        %v2360 = vadd.f32 %v2357, 1e-05
        %v2361 = vadd.f32 %v2358, 1e-05
        %v2362 = vrsqrt.pop %v2359
        %v2363 = vrsqrt.pop %v2360
        %v2364 = vrsqrt.pop %v2361
        %v2365 = vmul.f32 %v2341, %v2362
        %v2366 = vmul.f32 %v2342, %v2363
        %v2367 = vmul.f32 %v2343, %v2364
        %v2369 = vlaneseq
        %v2370 = vshrl.u32 %v2369, 7
        %v2371 = vsub.s32 0, %v2370
        %v2372 = vrot.slane %v2327, %v2371
        %v2374 = vmul.f32 %v2365, %v2372
        %v2375 = vmul.f32 %v2366, %v2372
        %v2376 = vmul.f32 %v2367, %v2372
        %v2378 = vlaneseq
        %v2379 = vshrl.u32 %v2378, 7
        %v2380 = vsub.s32 0, %v2379
        %v2381 = vrot.slane %v2328, %v2380
        %v2383 = vadd.f32 %v2374, %v2381
        %v2384 = vadd.f32 %v2375, %v2381
        %v2385 = vadd.f32 %v2376, %v2381
        %v2386 = vld [vmem:[%s17] sm:$0xff]
        %v2387 = vld [vmem:[%s17 + $0x8] sm:$0xff]
        %v2388 = vld [vmem:[%s17 + $0x10] sm:$0xff]
        %v2389 = vld [vmem:[%s17 + $0x18] sm:$0xff]
        %v2390 = vld [vmem:[%s17 + $0x20] sm:$0xff]
        %v2391 = vld [vmem:[%s17 + $0x28] sm:$0xff]
        %v2392 = vld [vmem:[%s17 + $0x30] sm:$0xff]
        %v2393 = vld [vmem:[%s17 + $0x38] sm:$0xff]
        %v2394 = vld [vmem:[%s18] sm:$0x1]
        %v2396 = vlaneseq
        %v2397 = vshrl.u32 %v2396, 7
        %v2398 = vsub.s32 0, %v2397
        %v2399 = vrot.slane %v2394, %v2398
        %v2402 = vsel %vm878, %v2383, 0
        %v2405 = vsel %vm878, %v2384, 0
        %v2408 = vsel %vm878, %v2385, 0
        %2410 = vmatprep.subr.mxu0 0.0
        %2411 = vmatpush1.msra.mxu0 0.0
        %2412 = vmatprep.subr.mxu0 0.0
        %2413 = vmatpush1.msra.mxu0 0.0
        %2414 = vmatprep.subr.mxu0 0.0
        %2415 = vmatpush1.msra.mxu0 0.0
        %2416 = vmatprep.subr.mxu0 0.0
        %2417 = vmatpush1.msra.mxu0 0.0
        %2418 = vmatprep.subr.mxu0 0.0
        %2419 = vmatpush1.msra.mxu0 0.0
        %2420 = vmatprep.subr.mxu0 0.0
        %2421 = vmatpush1.msra.mxu0 0.0
        %2422 = vmatprep.subr.mxu0 0.0
        %2423 = vmatpush1.msra.mxu0 0.0
        %2424 = vmatprep.subr.mxu0 0.0
        %2425 = vmatpush1.msra.mxu0 0.0
        %2426 = vmatprep.subr.mxu0 0.0
        %2427 = vmatpush1.msra.mxu0 %v2393
        %2428 = vmatprep.subr.mxu0 0.0
        %2429 = vmatpush1.msra.mxu0 %v2392
        %2430 = vmatprep.subr.mxu0 0.0
        %2431 = vmatpush1.msra.mxu0 %v2391
        %2432 = vmatprep.subr.mxu0 0.0
        %2433 = vmatpush1.msra.mxu0 %v2390
        %2434 = vmatprep.subr.mxu0 0.0
        %2435 = vmatpush1.msra.mxu0 %v2389
        %2436 = vmatprep.subr.mxu0 0.0
        %2437 = vmatpush1.msra.mxu0 %v2388
        %2438 = vmatprep.subr.mxu0 0.0
        %2439 = vmatpush1.msra.mxu0 %v2387
        %2440 = vmatprep.subr.mxu0 0.0
        %2441 = vmatpush1.msra.mxu0 %v2386
        %2442 = vmatprep.subr.mxu0 0.0
        %2443 = vmatpush2.msra.mxu0 0.0
        %2444 = vmatprep.subr.mxu0 0.0
        %2445 = vmatpush2.msra.mxu0 0.0
        %2446 = vmatprep.subr.mxu0 0.0
        %2447 = vmatpush2.msra.mxu0 0.0
        %2448 = vmatprep.subr.mxu0 0.0
        %2449 = vmatpush2.msra.mxu0 0.0
        %2450 = vmatprep.subr.mxu0 0.0
        %2451 = vmatpush2.msra.mxu0 0.0
        %2452 = vmatprep.subr.mxu0 0.0
        %2453 = vmatpush2.msra.mxu0 0.0
        %2454 = vmatprep.subr.mxu0 0.0
        %2455 = vmatpush2.msra.mxu0 0.0
        %2456 = vmatprep.subr.mxu0 0.0
        %2457 = vmatpush2.msra.mxu0 0.0
        %2458 = vmatprep.subr.mxu0 0.0
        %2459 = vmatpush2.msra.mxu0 0.0
        %2460 = vmatprep.subr.mxu0 0.0
        %2461 = vmatpush2.msra.mxu0 0.0
        %2462 = vmatprep.subr.mxu0 0.0
        %2463 = vmatpush2.msra.mxu0 0.0
        %2464 = vmatprep.subr.mxu0 0.0
        %2465 = vmatpush2.msra.mxu0 0.0
        %2466 = vmatprep.subr.mxu0 0.0
        %2467 = vmatpush2.msra.mxu0 0.0
        %2468 = vmatprep.subr.mxu0 0.0
        %2469 = vmatpush2.msra.mxu0 0.0
        %2470 = vmatprep.subr.mxu0 0.0
        %2471 = vmatpush2.msra.mxu0 0.0
        %2472 = vmatprep.subr.mxu0 0.0
        %2473 = vmatpush2.msra.mxu0 0.0
        %2474 = vmatprep.mubr.f32.mxu0 0.0
        %2475 = vmatmul.mubr.f32.gmra.mxu0 %v2402
        %v2476 = vpop.f32.mrf.mxu0
        %v2477 = vadd.f32 %v2399, %v2476
        %v2478 = vpop.f32.mrf.mxu0
        %2479 = vmatprep.mubr.f32.mxu0 0.0
        %2480 = vmatmul.mubr.f32.gmra.mxu0 %v2405
        %v2481 = vpop.f32.mrf.mxu0
        %v2482 = vadd.f32 %v2399, %v2481
        %v2483 = vpop.f32.mrf.mxu0
        %2484 = vmatprep.mubr.f32.mxu0 0.0
        %2485 = vmatmul.mubr.f32.gmra.mxu0 %v2408
        %v2486 = vpop.f32.mrf.mxu0
        %v2487 = vadd.f32 %v2399, %v2486
        %v2488 = vpop.f32.mrf.mxu0
        %2489 = vdwg.mxu0
        %v2490 = vmul.f32 %v2477, 0.5
        %v2491 = vmul.f32 %v2482, 0.5
        %v2492 = vmul.f32 %v2487, 0.5
        %v2493 = vmul.f32 %v2477, 0.70710677
        %v2494 = vmul.f32 %v2482, 0.70710677
        %v2495 = vmul.f32 %v2487, 0.70710677
        %v2496 = verf.f32.pop %v2493
        %v2497 = verf.f32.pop %v2494
        %v2498 = verf.f32.pop %v2495
        %v2499 = vadd.f32 %v2496, 1.0
        %v2500 = vadd.f32 %v2497, 1.0
        %v2501 = vadd.f32 %v2498, 1.0
        %v2502 = vmul.f32 %v2490, %v2499
        %v2503 = vmul.f32 %v2491, %v2500
        %v2504 = vmul.f32 %v2492, %v2501
        %v2505 = vld [vmem:[%s19] sm:$0xff]
        %v2506 = vld [vmem:[%s19 + $0x8] sm:$0xff]
        %v2507 = vld [vmem:[%s19 + $0x10] sm:$0xff]
        %v2508 = vld [vmem:[%s19 + $0x18] sm:$0xff]
        %v2509 = vld [vmem:[%s19 + $0x20] sm:$0xff]
        %v2510 = vld [vmem:[%s19 + $0x28] sm:$0xff]
        %v2511 = vld [vmem:[%s19 + $0x30] sm:$0xff]
        %v2512 = vld [vmem:[%s19 + $0x38] sm:$0xff]
        %v2513 = vld [vmem:[%s19 + $0x40] sm:$0xff]
        %v2514 = vld [vmem:[%s19 + $0x48] sm:$0xff]
        %v2515 = vld [vmem:[%s19 + $0x50] sm:$0xff]
        %v2516 = vld [vmem:[%s19 + $0x58] sm:$0xff]
        %v2517 = vld [vmem:[%s19 + $0x60] sm:$0xff]
        %v2518 = vld [vmem:[%s19 + $0x68] sm:$0xff]
        %v2519 = vld [vmem:[%s19 + $0x70] sm:$0xff]
        %v2520 = vld [vmem:[%s19 + $0x78] sm:$0xff]
        %2521 = vmatprep.subr.mxu0 0.0
        %2522 = vmatpush1.msra.mxu0 %v2520
        %2523 = vmatprep.subr.mxu0 0.0
        %2524 = vmatpush1.msra.mxu0 %v2519
        %2525 = vmatprep.subr.mxu0 0.0
        %2526 = vmatpush1.msra.mxu0 %v2518
        %2527 = vmatprep.subr.mxu0 0.0
        %2528 = vmatpush1.msra.mxu0 %v2517
        %2529 = vmatprep.subr.mxu0 0.0
        %2530 = vmatpush1.msra.mxu0 %v2516
        %2531 = vmatprep.subr.mxu0 0.0
        %2532 = vmatpush1.msra.mxu0 %v2515
        %2533 = vmatprep.subr.mxu0 0.0
        %2534 = vmatpush1.msra.mxu0 %v2514
        %2535 = vmatprep.subr.mxu0 0.0
        %2536 = vmatpush1.msra.mxu0 %v2513
        %2537 = vmatprep.subr.mxu0 0.0
        %2538 = vmatpush1.msra.mxu0 %v2512
        %2539 = vmatprep.subr.mxu0 0.0
        %2540 = vmatpush1.msra.mxu0 %v2511
        %2541 = vmatprep.subr.mxu0 0.0
        %2542 = vmatpush1.msra.mxu0 %v2510
        %2543 = vmatprep.subr.mxu0 0.0
        %2544 = vmatpush1.msra.mxu0 %v2509
        %2545 = vmatprep.subr.mxu0 0.0
        %2546 = vmatpush1.msra.mxu0 %v2508
        %2547 = vmatprep.subr.mxu0 0.0
        %2548 = vmatpush1.msra.mxu0 %v2507
        %2549 = vmatprep.subr.mxu0 0.0
        %2550 = vmatpush1.msra.mxu0 %v2506
        %2551 = vmatprep.subr.mxu0 0.0
        %2552 = vmatpush1.msra.mxu0 %v2505
        %2553 = vmatprep.subr.mxu0 0.0
        %2554 = vmatpush2.msra.mxu0 0.0
        %2555 = vmatprep.subr.mxu0 0.0
        %2556 = vmatpush2.msra.mxu0 0.0
        %2557 = vmatprep.subr.mxu0 0.0
        %2558 = vmatpush2.msra.mxu0 0.0
        %2559 = vmatprep.subr.mxu0 0.0
        %2560 = vmatpush2.msra.mxu0 0.0
        %2561 = vmatprep.subr.mxu0 0.0
        %2562 = vmatpush2.msra.mxu0 0.0
        %2563 = vmatprep.subr.mxu0 0.0
        %2564 = vmatpush2.msra.mxu0 0.0
        %2565 = vmatprep.subr.mxu0 0.0
        %2566 = vmatpush2.msra.mxu0 0.0
        %2567 = vmatprep.subr.mxu0 0.0
        %2568 = vmatpush2.msra.mxu0 0.0
        %2569 = vmatprep.subr.mxu0 0.0
        %2570 = vmatpush2.msra.mxu0 0.0
        %2571 = vmatprep.subr.mxu0 0.0
        %2572 = vmatpush2.msra.mxu0 0.0
        %2573 = vmatprep.subr.mxu0 0.0
        %2574 = vmatpush2.msra.mxu0 0.0
        %2575 = vmatprep.subr.mxu0 0.0
        %2576 = vmatpush2.msra.mxu0 0.0
        %2577 = vmatprep.subr.mxu0 0.0
        %2578 = vmatpush2.msra.mxu0 0.0
        %2579 = vmatprep.subr.mxu0 0.0
        %2580 = vmatpush2.msra.mxu0 0.0
        %2581 = vmatprep.subr.mxu0 0.0
        %2582 = vmatpush2.msra.mxu0 0.0
        %2583 = vmatprep.subr.mxu0 0.0
        %2584 = vmatpush2.msra.mxu0 0.0
        %2585 = vmatprep.mubr.f32.mxu0 0.0
        %2586 = vmatmul.mubr.f32.gmra.mxu0 %v2502
        %v2587 = vpop.f32.mrf.mxu0
        %v2588 = vadd.f32 0.0, %v2587
        %v2589 = vpop.f32.mrf.mxu0
        %2590 = vmatprep.mubr.f32.mxu0 0.0
        %2591 = vmatmul.mubr.f32.gmra.mxu0 %v2503
        %v2592 = vpop.f32.mrf.mxu0
        %v2593 = vadd.f32 0.0, %v2592
        %v2594 = vpop.f32.mrf.mxu0
        %2595 = vmatprep.mubr.f32.mxu0 0.0
        %2596 = vmatmul.mubr.f32.gmra.mxu0 %v2504
        %v2597 = vpop.f32.mrf.mxu0
        %v2598 = vadd.f32 0.0, %v2597
        %v2599 = vpop.f32.mrf.mxu0
        %2600 = vdwg.mxu0
        %v2601 = vadd.f32 %v2324, %v2588
        %v2602 = vadd.f32 %v2325, %v2593
        %v2603 = vadd.f32 %v2326, %v2598
        %v2604 = vld [vmem:[%s20] sm:$0x1]
        %v2606 = vlaneseq
        %v2607 = vshrl.u32 %v2606, 7
        %v2608 = vsub.s32 0, %v2607
        %v2609 = vrot.slane %v2604, %v2608
        %v2611 = vadd.f32 %v2601, %v2609
        %v2612 = vadd.f32 %v2602, %v2609
        %v2613 = vadd.f32 %v2603, %v2609
        %s2614 = scalar_lea.vmem %s5, 1
        %v2615 = vld [vmem:[%s2614] sm:$0x1]
        %s2616 = scalar_lea.vmem %s6, 1
        %v2617 = vld [vmem:[%s2616] sm:$0x1]
        %v2618 = vsel %vm878, %v2611, 0.0
        %2619 = vadd.xlane.f32.xlu0 %v2618
        %v2620 = vpop.xlane.xlu0 %2619
        %v2621 = vsel %vm878, %v2612, 0.0
        %2622 = vadd.xlane.f32.xlu0 %v2621
        %v2623 = vpop.xlane.xlu0 %2622
        %v2624 = vsel %vm885, %v2613, 0.0
        %2625 = vadd.xlane.f32.xlu0 %v2624
        %v2626 = vpop.xlane.xlu0 %2625
        %v2627 = vmul.f32 %v2620, %v889
        %v2628 = vmul.f32 %v2623, %v889
        %v2629 = vmul.f32 %v2626, %v889
        %v2630 = vsub.f32 %v2611, %v2627
        %v2631 = vsub.f32 %v2612, %v2628
        %v2632 = vsub.f32 %v2613, %v2629
        %v2633 = vmul.f32 %v2630, %v2630
        %v2634 = vmul.f32 %v2631, %v2631
        %v2635 = vmul.f32 %v2632, %v2632
        %v2636 = vsel %vm878, %v2633, 0.0
        %2637 = vadd.xlane.f32.xlu0 %v2636
        %v2638 = vpop.xlane.xlu0 %2637
        %v2639 = vsel %vm878, %v2634, 0.0
        %2640 = vadd.xlane.f32.xlu0 %v2639
        %v2641 = vpop.xlane.xlu0 %2640
        %v2642 = vsel %vm885, %v2635, 0.0
        %2643 = vadd.xlane.f32.xlu0 %v2642
        %v2644 = vpop.xlane.xlu0 %2643
        %v2645 = vmul.f32 %v2638, %v889
        %v2646 = vmul.f32 %v2641, %v889
        %v2647 = vmul.f32 %v2644, %v889
        %v2648 = vadd.f32 %v2645, 1e-05
        %v2649 = vadd.f32 %v2646, 1e-05
        %v2650 = vadd.f32 %v2647, 1e-05
        %v2651 = vrsqrt.pop %v2648
        %v2652 = vrsqrt.pop %v2649
        %v2653 = vrsqrt.pop %v2650
        %v2654 = vmul.f32 %v2630, %v2651
        %v2655 = vmul.f32 %v2631, %v2652
        %v2656 = vmul.f32 %v2632, %v2653
        %v2658 = vlaneseq
        %v2659 = vshrl.u32 %v2658, 7
        %v2660 = vsub.s32 0, %v2659
        %v2661 = vrot.slane %v2615, %v2660
        %v2663 = vmul.f32 %v2654, %v2661
        %v2664 = vmul.f32 %v2655, %v2661
        %v2665 = vmul.f32 %v2656, %v2661
        %v2667 = vlaneseq
        %v2668 = vshrl.u32 %v2667, 7
        %v2669 = vsub.s32 0, %v2668
        %v2670 = vrot.slane %v2617, %v2669
        %v2672 = vadd.f32 %v2663, %v2670
        %v2673 = vadd.f32 %v2664, %v2670
        %v2674 = vadd.f32 %v2665, %v2670
        %s2675 = scalar_lea.vmem %s7, 64
        %v2676 = vld [vmem:[%s2675] sm:$0xff]
        %v2677 = vld [vmem:[%s2675 + $0x8] sm:$0xff]
        %v2678 = vld [vmem:[%s2675 + $0x10] sm:$0xff]
        %v2679 = vld [vmem:[%s2675 + $0x18] sm:$0xff]
        %v2680 = vld [vmem:[%s2675 + $0x20] sm:$0xff]
        %v2681 = vld [vmem:[%s2675 + $0x28] sm:$0xff]
        %v2682 = vld [vmem:[%s2675 + $0x30] sm:$0xff]
        %v2683 = vld [vmem:[%s2675 + $0x38] sm:$0xff]
        %s2684 = scalar_lea.vmem %s10, 1
        %v2685 = vld [vmem:[%s2684] sm:$0x1]
        %v2687 = vlaneseq
        %v2688 = vshrl.u32 %v2687, 7
        %v2689 = vsub.s32 0, %v2688
        %v2690 = vrot.slane %v2685, %v2689
        %v2693 = vsel %vm878, %v2672, 0
        %v2696 = vsel %vm878, %v2673, 0
        %v2699 = vsel %vm878, %v2674, 0
        %2701 = vmatprep.subr.mxu0 0.0
        %2702 = vmatpush1.msra.mxu0 0.0
        %2703 = vmatprep.subr.mxu0 0.0
        %2704 = vmatpush1.msra.mxu0 0.0
        %2705 = vmatprep.subr.mxu0 0.0
        %2706 = vmatpush1.msra.mxu0 0.0
        %2707 = vmatprep.subr.mxu0 0.0
        %2708 = vmatpush1.msra.mxu0 0.0
        %2709 = vmatprep.subr.mxu0 0.0
        %2710 = vmatpush1.msra.mxu0 0.0
        %2711 = vmatprep.subr.mxu0 0.0
        %2712 = vmatpush1.msra.mxu0 0.0
        %2713 = vmatprep.subr.mxu0 0.0
        %2714 = vmatpush1.msra.mxu0 0.0
        %2715 = vmatprep.subr.mxu0 0.0
        %2716 = vmatpush1.msra.mxu0 0.0
        %2717 = vmatprep.subr.mxu0 0.0
        %2718 = vmatpush1.msra.mxu0 %v2683
        %2719 = vmatprep.subr.mxu0 0.0
        %2720 = vmatpush1.msra.mxu0 %v2682
        %2721 = vmatprep.subr.mxu0 0.0
        %2722 = vmatpush1.msra.mxu0 %v2681
        %2723 = vmatprep.subr.mxu0 0.0
        %2724 = vmatpush1.msra.mxu0 %v2680
        %2725 = vmatprep.subr.mxu0 0.0
        %2726 = vmatpush1.msra.mxu0 %v2679
        %2727 = vmatprep.subr.mxu0 0.0
        %2728 = vmatpush1.msra.mxu0 %v2678
        %2729 = vmatprep.subr.mxu0 0.0
        %2730 = vmatpush1.msra.mxu0 %v2677
        %2731 = vmatprep.subr.mxu0 0.0
        %2732 = vmatpush1.msra.mxu0 %v2676
        %2733 = vmatprep.subr.mxu0 0.0
        %2734 = vmatpush2.msra.mxu0 0.0
        %2735 = vmatprep.subr.mxu0 0.0
        %2736 = vmatpush2.msra.mxu0 0.0
        %2737 = vmatprep.subr.mxu0 0.0
        %2738 = vmatpush2.msra.mxu0 0.0
        %2739 = vmatprep.subr.mxu0 0.0
        %2740 = vmatpush2.msra.mxu0 0.0
        %2741 = vmatprep.subr.mxu0 0.0
        %2742 = vmatpush2.msra.mxu0 0.0
        %2743 = vmatprep.subr.mxu0 0.0
        %2744 = vmatpush2.msra.mxu0 0.0
        %2745 = vmatprep.subr.mxu0 0.0
        %2746 = vmatpush2.msra.mxu0 0.0
        %2747 = vmatprep.subr.mxu0 0.0
        %2748 = vmatpush2.msra.mxu0 0.0
        %2749 = vmatprep.subr.mxu0 0.0
        %2750 = vmatpush2.msra.mxu0 0.0
        %2751 = vmatprep.subr.mxu0 0.0
        %2752 = vmatpush2.msra.mxu0 0.0
        %2753 = vmatprep.subr.mxu0 0.0
        %2754 = vmatpush2.msra.mxu0 0.0
        %2755 = vmatprep.subr.mxu0 0.0
        %2756 = vmatpush2.msra.mxu0 0.0
        %2757 = vmatprep.subr.mxu0 0.0
        %2758 = vmatpush2.msra.mxu0 0.0
        %2759 = vmatprep.subr.mxu0 0.0
        %2760 = vmatpush2.msra.mxu0 0.0
        %2761 = vmatprep.subr.mxu0 0.0
        %2762 = vmatpush2.msra.mxu0 0.0
        %2763 = vmatprep.subr.mxu0 0.0
        %2764 = vmatpush2.msra.mxu0 0.0
        %2765 = vmatprep.mubr.f32.mxu0 0.0
        %2766 = vmatmul.mubr.f32.gmra.mxu0 %v2693
        %v2767 = vpop.f32.mrf.mxu0
        %v2768 = vadd.f32 %v2690, %v2767
        %v2769 = vpop.f32.mrf.mxu0
        %2770 = vmatprep.mubr.f32.mxu0 0.0
        %2771 = vmatmul.mubr.f32.gmra.mxu0 %v2696
        %v2772 = vpop.f32.mrf.mxu0
        %v2773 = vadd.f32 %v2690, %v2772
        %v2774 = vpop.f32.mrf.mxu0
        %2775 = vmatprep.mubr.f32.mxu0 0.0
        %2776 = vmatmul.mubr.f32.gmra.mxu0 %v2699
        %v2777 = vpop.f32.mrf.mxu0
        %v2778 = vadd.f32 %v2690, %v2777
        %v2779 = vpop.f32.mrf.mxu0
        %2780 = vdwg.mxu0
        %v2781 = vmul.f32 %v2768, 0.25
        %v2782 = vmul.f32 %v2773, 0.25
        %v2783 = vmul.f32 %v2778, 0.25
        %s2784 = scalar_lea.vmem %s8, 64
        %v2785 = vld [vmem:[%s2784] sm:$0xff]
        %v2786 = vld [vmem:[%s2784 + $0x8] sm:$0xff]
        %v2787 = vld [vmem:[%s2784 + $0x10] sm:$0xff]
        %v2788 = vld [vmem:[%s2784 + $0x18] sm:$0xff]
        %v2789 = vld [vmem:[%s2784 + $0x20] sm:$0xff]
        %v2790 = vld [vmem:[%s2784 + $0x28] sm:$0xff]
        %v2791 = vld [vmem:[%s2784 + $0x30] sm:$0xff]
        %v2792 = vld [vmem:[%s2784 + $0x38] sm:$0xff]
        %s2793 = scalar_lea.vmem %s11, 1
        %v2794 = vld [vmem:[%s2793] sm:$0x1]
        %v2796 = vlaneseq
        %v2797 = vshrl.u32 %v2796, 7
        %v2798 = vsub.s32 0, %v2797
        %v2799 = vrot.slane %v2794, %v2798
        %2801 = vmatprep.subr.mxu0 0.0
        %2802 = vmatpush1.msra.mxu0 0.0
        %2803 = vmatprep.subr.mxu0 0.0
        %2804 = vmatpush1.msra.mxu0 0.0
        %2805 = vmatprep.subr.mxu0 0.0
        %2806 = vmatpush1.msra.mxu0 0.0
        %2807 = vmatprep.subr.mxu0 0.0
        %2808 = vmatpush1.msra.mxu0 0.0
        %2809 = vmatprep.subr.mxu0 0.0
        %2810 = vmatpush1.msra.mxu0 0.0
        %2811 = vmatprep.subr.mxu0 0.0
        %2812 = vmatpush1.msra.mxu0 0.0
        %2813 = vmatprep.subr.mxu0 0.0
        %2814 = vmatpush1.msra.mxu0 0.0
        %2815 = vmatprep.subr.mxu0 0.0
        %2816 = vmatpush1.msra.mxu0 0.0
        %2817 = vmatprep.subr.mxu0 0.0
        %2818 = vmatpush1.msra.mxu0 %v2792
        %2819 = vmatprep.subr.mxu0 0.0
        %2820 = vmatpush1.msra.mxu0 %v2791
        %2821 = vmatprep.subr.mxu0 0.0
        %2822 = vmatpush1.msra.mxu0 %v2790
        %2823 = vmatprep.subr.mxu0 0.0
        %2824 = vmatpush1.msra.mxu0 %v2789
        %2825 = vmatprep.subr.mxu0 0.0
        %2826 = vmatpush1.msra.mxu0 %v2788
        %2827 = vmatprep.subr.mxu0 0.0
        %2828 = vmatpush1.msra.mxu0 %v2787
        %2829 = vmatprep.subr.mxu0 0.0
        %2830 = vmatpush1.msra.mxu0 %v2786
        %2831 = vmatprep.subr.mxu0 0.0
        %2832 = vmatpush1.msra.mxu0 %v2785
        %2833 = vmatprep.subr.mxu0 0.0
        %2834 = vmatpush2.msra.mxu0 0.0
        %2835 = vmatprep.subr.mxu0 0.0
        %2836 = vmatpush2.msra.mxu0 0.0
        %2837 = vmatprep.subr.mxu0 0.0
        %2838 = vmatpush2.msra.mxu0 0.0
        %2839 = vmatprep.subr.mxu0 0.0
        %2840 = vmatpush2.msra.mxu0 0.0
        %2841 = vmatprep.subr.mxu0 0.0
        %2842 = vmatpush2.msra.mxu0 0.0
        %2843 = vmatprep.subr.mxu0 0.0
        %2844 = vmatpush2.msra.mxu0 0.0
        %2845 = vmatprep.subr.mxu0 0.0
        %2846 = vmatpush2.msra.mxu0 0.0
        %2847 = vmatprep.subr.mxu0 0.0
        %2848 = vmatpush2.msra.mxu0 0.0
        %2849 = vmatprep.subr.mxu0 0.0
        %2850 = vmatpush2.msra.mxu0 0.0
        %2851 = vmatprep.subr.mxu0 0.0
        %2852 = vmatpush2.msra.mxu0 0.0
        %2853 = vmatprep.subr.mxu0 0.0
        %2854 = vmatpush2.msra.mxu0 0.0
        %2855 = vmatprep.subr.mxu0 0.0
        %2856 = vmatpush2.msra.mxu0 0.0
        %2857 = vmatprep.subr.mxu0 0.0
        %2858 = vmatpush2.msra.mxu0 0.0
        %2859 = vmatprep.subr.mxu0 0.0
        %2860 = vmatpush2.msra.mxu0 0.0
        %2861 = vmatprep.subr.mxu0 0.0
        %2862 = vmatpush2.msra.mxu0 0.0
        %2863 = vmatprep.subr.mxu0 0.0
        %2864 = vmatpush2.msra.mxu0 0.0
        %2865 = vmatprep.mubr.f32.mxu0 0.0
        %2866 = vmatmul.mubr.f32.gmra.mxu0 %v2693
        %v2867 = vpop.f32.mrf.mxu0
        %v2868 = vadd.f32 %v2799, %v2867
        %v2869 = vpop.f32.mrf.mxu0
        %2870 = vmatprep.mubr.f32.mxu0 0.0
        %2871 = vmatmul.mubr.f32.gmra.mxu0 %v2696
        %v2872 = vpop.f32.mrf.mxu0
        %v2873 = vadd.f32 %v2799, %v2872
        %v2874 = vpop.f32.mrf.mxu0
        %2875 = vmatprep.mubr.f32.mxu0 0.0
        %2876 = vmatmul.mubr.f32.gmra.mxu0 %v2699
        %v2877 = vpop.f32.mrf.mxu0
        %v2878 = vadd.f32 %v2799, %v2877
        %v2879 = vpop.f32.mrf.mxu0
        %2880 = vdwg.mxu0
        %s2881 = scalar_lea.vmem %s9, 64
        %v2882 = vld [vmem:[%s2881] sm:$0xff]
        %v2883 = vld [vmem:[%s2881 + $0x8] sm:$0xff]
        %v2884 = vld [vmem:[%s2881 + $0x10] sm:$0xff]
        %v2885 = vld [vmem:[%s2881 + $0x18] sm:$0xff]
        %v2886 = vld [vmem:[%s2881 + $0x20] sm:$0xff]
        %v2887 = vld [vmem:[%s2881 + $0x28] sm:$0xff]
        %v2888 = vld [vmem:[%s2881 + $0x30] sm:$0xff]
        %v2889 = vld [vmem:[%s2881 + $0x38] sm:$0xff]
        %s2890 = scalar_lea.vmem %s12, 1
        %v2891 = vld [vmem:[%s2890] sm:$0x1]
        %v2893 = vlaneseq
        %v2894 = vshrl.u32 %v2893, 7
        %v2895 = vsub.s32 0, %v2894
        %v2896 = vrot.slane %v2891, %v2895
        %2898 = vmatprep.subr.mxu0 0.0
        %2899 = vmatpush1.msra.mxu0 0.0
        %2900 = vmatprep.subr.mxu0 0.0
        %2901 = vmatpush1.msra.mxu0 0.0
        %2902 = vmatprep.subr.mxu0 0.0
        %2903 = vmatpush1.msra.mxu0 0.0
        %2904 = vmatprep.subr.mxu0 0.0
        %2905 = vmatpush1.msra.mxu0 0.0
        %2906 = vmatprep.subr.mxu0 0.0
        %2907 = vmatpush1.msra.mxu0 0.0
        %2908 = vmatprep.subr.mxu0 0.0
        %2909 = vmatpush1.msra.mxu0 0.0
        %2910 = vmatprep.subr.mxu0 0.0
        %2911 = vmatpush1.msra.mxu0 0.0
        %2912 = vmatprep.subr.mxu0 0.0
        %2913 = vmatpush1.msra.mxu0 0.0
        %2914 = vmatprep.subr.mxu0 0.0
        %2915 = vmatpush1.msra.mxu0 %v2889
        %2916 = vmatprep.subr.mxu0 0.0
        %2917 = vmatpush1.msra.mxu0 %v2888
        %2918 = vmatprep.subr.mxu0 0.0
        %2919 = vmatpush1.msra.mxu0 %v2887
        %2920 = vmatprep.subr.mxu0 0.0
        %2921 = vmatpush1.msra.mxu0 %v2886
        %2922 = vmatprep.subr.mxu0 0.0
        %2923 = vmatpush1.msra.mxu0 %v2885
        %2924 = vmatprep.subr.mxu0 0.0
        %2925 = vmatpush1.msra.mxu0 %v2884
        %2926 = vmatprep.subr.mxu0 0.0
        %2927 = vmatpush1.msra.mxu0 %v2883
        %2928 = vmatprep.subr.mxu0 0.0
        %2929 = vmatpush1.msra.mxu0 %v2882
        %2930 = vmatprep.subr.mxu0 0.0
        %2931 = vmatpush2.msra.mxu0 0.0
        %2932 = vmatprep.subr.mxu0 0.0
        %2933 = vmatpush2.msra.mxu0 0.0
        %2934 = vmatprep.subr.mxu0 0.0
        %2935 = vmatpush2.msra.mxu0 0.0
        %2936 = vmatprep.subr.mxu0 0.0
        %2937 = vmatpush2.msra.mxu0 0.0
        %2938 = vmatprep.subr.mxu0 0.0
        %2939 = vmatpush2.msra.mxu0 0.0
        %2940 = vmatprep.subr.mxu0 0.0
        %2941 = vmatpush2.msra.mxu0 0.0
        %2942 = vmatprep.subr.mxu0 0.0
        %2943 = vmatpush2.msra.mxu0 0.0
        %2944 = vmatprep.subr.mxu0 0.0
        %2945 = vmatpush2.msra.mxu0 0.0
        %2946 = vmatprep.subr.mxu0 0.0
        %2947 = vmatpush2.msra.mxu0 0.0
        %2948 = vmatprep.subr.mxu0 0.0
        %2949 = vmatpush2.msra.mxu0 0.0
        %2950 = vmatprep.subr.mxu0 0.0
        %2951 = vmatpush2.msra.mxu0 0.0
        %2952 = vmatprep.subr.mxu0 0.0
        %2953 = vmatpush2.msra.mxu0 0.0
        %2954 = vmatprep.subr.mxu0 0.0
        %2955 = vmatpush2.msra.mxu0 0.0
        %2956 = vmatprep.subr.mxu0 0.0
        %2957 = vmatpush2.msra.mxu0 0.0
        %2958 = vmatprep.subr.mxu0 0.0
        %2959 = vmatpush2.msra.mxu0 0.0
        %2960 = vmatprep.subr.mxu0 0.0
        %2961 = vmatpush2.msra.mxu0 0.0
        %2962 = vmatprep.mubr.f32.mxu0 0.0
        %2963 = vmatmul.mubr.f32.gmra.mxu0 %v2693
        %v2964 = vpop.f32.mrf.mxu0
        %v2965 = vadd.f32 %v2896, %v2964
        %v2966 = vpop.f32.mrf.mxu0
        %2967 = vmatprep.mubr.f32.mxu0 0.0
        %2968 = vmatmul.mubr.f32.gmra.mxu0 %v2696
        %v2969 = vpop.f32.mrf.mxu0
        %v2970 = vadd.f32 %v2896, %v2969
        %v2971 = vpop.f32.mrf.mxu0
        %2972 = vmatprep.mubr.f32.mxu0 0.0
        %2973 = vmatmul.mubr.f32.gmra.mxu0 %v2699
        %v2974 = vpop.f32.mrf.mxu0
        %v2975 = vadd.f32 %v2896, %v2974
        %v2976 = vpop.f32.mrf.mxu0
        %2977 = vdwg.mxu0
        %v2979 = vsel %vm1235, %v2781, 0
        %v2982 = vsel %vm1235, %v2782, 0
        %v2985 = vsel %vm1235, %v2783, 0
        %v2988 = vsel %vm1235, %v2868, 0
        %v2991 = vsel %vm1235, %v2873, 0
        %v2994 = vsel %vm1235, %v2878, 0
        %2996 = vmatprep.subr.mxu0 0.0
        %2997 = vmatpush1.xpose.msra.mxu0 0.0
        %2998 = vmatprep.subr.mxu0 0.0
        %2999 = vmatpush1.xpose.msra.mxu0 0.0
        %3000 = vmatprep.subr.mxu0 0.0
        %3001 = vmatpush1.xpose.msra.mxu0 0.0
        %3002 = vmatprep.subr.mxu0 0.0
        %3003 = vmatpush1.xpose.msra.mxu0 0.0
        %3004 = vmatprep.subr.mxu0 0.0
        %3005 = vmatpush1.xpose.msra.mxu0 0.0
        %3006 = vmatprep.subr.mxu0 0.0
        %3007 = vmatpush1.xpose.msra.mxu0 0.0
        %3008 = vmatprep.subr.mxu0 0.0
        %3009 = vmatpush1.xpose.msra.mxu0 0.0
        %3010 = vmatprep.subr.mxu0 0.0
        %3011 = vmatpush1.xpose.msra.mxu0 0.0
        %3012 = vmatprep.subr.mxu0 0.0
        %3013 = vmatpush1.xpose.msra.mxu0 0.0
        %3014 = vmatprep.subr.mxu0 0.0
        %3015 = vmatpush1.xpose.msra.mxu0 0.0
        %3016 = vmatprep.subr.mxu0 0.0
        %3017 = vmatpush1.xpose.msra.mxu0 0.0
        %3018 = vmatprep.subr.mxu0 0.0
        %3019 = vmatpush1.xpose.msra.mxu0 0.0
        %3020 = vmatprep.subr.mxu0 0.0
        %3021 = vmatpush1.xpose.msra.mxu0 0.0
        %3022 = vmatprep.subr.mxu0 0.0
        %3023 = vmatpush1.xpose.msra.mxu0 %v2994
        %3024 = vmatprep.subr.mxu0 0.0
        %3025 = vmatpush1.xpose.msra.mxu0 %v2991
        %3026 = vmatprep.subr.mxu0 0.0
        %3027 = vmatpush1.xpose.msra.mxu0 %v2988
        %3028 = vmatprep.subr.mxu0 0.0
        %3029 = vmatpush2.xpose.msra.mxu0 0.0
        %3030 = vmatprep.subr.mxu0 0.0
        %3031 = vmatpush2.xpose.msra.mxu0 0.0
        %3032 = vmatprep.subr.mxu0 0.0
        %3033 = vmatpush2.xpose.msra.mxu0 0.0
        %3034 = vmatprep.subr.mxu0 0.0
        %3035 = vmatpush2.xpose.msra.mxu0 0.0
        %3036 = vmatprep.subr.mxu0 0.0
        %3037 = vmatpush2.xpose.msra.mxu0 0.0
        %3038 = vmatprep.subr.mxu0 0.0
        %3039 = vmatpush2.xpose.msra.mxu0 0.0
        %3040 = vmatprep.subr.mxu0 0.0
        %3041 = vmatpush2.xpose.msra.mxu0 0.0
        %3042 = vmatprep.subr.mxu0 0.0
        %3043 = vmatpush2.xpose.msra.mxu0 0.0
        %3044 = vmatprep.subr.mxu0 0.0
        %3045 = vmatpush2.xpose.msra.mxu0 0.0
        %3046 = vmatprep.subr.mxu0 0.0
        %3047 = vmatpush2.xpose.msra.mxu0 0.0
        %3048 = vmatprep.subr.mxu0 0.0
        %3049 = vmatpush2.xpose.msra.mxu0 0.0
        %3050 = vmatprep.subr.mxu0 0.0
        %3051 = vmatpush2.xpose.msra.mxu0 0.0
        %3052 = vmatprep.subr.mxu0 0.0
        %3053 = vmatpush2.xpose.msra.mxu0 0.0
        %3054 = vmatprep.subr.mxu0 0.0
        %3055 = vmatpush2.xpose.msra.mxu0 0.0
        %3056 = vmatprep.subr.mxu0 0.0
        %3057 = vmatpush2.xpose.msra.mxu0 0.0
        %3058 = vmatprep.subr.mxu0 0.0
        %3059 = vmatpush2.xpose.msra.mxu0 0.0
        %3060 = vmatprep.mubr.f32.mxu0 0.0
        %3061 = vmatmul.mubr.f32.gmra.mxu0 %v2979
        %v3062 = vpop.f32.mrf.mxu0
        %v3063 = vadd.f32 0.0, %v3062
        %v3064 = vpop.f32.mrf.mxu0
        %3065 = vmatprep.mubr.f32.mxu0 0.0
        %3066 = vmatmul.mubr.f32.gmra.mxu0 %v2982
        %v3067 = vpop.f32.mrf.mxu0
        %v3068 = vadd.f32 0.0, %v3067
        %v3069 = vpop.f32.mrf.mxu0
        %3070 = vmatprep.mubr.f32.mxu0 0.0
        %3071 = vmatmul.mubr.f32.gmra.mxu0 %v2985
        %v3072 = vpop.f32.mrf.mxu0
        %v3073 = vadd.f32 0.0, %v3072
        %v3074 = vpop.f32.mrf.mxu0
        %3075 = vdwg.mxu0
        %v3076 = vsel %vm1334, %v3063, -inf
        %3077 = vmax.xlane.f32.xlu0 %v3076
        %v3078 = vpop.xlane.xlu0 %3077
        %v3079 = vsel %vm1334, %v3068, -inf
        %3080 = vmax.xlane.f32.xlu0 %v3079
        %v3081 = vpop.xlane.xlu0 %3080
        %v3082 = vsel %vm1341, %v3073, -inf
        %3083 = vmax.xlane.f32.xlu0 %v3082
        %v3084 = vpop.xlane.xlu0 %3083
        %v3085 = vsub.f32 %v3063, %v3078
        %v3086 = vsub.f32 %v3068, %v3081
        %v3087 = vsub.f32 %v3073, %v3084
        %v3088 = vmul.f32 %v3085, 1.442695
        %v3089 = vpow.pop %v3088
        %v3090 = vmul.f32 %v3086, 1.442695
        %v3091 = vpow.pop %v3090
        %v3092 = vmul.f32 %v3087, 1.442695
        %v3093 = vpow.pop %v3092
        %v3094 = vsel %vm1334, %v3089, 0.0
        %3095 = vadd.xlane.f32.xlu0 %v3094
        %v3096 = vpop.xlane.xlu0 %3095
        %v3097 = vsel %vm1334, %v3091, 0.0
        %3098 = vadd.xlane.f32.xlu0 %v3097
        %v3099 = vpop.xlane.xlu0 %3098
        %v3100 = vsel %vm1341, %v3093, 0.0
        %3101 = vadd.xlane.f32.xlu0 %v3100
        %v3102 = vpop.xlane.xlu0 %3101
        %v3103 = vrcp.pop %v3096
        %v3104 = vrcp.pop %v3099
        %v3105 = vrcp.pop %v3102
        %v3106 = vmul.f32 %v3089, %v3103
        %v3107 = vmul.f32 %v3091, %v3104
        %v3108 = vmul.f32 %v3093, %v3105
        %v3110 = vsel %vm1334, %v3106, 0
        %v3113 = vsel %vm1334, %v3107, 0
        %v3116 = vsel %vm1334, %v3108, 0
        %v3119 = vsel %vm862, %v2975, 0
        %3121 = vmatprep.subr.mxu0 0.0
        %3122 = vmatpush1.msra.mxu0 0.0
        %3123 = vmatprep.subr.mxu0 0.0
        %3124 = vmatpush1.msra.mxu0 0.0
        %3125 = vmatprep.subr.mxu0 0.0
        %3126 = vmatpush1.msra.mxu0 0.0
        %3127 = vmatprep.subr.mxu0 0.0
        %3128 = vmatpush1.msra.mxu0 0.0
        %3129 = vmatprep.subr.mxu0 0.0
        %3130 = vmatpush1.msra.mxu0 0.0
        %3131 = vmatprep.subr.mxu0 0.0
        %3132 = vmatpush1.msra.mxu0 0.0
        %3133 = vmatprep.subr.mxu0 0.0
        %3134 = vmatpush1.msra.mxu0 0.0
        %3135 = vmatprep.subr.mxu0 0.0
        %3136 = vmatpush1.msra.mxu0 0.0
        %3137 = vmatprep.subr.mxu0 0.0
        %3138 = vmatpush1.msra.mxu0 0.0
        %3139 = vmatprep.subr.mxu0 0.0
        %3140 = vmatpush1.msra.mxu0 0.0
        %3141 = vmatprep.subr.mxu0 0.0
        %3142 = vmatpush1.msra.mxu0 0.0
        %3143 = vmatprep.subr.mxu0 0.0
        %3144 = vmatpush1.msra.mxu0 0.0
        %3145 = vmatprep.subr.mxu0 0.0
        %3146 = vmatpush1.msra.mxu0 0.0
        %3147 = vmatprep.subr.mxu0 0.0
        %3148 = vmatpush1.msra.mxu0 %v3119
        %3149 = vmatprep.subr.mxu0 0.0
        %3150 = vmatpush1.msra.mxu0 %v2970
        %3151 = vmatprep.subr.mxu0 0.0
        %3152 = vmatpush1.msra.mxu0 %v2965
        %3153 = vmatprep.subr.mxu0 0.0
        %3154 = vmatpush2.msra.mxu0 0.0
        %3155 = vmatprep.subr.mxu0 0.0
        %3156 = vmatpush2.msra.mxu0 0.0
        %3157 = vmatprep.subr.mxu0 0.0
        %3158 = vmatpush2.msra.mxu0 0.0
        %3159 = vmatprep.subr.mxu0 0.0
        %3160 = vmatpush2.msra.mxu0 0.0
        %3161 = vmatprep.subr.mxu0 0.0
        %3162 = vmatpush2.msra.mxu0 0.0
        %3163 = vmatprep.subr.mxu0 0.0
        %3164 = vmatpush2.msra.mxu0 0.0
        %3165 = vmatprep.subr.mxu0 0.0
        %3166 = vmatpush2.msra.mxu0 0.0
        %3167 = vmatprep.subr.mxu0 0.0
        %3168 = vmatpush2.msra.mxu0 0.0
        %3169 = vmatprep.subr.mxu0 0.0
        %3170 = vmatpush2.msra.mxu0 0.0
        %3171 = vmatprep.subr.mxu0 0.0
        %3172 = vmatpush2.msra.mxu0 0.0
        %3173 = vmatprep.subr.mxu0 0.0
        %3174 = vmatpush2.msra.mxu0 0.0
        %3175 = vmatprep.subr.mxu0 0.0
        %3176 = vmatpush2.msra.mxu0 0.0
        %3177 = vmatprep.subr.mxu0 0.0
        %3178 = vmatpush2.msra.mxu0 0.0
        %3179 = vmatprep.subr.mxu0 0.0
        %3180 = vmatpush2.msra.mxu0 0.0
        %3181 = vmatprep.subr.mxu0 0.0
        %3182 = vmatpush2.msra.mxu0 0.0
        %3183 = vmatprep.subr.mxu0 0.0
        %3184 = vmatpush2.msra.mxu0 0.0
        %3185 = vmatprep.mubr.f32.mxu0 0.0
        %3186 = vmatmul.mubr.f32.gmra.mxu0 %v3110
        %v3187 = vpop.f32.mrf.mxu0
        %v3188 = vadd.f32 0.0, %v3187
        %v3189 = vpop.f32.mrf.mxu0
        %3190 = vmatprep.mubr.f32.mxu0 0.0
        %3191 = vmatmul.mubr.f32.gmra.mxu0 %v3113
        %v3192 = vpop.f32.mrf.mxu0
        %v3193 = vadd.f32 0.0, %v3192
        %v3194 = vpop.f32.mrf.mxu0
        %3195 = vmatprep.mubr.f32.mxu0 0.0
        %3196 = vmatmul.mubr.f32.gmra.mxu0 %v3116
        %v3197 = vpop.f32.mrf.mxu0
        %v3198 = vadd.f32 0.0, %v3197
        %v3199 = vpop.f32.mrf.mxu0
        %3200 = vdwg.mxu0
        %3201 = vrot.lane.b32.xlu0 %v2781, 112
        %v3202 = vpop.permute.xlu0 %3201
        %3203 = vrot.lane.b32.xlu0 %v2782, 112
        %v3204 = vpop.permute.xlu0 %3203
        %3205 = vrot.lane.b32.xlu0 %v2783, 112
        %v3206 = vpop.permute.xlu0 %3205
        %3207 = vrot.lane.b32.xlu0 %v2868, 112
        %v3208 = vpop.permute.xlu0 %3207
        %3209 = vrot.lane.b32.xlu0 %v2873, 112
        %v3210 = vpop.permute.xlu0 %3209
        %3211 = vrot.lane.b32.xlu0 %v2878, 112
        %v3212 = vpop.permute.xlu0 %3211
        %v3213 = vsel %vm1235, %v3202, 0
        %v3215 = vsel %vm1235, %v3204, 0
        %v3217 = vsel %vm1235, %v3206, 0
        %v3219 = vsel %vm1235, %v3208, 0
        %v3221 = vsel %vm1235, %v3210, 0
        %v3223 = vsel %vm1235, %v3212, 0
        %3225 = vmatprep.subr.mxu0 0.0
        %3226 = vmatpush1.xpose.msra.mxu0 0.0
        %3227 = vmatprep.subr.mxu0 0.0
        %3228 = vmatpush1.xpose.msra.mxu0 0.0
        %3229 = vmatprep.subr.mxu0 0.0
        %3230 = vmatpush1.xpose.msra.mxu0 0.0
        %3231 = vmatprep.subr.mxu0 0.0
        %3232 = vmatpush1.xpose.msra.mxu0 0.0
        %3233 = vmatprep.subr.mxu0 0.0
        %3234 = vmatpush1.xpose.msra.mxu0 0.0
        %3235 = vmatprep.subr.mxu0 0.0
        %3236 = vmatpush1.xpose.msra.mxu0 0.0
        %3237 = vmatprep.subr.mxu0 0.0
        %3238 = vmatpush1.xpose.msra.mxu0 0.0
        %3239 = vmatprep.subr.mxu0 0.0
        %3240 = vmatpush1.xpose.msra.mxu0 0.0
        %3241 = vmatprep.subr.mxu0 0.0
        %3242 = vmatpush1.xpose.msra.mxu0 0.0
        %3243 = vmatprep.subr.mxu0 0.0
        %3244 = vmatpush1.xpose.msra.mxu0 0.0
        %3245 = vmatprep.subr.mxu0 0.0
        %3246 = vmatpush1.xpose.msra.mxu0 0.0
        %3247 = vmatprep.subr.mxu0 0.0
        %3248 = vmatpush1.xpose.msra.mxu0 0.0
        %3249 = vmatprep.subr.mxu0 0.0
        %3250 = vmatpush1.xpose.msra.mxu0 0.0
        %3251 = vmatprep.subr.mxu0 0.0
        %3252 = vmatpush1.xpose.msra.mxu0 %v3223
        %3253 = vmatprep.subr.mxu0 0.0
        %3254 = vmatpush1.xpose.msra.mxu0 %v3221
        %3255 = vmatprep.subr.mxu0 0.0
        %3256 = vmatpush1.xpose.msra.mxu0 %v3219
        %3257 = vmatprep.subr.mxu0 0.0
        %3258 = vmatpush2.xpose.msra.mxu0 0.0
        %3259 = vmatprep.subr.mxu0 0.0
        %3260 = vmatpush2.xpose.msra.mxu0 0.0
        %3261 = vmatprep.subr.mxu0 0.0
        %3262 = vmatpush2.xpose.msra.mxu0 0.0
        %3263 = vmatprep.subr.mxu0 0.0
        %3264 = vmatpush2.xpose.msra.mxu0 0.0
        %3265 = vmatprep.subr.mxu0 0.0
        %3266 = vmatpush2.xpose.msra.mxu0 0.0
        %3267 = vmatprep.subr.mxu0 0.0
        %3268 = vmatpush2.xpose.msra.mxu0 0.0
        %3269 = vmatprep.subr.mxu0 0.0
        %3270 = vmatpush2.xpose.msra.mxu0 0.0
        %3271 = vmatprep.subr.mxu0 0.0
        %3272 = vmatpush2.xpose.msra.mxu0 0.0
        %3273 = vmatprep.subr.mxu0 0.0
        %3274 = vmatpush2.xpose.msra.mxu0 0.0
        %3275 = vmatprep.subr.mxu0 0.0
        %3276 = vmatpush2.xpose.msra.mxu0 0.0
        %3277 = vmatprep.subr.mxu0 0.0
        %3278 = vmatpush2.xpose.msra.mxu0 0.0
        %3279 = vmatprep.subr.mxu0 0.0
        %3280 = vmatpush2.xpose.msra.mxu0 0.0
        %3281 = vmatprep.subr.mxu0 0.0
        %3282 = vmatpush2.xpose.msra.mxu0 0.0
        %3283 = vmatprep.subr.mxu0 0.0
        %3284 = vmatpush2.xpose.msra.mxu0 0.0
        %3285 = vmatprep.subr.mxu0 0.0
        %3286 = vmatpush2.xpose.msra.mxu0 0.0
        %3287 = vmatprep.subr.mxu0 0.0
        %3288 = vmatpush2.xpose.msra.mxu0 0.0
        %3289 = vmatprep.mubr.f32.mxu0 0.0
        %3290 = vmatmul.mubr.f32.gmra.mxu0 %v3213
        %v3291 = vpop.f32.mrf.mxu0
        %v3292 = vadd.f32 0.0, %v3291
        %v3293 = vpop.f32.mrf.mxu0
        %3294 = vmatprep.mubr.f32.mxu0 0.0
        %3295 = vmatmul.mubr.f32.gmra.mxu0 %v3215
        %v3296 = vpop.f32.mrf.mxu0
        %v3297 = vadd.f32 0.0, %v3296
        %v3298 = vpop.f32.mrf.mxu0
        %3299 = vmatprep.mubr.f32.mxu0 0.0
        %3300 = vmatmul.mubr.f32.gmra.mxu0 %v3217
        %v3301 = vpop.f32.mrf.mxu0
        %v3302 = vadd.f32 0.0, %v3301
        %v3303 = vpop.f32.mrf.mxu0
        %3304 = vdwg.mxu0
        %v3305 = vsel %vm1334, %v3292, -inf
        %3306 = vmax.xlane.f32.xlu0 %v3305
        %v3307 = vpop.xlane.xlu0 %3306
        %v3308 = vsel %vm1334, %v3297, -inf
        %3309 = vmax.xlane.f32.xlu0 %v3308
        %v3310 = vpop.xlane.xlu0 %3309
        %v3311 = vsel %vm1341, %v3302, -inf
        %3312 = vmax.xlane.f32.xlu0 %v3311
        %v3313 = vpop.xlane.xlu0 %3312
        %v3314 = vsub.f32 %v3292, %v3307
        %v3315 = vsub.f32 %v3297, %v3310
        %v3316 = vsub.f32 %v3302, %v3313
        %v3317 = vmul.f32 %v3314, 1.442695
        %v3318 = vpow.pop %v3317
        %v3319 = vmul.f32 %v3315, 1.442695
        %v3320 = vpow.pop %v3319
        %v3321 = vmul.f32 %v3316, 1.442695
        %v3322 = vpow.pop %v3321
        %v3323 = vsel %vm1334, %v3318, 0.0
        %3324 = vadd.xlane.f32.xlu0 %v3323
        %v3325 = vpop.xlane.xlu0 %3324
        %v3326 = vsel %vm1334, %v3320, 0.0
        %3327 = vadd.xlane.f32.xlu0 %v3326
        %v3328 = vpop.xlane.xlu0 %3327
        %v3329 = vsel %vm1341, %v3322, 0.0
        %3330 = vadd.xlane.f32.xlu0 %v3329
        %v3331 = vpop.xlane.xlu0 %3330
        %v3332 = vrcp.pop %v3325
        %v3333 = vrcp.pop %v3328
        %v3334 = vrcp.pop %v3331
        %v3335 = vmul.f32 %v3318, %v3332
        %v3336 = vmul.f32 %v3320, %v3333
        %v3337 = vmul.f32 %v3322, %v3334
        %3340 = vrot.lane.b32.xlu0 %v2965, 112
        %v3341 = vpop.permute.xlu0 %3340
        %3342 = vrot.lane.b32.xlu0 %v2970, 112
        %v3343 = vpop.permute.xlu0 %3342
        %3344 = vrot.lane.b32.xlu0 %v2975, 112
        %v3345 = vpop.permute.xlu0 %3344
        %v3349 = vsel %vm1334, %v3335, 0
        %v3352 = vsel %vm1334, %v3336, 0
        %v3355 = vsel %vm1334, %v3337, 0
        %v3357 = vsel %vm862, %v3345, 0
        %3359 = vmatprep.subr.mxu0 0.0
        %3360 = vmatpush1.msra.mxu0 0.0
        %3361 = vmatprep.subr.mxu0 0.0
        %3362 = vmatpush1.msra.mxu0 0.0
        %3363 = vmatprep.subr.mxu0 0.0
        %3364 = vmatpush1.msra.mxu0 0.0
        %3365 = vmatprep.subr.mxu0 0.0
        %3366 = vmatpush1.msra.mxu0 0.0
        %3367 = vmatprep.subr.mxu0 0.0
        %3368 = vmatpush1.msra.mxu0 0.0
        %3369 = vmatprep.subr.mxu0 0.0
        %3370 = vmatpush1.msra.mxu0 0.0
        %3371 = vmatprep.subr.mxu0 0.0
        %3372 = vmatpush1.msra.mxu0 0.0
        %3373 = vmatprep.subr.mxu0 0.0
        %3374 = vmatpush1.msra.mxu0 0.0
        %3375 = vmatprep.subr.mxu0 0.0
        %3376 = vmatpush1.msra.mxu0 0.0
        %3377 = vmatprep.subr.mxu0 0.0
        %3378 = vmatpush1.msra.mxu0 0.0
        %3379 = vmatprep.subr.mxu0 0.0
        %3380 = vmatpush1.msra.mxu0 0.0
        %3381 = vmatprep.subr.mxu0 0.0
        %3382 = vmatpush1.msra.mxu0 0.0
        %3383 = vmatprep.subr.mxu0 0.0
        %3384 = vmatpush1.msra.mxu0 0.0
        %3385 = vmatprep.subr.mxu0 0.0
        %3386 = vmatpush1.msra.mxu0 %v3357
        %3387 = vmatprep.subr.mxu0 0.0
        %3388 = vmatpush1.msra.mxu0 %v3343
        %3389 = vmatprep.subr.mxu0 0.0
        %3390 = vmatpush1.msra.mxu0 %v3341
        %3391 = vmatprep.subr.mxu0 0.0
        %3392 = vmatpush2.msra.mxu0 0.0
        %3393 = vmatprep.subr.mxu0 0.0
        %3394 = vmatpush2.msra.mxu0 0.0
        %3395 = vmatprep.subr.mxu0 0.0
        %3396 = vmatpush2.msra.mxu0 0.0
        %3397 = vmatprep.subr.mxu0 0.0
        %3398 = vmatpush2.msra.mxu0 0.0
        %3399 = vmatprep.subr.mxu0 0.0
        %3400 = vmatpush2.msra.mxu0 0.0
        %3401 = vmatprep.subr.mxu0 0.0
        %3402 = vmatpush2.msra.mxu0 0.0
        %3403 = vmatprep.subr.mxu0 0.0
        %3404 = vmatpush2.msra.mxu0 0.0
        %3405 = vmatprep.subr.mxu0 0.0
        %3406 = vmatpush2.msra.mxu0 0.0
        %3407 = vmatprep.subr.mxu0 0.0
        %3408 = vmatpush2.msra.mxu0 0.0
        %3409 = vmatprep.subr.mxu0 0.0
        %3410 = vmatpush2.msra.mxu0 0.0
        %3411 = vmatprep.subr.mxu0 0.0
        %3412 = vmatpush2.msra.mxu0 0.0
        %3413 = vmatprep.subr.mxu0 0.0
        %3414 = vmatpush2.msra.mxu0 0.0
        %3415 = vmatprep.subr.mxu0 0.0
        %3416 = vmatpush2.msra.mxu0 0.0
        %3417 = vmatprep.subr.mxu0 0.0
        %3418 = vmatpush2.msra.mxu0 0.0
        %3419 = vmatprep.subr.mxu0 0.0
        %3420 = vmatpush2.msra.mxu0 0.0
        %3421 = vmatprep.subr.mxu0 0.0
        %3422 = vmatpush2.msra.mxu0 0.0
        %3423 = vmatprep.mubr.f32.mxu0 0.0
        %3424 = vmatmul.mubr.f32.gmra.mxu0 %v3349
        %v3425 = vpop.f32.mrf.mxu0
        %v3426 = vadd.f32 0.0, %v3425
        %v3427 = vpop.f32.mrf.mxu0
        %3428 = vmatprep.mubr.f32.mxu0 0.0
        %3429 = vmatmul.mubr.f32.gmra.mxu0 %v3352
        %v3430 = vpop.f32.mrf.mxu0
        %v3431 = vadd.f32 0.0, %v3430
        %v3432 = vpop.f32.mrf.mxu0
        %3433 = vmatprep.mubr.f32.mxu0 0.0
        %3434 = vmatmul.mubr.f32.gmra.mxu0 %v3355
        %v3435 = vpop.f32.mrf.mxu0
        %v3436 = vadd.f32 0.0, %v3435
        %v3437 = vpop.f32.mrf.mxu0
        %3438 = vdwg.mxu0
        %3439 = vrot.lane.b32.xlu0 %v2781, 96
        %v3440 = vpop.permute.xlu0 %3439
        %3441 = vrot.lane.b32.xlu0 %v2782, 96
        %v3442 = vpop.permute.xlu0 %3441
        %3443 = vrot.lane.b32.xlu0 %v2783, 96
        %v3444 = vpop.permute.xlu0 %3443
        %3445 = vrot.lane.b32.xlu0 %v2868, 96
        %v3446 = vpop.permute.xlu0 %3445
        %3447 = vrot.lane.b32.xlu0 %v2873, 96
        %v3448 = vpop.permute.xlu0 %3447
        %3449 = vrot.lane.b32.xlu0 %v2878, 96
        %v3450 = vpop.permute.xlu0 %3449
        %v3451 = vsel %vm1235, %v3440, 0
        %v3453 = vsel %vm1235, %v3442, 0
        %v3455 = vsel %vm1235, %v3444, 0
        %v3457 = vsel %vm1235, %v3446, 0
        %v3459 = vsel %vm1235, %v3448, 0
        %v3461 = vsel %vm1235, %v3450, 0
        %3463 = vmatprep.subr.mxu0 0.0
        %3464 = vmatpush1.xpose.msra.mxu0 0.0
        %3465 = vmatprep.subr.mxu0 0.0
        %3466 = vmatpush1.xpose.msra.mxu0 0.0
        %3467 = vmatprep.subr.mxu0 0.0
        %3468 = vmatpush1.xpose.msra.mxu0 0.0
        %3469 = vmatprep.subr.mxu0 0.0
        %3470 = vmatpush1.xpose.msra.mxu0 0.0
        %3471 = vmatprep.subr.mxu0 0.0
        %3472 = vmatpush1.xpose.msra.mxu0 0.0
        %3473 = vmatprep.subr.mxu0 0.0
        %3474 = vmatpush1.xpose.msra.mxu0 0.0
        %3475 = vmatprep.subr.mxu0 0.0
        %3476 = vmatpush1.xpose.msra.mxu0 0.0
        %3477 = vmatprep.subr.mxu0 0.0
        %3478 = vmatpush1.xpose.msra.mxu0 0.0
        %3479 = vmatprep.subr.mxu0 0.0
        %3480 = vmatpush1.xpose.msra.mxu0 0.0
        %3481 = vmatprep.subr.mxu0 0.0
        %3482 = vmatpush1.xpose.msra.mxu0 0.0
        %3483 = vmatprep.subr.mxu0 0.0
        %3484 = vmatpush1.xpose.msra.mxu0 0.0
        %3485 = vmatprep.subr.mxu0 0.0
        %3486 = vmatpush1.xpose.msra.mxu0 0.0
        %3487 = vmatprep.subr.mxu0 0.0
        %3488 = vmatpush1.xpose.msra.mxu0 0.0
        %3489 = vmatprep.subr.mxu0 0.0
        %3490 = vmatpush1.xpose.msra.mxu0 %v3461
        %3491 = vmatprep.subr.mxu0 0.0
        %3492 = vmatpush1.xpose.msra.mxu0 %v3459
        %3493 = vmatprep.subr.mxu0 0.0
        %3494 = vmatpush1.xpose.msra.mxu0 %v3457
        %3495 = vmatprep.subr.mxu0 0.0
        %3496 = vmatpush2.xpose.msra.mxu0 0.0
        %3497 = vmatprep.subr.mxu0 0.0
        %3498 = vmatpush2.xpose.msra.mxu0 0.0
        %3499 = vmatprep.subr.mxu0 0.0
        %3500 = vmatpush2.xpose.msra.mxu0 0.0
        %3501 = vmatprep.subr.mxu0 0.0
        %3502 = vmatpush2.xpose.msra.mxu0 0.0
        %3503 = vmatprep.subr.mxu0 0.0
        %3504 = vmatpush2.xpose.msra.mxu0 0.0
        %3505 = vmatprep.subr.mxu0 0.0
        %3506 = vmatpush2.xpose.msra.mxu0 0.0
        %3507 = vmatprep.subr.mxu0 0.0
        %3508 = vmatpush2.xpose.msra.mxu0 0.0
        %3509 = vmatprep.subr.mxu0 0.0
        %3510 = vmatpush2.xpose.msra.mxu0 0.0
        %3511 = vmatprep.subr.mxu0 0.0
        %3512 = vmatpush2.xpose.msra.mxu0 0.0
        %3513 = vmatprep.subr.mxu0 0.0
        %3514 = vmatpush2.xpose.msra.mxu0 0.0
        %3515 = vmatprep.subr.mxu0 0.0
        %3516 = vmatpush2.xpose.msra.mxu0 0.0
        %3517 = vmatprep.subr.mxu0 0.0
        %3518 = vmatpush2.xpose.msra.mxu0 0.0
        %3519 = vmatprep.subr.mxu0 0.0
        %3520 = vmatpush2.xpose.msra.mxu0 0.0
        %3521 = vmatprep.subr.mxu0 0.0
        %3522 = vmatpush2.xpose.msra.mxu0 0.0
        %3523 = vmatprep.subr.mxu0 0.0
        %3524 = vmatpush2.xpose.msra.mxu0 0.0
        %3525 = vmatprep.subr.mxu0 0.0
        %3526 = vmatpush2.xpose.msra.mxu0 0.0
        %3527 = vmatprep.mubr.f32.mxu0 0.0
        %3528 = vmatmul.mubr.f32.gmra.mxu0 %v3451
        %v3529 = vpop.f32.mrf.mxu0
        %v3530 = vadd.f32 0.0, %v3529
        %v3531 = vpop.f32.mrf.mxu0
        %3532 = vmatprep.mubr.f32.mxu0 0.0
        %3533 = vmatmul.mubr.f32.gmra.mxu0 %v3453
        %v3534 = vpop.f32.mrf.mxu0
        %v3535 = vadd.f32 0.0, %v3534
        %v3536 = vpop.f32.mrf.mxu0
        %3537 = vmatprep.mubr.f32.mxu0 0.0
        %3538 = vmatmul.mubr.f32.gmra.mxu0 %v3455
        %v3539 = vpop.f32.mrf.mxu0
        %v3540 = vadd.f32 0.0, %v3539
        %v3541 = vpop.f32.mrf.mxu0
        %3542 = vdwg.mxu0
        %v3543 = vsel %vm1334, %v3530, -inf
        %3544 = vmax.xlane.f32.xlu0 %v3543
        %v3545 = vpop.xlane.xlu0 %3544
        %v3546 = vsel %vm1334, %v3535, -inf
        %3547 = vmax.xlane.f32.xlu0 %v3546
        %v3548 = vpop.xlane.xlu0 %3547
        %v3549 = vsel %vm1341, %v3540, -inf
        %3550 = vmax.xlane.f32.xlu0 %v3549
        %v3551 = vpop.xlane.xlu0 %3550
        %v3552 = vsub.f32 %v3530, %v3545
        %v3553 = vsub.f32 %v3535, %v3548
        %v3554 = vsub.f32 %v3540, %v3551
        %v3555 = vmul.f32 %v3552, 1.442695
        %v3556 = vpow.pop %v3555
        %v3557 = vmul.f32 %v3553, 1.442695
        %v3558 = vpow.pop %v3557
        %v3559 = vmul.f32 %v3554, 1.442695
        %v3560 = vpow.pop %v3559
        %v3561 = vsel %vm1334, %v3556, 0.0
        %3562 = vadd.xlane.f32.xlu0 %v3561
        %v3563 = vpop.xlane.xlu0 %3562
        %v3564 = vsel %vm1334, %v3558, 0.0
        %3565 = vadd.xlane.f32.xlu0 %v3564
        %v3566 = vpop.xlane.xlu0 %3565
        %v3567 = vsel %vm1341, %v3560, 0.0
        %3568 = vadd.xlane.f32.xlu0 %v3567
        %v3569 = vpop.xlane.xlu0 %3568
        %v3570 = vrcp.pop %v3563
        %v3571 = vrcp.pop %v3566
        %v3572 = vrcp.pop %v3569
        %v3573 = vmul.f32 %v3556, %v3570
        %v3574 = vmul.f32 %v3558, %v3571
        %v3575 = vmul.f32 %v3560, %v3572
        %3576 = vrot.lane.b32.xlu0 %v2965, 96
        %v3577 = vpop.permute.xlu0 %3576
        %3578 = vrot.lane.b32.xlu0 %v2970, 96
        %v3579 = vpop.permute.xlu0 %3578
        %3580 = vrot.lane.b32.xlu0 %v2975, 96
        %v3581 = vpop.permute.xlu0 %3580
        %v3585 = vsel %vm1334, %v3573, 0
        %v3588 = vsel %vm1334, %v3574, 0
        %v3591 = vsel %vm1334, %v3575, 0
        %v3593 = vsel %vm862, %v3581, 0
        %3595 = vmatprep.subr.mxu0 0.0
        %3596 = vmatpush1.msra.mxu0 0.0
        %3597 = vmatprep.subr.mxu0 0.0
        %3598 = vmatpush1.msra.mxu0 0.0
        %3599 = vmatprep.subr.mxu0 0.0
        %3600 = vmatpush1.msra.mxu0 0.0
        %3601 = vmatprep.subr.mxu0 0.0
        %3602 = vmatpush1.msra.mxu0 0.0
        %3603 = vmatprep.subr.mxu0 0.0
        %3604 = vmatpush1.msra.mxu0 0.0
        %3605 = vmatprep.subr.mxu0 0.0
        %3606 = vmatpush1.msra.mxu0 0.0
        %3607 = vmatprep.subr.mxu0 0.0
        %3608 = vmatpush1.msra.mxu0 0.0
        %3609 = vmatprep.subr.mxu0 0.0
        %3610 = vmatpush1.msra.mxu0 0.0
        %3611 = vmatprep.subr.mxu0 0.0
        %3612 = vmatpush1.msra.mxu0 0.0
        %3613 = vmatprep.subr.mxu0 0.0
        %3614 = vmatpush1.msra.mxu0 0.0
        %3615 = vmatprep.subr.mxu0 0.0
        %3616 = vmatpush1.msra.mxu0 0.0
        %3617 = vmatprep.subr.mxu0 0.0
        %3618 = vmatpush1.msra.mxu0 0.0
        %3619 = vmatprep.subr.mxu0 0.0
        %3620 = vmatpush1.msra.mxu0 0.0
        %3621 = vmatprep.subr.mxu0 0.0
        %3622 = vmatpush1.msra.mxu0 %v3593
        %3623 = vmatprep.subr.mxu0 0.0
        %3624 = vmatpush1.msra.mxu0 %v3579
        %3625 = vmatprep.subr.mxu0 0.0
        %3626 = vmatpush1.msra.mxu0 %v3577
        %3627 = vmatprep.subr.mxu0 0.0
        %3628 = vmatpush2.msra.mxu0 0.0
        %3629 = vmatprep.subr.mxu0 0.0
        %3630 = vmatpush2.msra.mxu0 0.0
        %3631 = vmatprep.subr.mxu0 0.0
        %3632 = vmatpush2.msra.mxu0 0.0
        %3633 = vmatprep.subr.mxu0 0.0
        %3634 = vmatpush2.msra.mxu0 0.0
        %3635 = vmatprep.subr.mxu0 0.0
        %3636 = vmatpush2.msra.mxu0 0.0
        %3637 = vmatprep.subr.mxu0 0.0
        %3638 = vmatpush2.msra.mxu0 0.0
        %3639 = vmatprep.subr.mxu0 0.0
        %3640 = vmatpush2.msra.mxu0 0.0
        %3641 = vmatprep.subr.mxu0 0.0
        %3642 = vmatpush2.msra.mxu0 0.0
        %3643 = vmatprep.subr.mxu0 0.0
        %3644 = vmatpush2.msra.mxu0 0.0
        %3645 = vmatprep.subr.mxu0 0.0
        %3646 = vmatpush2.msra.mxu0 0.0
        %3647 = vmatprep.subr.mxu0 0.0
        %3648 = vmatpush2.msra.mxu0 0.0
        %3649 = vmatprep.subr.mxu0 0.0
        %3650 = vmatpush2.msra.mxu0 0.0
        %3651 = vmatprep.subr.mxu0 0.0
        %3652 = vmatpush2.msra.mxu0 0.0
        %3653 = vmatprep.subr.mxu0 0.0
        %3654 = vmatpush2.msra.mxu0 0.0
        %3655 = vmatprep.subr.mxu0 0.0
        %3656 = vmatpush2.msra.mxu0 0.0
        %3657 = vmatprep.subr.mxu0 0.0
        %3658 = vmatpush2.msra.mxu0 0.0
        %3659 = vmatprep.mubr.f32.mxu0 0.0
        %3660 = vmatmul.mubr.f32.gmra.mxu0 %v3585
        %v3661 = vpop.f32.mrf.mxu0
        %v3662 = vadd.f32 0.0, %v3661
        %v3663 = vpop.f32.mrf.mxu0
        %3664 = vmatprep.mubr.f32.mxu0 0.0
        %3665 = vmatmul.mubr.f32.gmra.mxu0 %v3588
        %v3666 = vpop.f32.mrf.mxu0
        %v3667 = vadd.f32 0.0, %v3666
        %v3668 = vpop.f32.mrf.mxu0
        %3669 = vmatprep.mubr.f32.mxu0 0.0
        %3670 = vmatmul.mubr.f32.gmra.mxu0 %v3591
        %v3671 = vpop.f32.mrf.mxu0
        %v3672 = vadd.f32 0.0, %v3671
        %v3673 = vpop.f32.mrf.mxu0
        %3674 = vdwg.mxu0
        %3675 = vrot.lane.b32.xlu0 %v2781, 80
        %v3676 = vpop.permute.xlu0 %3675
        %3677 = vrot.lane.b32.xlu0 %v2782, 80
        %v3678 = vpop.permute.xlu0 %3677
        %3679 = vrot.lane.b32.xlu0 %v2783, 80
        %v3680 = vpop.permute.xlu0 %3679
        %3681 = vrot.lane.b32.xlu0 %v2868, 80
        %v3682 = vpop.permute.xlu0 %3681
        %3683 = vrot.lane.b32.xlu0 %v2873, 80
        %v3684 = vpop.permute.xlu0 %3683
        %3685 = vrot.lane.b32.xlu0 %v2878, 80
        %v3686 = vpop.permute.xlu0 %3685
        %v3687 = vsel %vm1235, %v3676, 0
        %v3689 = vsel %vm1235, %v3678, 0
        %v3691 = vsel %vm1235, %v3680, 0
        %v3693 = vsel %vm1235, %v3682, 0
        %v3695 = vsel %vm1235, %v3684, 0
        %v3697 = vsel %vm1235, %v3686, 0
        %3699 = vmatprep.subr.mxu0 0.0
        %3700 = vmatpush1.xpose.msra.mxu0 0.0
        %3701 = vmatprep.subr.mxu0 0.0
        %3702 = vmatpush1.xpose.msra.mxu0 0.0
        %3703 = vmatprep.subr.mxu0 0.0
        %3704 = vmatpush1.xpose.msra.mxu0 0.0
        %3705 = vmatprep.subr.mxu0 0.0
        %3706 = vmatpush1.xpose.msra.mxu0 0.0
        %3707 = vmatprep.subr.mxu0 0.0
        %3708 = vmatpush1.xpose.msra.mxu0 0.0
        %3709 = vmatprep.subr.mxu0 0.0
        %3710 = vmatpush1.xpose.msra.mxu0 0.0
        %3711 = vmatprep.subr.mxu0 0.0
        %3712 = vmatpush1.xpose.msra.mxu0 0.0
        %3713 = vmatprep.subr.mxu0 0.0
        %3714 = vmatpush1.xpose.msra.mxu0 0.0
        %3715 = vmatprep.subr.mxu0 0.0
        %3716 = vmatpush1.xpose.msra.mxu0 0.0
        %3717 = vmatprep.subr.mxu0 0.0
        %3718 = vmatpush1.xpose.msra.mxu0 0.0
        %3719 = vmatprep.subr.mxu0 0.0
        %3720 = vmatpush1.xpose.msra.mxu0 0.0
        %3721 = vmatprep.subr.mxu0 0.0
        %3722 = vmatpush1.xpose.msra.mxu0 0.0
        %3723 = vmatprep.subr.mxu0 0.0
        %3724 = vmatpush1.xpose.msra.mxu0 0.0
        %3725 = vmatprep.subr.mxu0 0.0
        %3726 = vmatpush1.xpose.msra.mxu0 %v3697
        %3727 = vmatprep.subr.mxu0 0.0
        %3728 = vmatpush1.xpose.msra.mxu0 %v3695
        %3729 = vmatprep.subr.mxu0 0.0
        %3730 = vmatpush1.xpose.msra.mxu0 %v3693
        %3731 = vmatprep.subr.mxu0 0.0
        %3732 = vmatpush2.xpose.msra.mxu0 0.0
        %3733 = vmatprep.subr.mxu0 0.0
        %3734 = vmatpush2.xpose.msra.mxu0 0.0
        %3735 = vmatprep.subr.mxu0 0.0
        %3736 = vmatpush2.xpose.msra.mxu0 0.0
        %3737 = vmatprep.subr.mxu0 0.0
        %3738 = vmatpush2.xpose.msra.mxu0 0.0
        %3739 = vmatprep.subr.mxu0 0.0
        %3740 = vmatpush2.xpose.msra.mxu0 0.0
        %3741 = vmatprep.subr.mxu0 0.0
        %3742 = vmatpush2.xpose.msra.mxu0 0.0
        %3743 = vmatprep.subr.mxu0 0.0
        %3744 = vmatpush2.xpose.msra.mxu0 0.0
        %3745 = vmatprep.subr.mxu0 0.0
        %3746 = vmatpush2.xpose.msra.mxu0 0.0
        %3747 = vmatprep.subr.mxu0 0.0
        %3748 = vmatpush2.xpose.msra.mxu0 0.0
        %3749 = vmatprep.subr.mxu0 0.0
        %3750 = vmatpush2.xpose.msra.mxu0 0.0
        %3751 = vmatprep.subr.mxu0 0.0
        %3752 = vmatpush2.xpose.msra.mxu0 0.0
        %3753 = vmatprep.subr.mxu0 0.0
        %3754 = vmatpush2.xpose.msra.mxu0 0.0
        %3755 = vmatprep.subr.mxu0 0.0
        %3756 = vmatpush2.xpose.msra.mxu0 0.0
        %3757 = vmatprep.subr.mxu0 0.0
        %3758 = vmatpush2.xpose.msra.mxu0 0.0
        %3759 = vmatprep.subr.mxu0 0.0
        %3760 = vmatpush2.xpose.msra.mxu0 0.0
        %3761 = vmatprep.subr.mxu0 0.0
        %3762 = vmatpush2.xpose.msra.mxu0 0.0
        %3763 = vmatprep.mubr.f32.mxu0 0.0
        %3764 = vmatmul.mubr.f32.gmra.mxu0 %v3687
        %v3765 = vpop.f32.mrf.mxu0
        %v3766 = vadd.f32 0.0, %v3765
        %v3767 = vpop.f32.mrf.mxu0
        %3768 = vmatprep.mubr.f32.mxu0 0.0
        %3769 = vmatmul.mubr.f32.gmra.mxu0 %v3689
        %v3770 = vpop.f32.mrf.mxu0
        %v3771 = vadd.f32 0.0, %v3770
        %v3772 = vpop.f32.mrf.mxu0
        %3773 = vmatprep.mubr.f32.mxu0 0.0
        %3774 = vmatmul.mubr.f32.gmra.mxu0 %v3691
        %v3775 = vpop.f32.mrf.mxu0
        %v3776 = vadd.f32 0.0, %v3775
        %v3777 = vpop.f32.mrf.mxu0
        %3778 = vdwg.mxu0
        %v3779 = vsel %vm1334, %v3766, -inf
        %3780 = vmax.xlane.f32.xlu0 %v3779
        %v3781 = vpop.xlane.xlu0 %3780
        %v3782 = vsel %vm1334, %v3771, -inf
        %3783 = vmax.xlane.f32.xlu0 %v3782
        %v3784 = vpop.xlane.xlu0 %3783
        %v3785 = vsel %vm1341, %v3776, -inf
        %3786 = vmax.xlane.f32.xlu0 %v3785
        %v3787 = vpop.xlane.xlu0 %3786
        %v3788 = vsub.f32 %v3766, %v3781
        %v3789 = vsub.f32 %v3771, %v3784
        %v3790 = vsub.f32 %v3776, %v3787
        %v3791 = vmul.f32 %v3788, 1.442695
        %v3792 = vpow.pop %v3791
        %v3793 = vmul.f32 %v3789, 1.442695
        %v3794 = vpow.pop %v3793
        %v3795 = vmul.f32 %v3790, 1.442695
        %v3796 = vpow.pop %v3795
        %v3797 = vsel %vm1334, %v3792, 0.0
        %3798 = vadd.xlane.f32.xlu0 %v3797
        %v3799 = vpop.xlane.xlu0 %3798
        %v3800 = vsel %vm1334, %v3794, 0.0
        %3801 = vadd.xlane.f32.xlu0 %v3800
        %v3802 = vpop.xlane.xlu0 %3801
        %v3803 = vsel %vm1341, %v3796, 0.0
        %3804 = vadd.xlane.f32.xlu0 %v3803
        %v3805 = vpop.xlane.xlu0 %3804
        %v3806 = vrcp.pop %v3799
        %v3807 = vrcp.pop %v3802
        %v3808 = vrcp.pop %v3805
        %v3809 = vmul.f32 %v3792, %v3806
        %v3810 = vmul.f32 %v3794, %v3807
        %v3811 = vmul.f32 %v3796, %v3808
        %3812 = vrot.lane.b32.xlu0 %v2965, 80
        %v3813 = vpop.permute.xlu0 %3812
        %3814 = vrot.lane.b32.xlu0 %v2970, 80
        %v3815 = vpop.permute.xlu0 %3814
        %3816 = vrot.lane.b32.xlu0 %v2975, 80
        %v3817 = vpop.permute.xlu0 %3816
        %v3821 = vsel %vm1334, %v3809, 0
        %v3824 = vsel %vm1334, %v3810, 0
        %v3827 = vsel %vm1334, %v3811, 0
        %v3829 = vsel %vm862, %v3817, 0
        %3831 = vmatprep.subr.mxu0 0.0
        %3832 = vmatpush1.msra.mxu0 0.0
        %3833 = vmatprep.subr.mxu0 0.0
        %3834 = vmatpush1.msra.mxu0 0.0
        %3835 = vmatprep.subr.mxu0 0.0
        %3836 = vmatpush1.msra.mxu0 0.0
        %3837 = vmatprep.subr.mxu0 0.0
        %3838 = vmatpush1.msra.mxu0 0.0
        %3839 = vmatprep.subr.mxu0 0.0
        %3840 = vmatpush1.msra.mxu0 0.0
        %3841 = vmatprep.subr.mxu0 0.0
        %3842 = vmatpush1.msra.mxu0 0.0
        %3843 = vmatprep.subr.mxu0 0.0
        %3844 = vmatpush1.msra.mxu0 0.0
        %3845 = vmatprep.subr.mxu0 0.0
        %3846 = vmatpush1.msra.mxu0 0.0
        %3847 = vmatprep.subr.mxu0 0.0
        %3848 = vmatpush1.msra.mxu0 0.0
        %3849 = vmatprep.subr.mxu0 0.0
        %3850 = vmatpush1.msra.mxu0 0.0
        %3851 = vmatprep.subr.mxu0 0.0
        %3852 = vmatpush1.msra.mxu0 0.0
        %3853 = vmatprep.subr.mxu0 0.0
        %3854 = vmatpush1.msra.mxu0 0.0
        %3855 = vmatprep.subr.mxu0 0.0
        %3856 = vmatpush1.msra.mxu0 0.0
        %3857 = vmatprep.subr.mxu0 0.0
        %3858 = vmatpush1.msra.mxu0 %v3829
        %3859 = vmatprep.subr.mxu0 0.0
        %3860 = vmatpush1.msra.mxu0 %v3815
        %3861 = vmatprep.subr.mxu0 0.0
        %3862 = vmatpush1.msra.mxu0 %v3813
        %3863 = vmatprep.subr.mxu0 0.0
        %3864 = vmatpush2.msra.mxu0 0.0
        %3865 = vmatprep.subr.mxu0 0.0
        %3866 = vmatpush2.msra.mxu0 0.0
        %3867 = vmatprep.subr.mxu0 0.0
        %3868 = vmatpush2.msra.mxu0 0.0
        %3869 = vmatprep.subr.mxu0 0.0
        %3870 = vmatpush2.msra.mxu0 0.0
        %3871 = vmatprep.subr.mxu0 0.0
        %3872 = vmatpush2.msra.mxu0 0.0
        %3873 = vmatprep.subr.mxu0 0.0
        %3874 = vmatpush2.msra.mxu0 0.0
        %3875 = vmatprep.subr.mxu0 0.0
        %3876 = vmatpush2.msra.mxu0 0.0
        %3877 = vmatprep.subr.mxu0 0.0
        %3878 = vmatpush2.msra.mxu0 0.0
        %3879 = vmatprep.subr.mxu0 0.0
        %3880 = vmatpush2.msra.mxu0 0.0
        %3881 = vmatprep.subr.mxu0 0.0
        %3882 = vmatpush2.msra.mxu0 0.0
        %3883 = vmatprep.subr.mxu0 0.0
        %3884 = vmatpush2.msra.mxu0 0.0
        %3885 = vmatprep.subr.mxu0 0.0
        %3886 = vmatpush2.msra.mxu0 0.0
        %3887 = vmatprep.subr.mxu0 0.0
        %3888 = vmatpush2.msra.mxu0 0.0
        %3889 = vmatprep.subr.mxu0 0.0
        %3890 = vmatpush2.msra.mxu0 0.0
        %3891 = vmatprep.subr.mxu0 0.0
        %3892 = vmatpush2.msra.mxu0 0.0
        %3893 = vmatprep.subr.mxu0 0.0
        %3894 = vmatpush2.msra.mxu0 0.0
        %3895 = vmatprep.mubr.f32.mxu0 0.0
        %3896 = vmatmul.mubr.f32.gmra.mxu0 %v3821
        %v3897 = vpop.f32.mrf.mxu0
        %v3898 = vadd.f32 0.0, %v3897
        %v3899 = vpop.f32.mrf.mxu0
        %3900 = vmatprep.mubr.f32.mxu0 0.0
        %3901 = vmatmul.mubr.f32.gmra.mxu0 %v3824
        %v3902 = vpop.f32.mrf.mxu0
        %v3903 = vadd.f32 0.0, %v3902
        %v3904 = vpop.f32.mrf.mxu0
        %3905 = vmatprep.mubr.f32.mxu0 0.0
        %3906 = vmatmul.mubr.f32.gmra.mxu0 %v3827
        %v3907 = vpop.f32.mrf.mxu0
        %v3908 = vadd.f32 0.0, %v3907
        %v3909 = vpop.f32.mrf.mxu0
        %3910 = vdwg.mxu0
        %3914 = vrot.lane.b32.xlu0 %v3426, 16
        %v3915 = vpop.permute.xlu0 %3914
        %3916 = vrot.lane.b32.xlu0 %v3431, 16
        %v3917 = vpop.permute.xlu0 %3916
        %3918 = vrot.lane.b32.xlu0 %v3436, 16
        %v3919 = vpop.permute.xlu0 %3918
        %3926 = vrot.lane.b32.xlu0 %v3662, 32
        %v3927 = vpop.permute.xlu0 %3926
        %3928 = vrot.lane.b32.xlu0 %v3667, 32
        %v3929 = vpop.permute.xlu0 %3928
        %3930 = vrot.lane.b32.xlu0 %v3672, 32
        %v3931 = vpop.permute.xlu0 %3930
        %3938 = vrot.lane.b32.xlu0 %v3898, 48
        %v3939 = vpop.permute.xlu0 %3938
        %3940 = vrot.lane.b32.xlu0 %v3903, 48
        %v3941 = vpop.permute.xlu0 %3940
        %3942 = vrot.lane.b32.xlu0 %v3908, 48
        %v3943 = vpop.permute.xlu0 %3942
        %v3947 = vsel %vm1235, %v3188, %v3915
        %v3948 = vsel %vm1235, %v3193, %v3917
        %v3949 = vsel %vm1235, %v3198, %v3919
        %v3950 = vsel %vm2210, %v3947, %v3927
        %v3951 = vsel %vm2210, %v3948, %v3929
        %v3952 = vsel %vm2210, %v3949, %v3931
        %v3953 = vsel %vm777, %v3950, %v3939
        %v3954 = vsel %vm777, %v3951, %v3941
        %v3955 = vsel %vm777, %v3952, %v3943
        %s3956 = scalar_lea.vmem %s13, 64
        %v3957 = vld [vmem:[%s3956] sm:$0xff]
        %v3958 = vld [vmem:[%s3956 + $0x8] sm:$0xff]
        %v3959 = vld [vmem:[%s3956 + $0x10] sm:$0xff]
        %v3960 = vld [vmem:[%s3956 + $0x18] sm:$0xff]
        %v3961 = vld [vmem:[%s3956 + $0x20] sm:$0xff]
        %v3962 = vld [vmem:[%s3956 + $0x28] sm:$0xff]
        %v3963 = vld [vmem:[%s3956 + $0x30] sm:$0xff]
        %v3964 = vld [vmem:[%s3956 + $0x38] sm:$0xff]
        %v3966 = vsel %vm878, %v3953, 0
        %v3969 = vsel %vm878, %v3954, 0
        %v3972 = vsel %vm878, %v3955, 0
        %3974 = vmatprep.subr.mxu0 0.0
        %3975 = vmatpush1.msra.mxu0 0.0
        %3976 = vmatprep.subr.mxu0 0.0
        %3977 = vmatpush1.msra.mxu0 0.0
        %3978 = vmatprep.subr.mxu0 0.0
        %3979 = vmatpush1.msra.mxu0 0.0
        %3980 = vmatprep.subr.mxu0 0.0
        %3981 = vmatpush1.msra.mxu0 0.0
        %3982 = vmatprep.subr.mxu0 0.0
        %3983 = vmatpush1.msra.mxu0 0.0
        %3984 = vmatprep.subr.mxu0 0.0
        %3985 = vmatpush1.msra.mxu0 0.0
        %3986 = vmatprep.subr.mxu0 0.0
        %3987 = vmatpush1.msra.mxu0 0.0
        %3988 = vmatprep.subr.mxu0 0.0
        %3989 = vmatpush1.msra.mxu0 0.0
        %3990 = vmatprep.subr.mxu0 0.0
        %3991 = vmatpush1.msra.mxu0 %v3964
        %3992 = vmatprep.subr.mxu0 0.0
        %3993 = vmatpush1.msra.mxu0 %v3963
        %3994 = vmatprep.subr.mxu0 0.0
        %3995 = vmatpush1.msra.mxu0 %v3962
        %3996 = vmatprep.subr.mxu0 0.0
        %3997 = vmatpush1.msra.mxu0 %v3961
        %3998 = vmatprep.subr.mxu0 0.0
        %3999 = vmatpush1.msra.mxu0 %v3960
        %4000 = vmatprep.subr.mxu0 0.0
        %4001 = vmatpush1.msra.mxu0 %v3959
        %4002 = vmatprep.subr.mxu0 0.0
        %4003 = vmatpush1.msra.mxu0 %v3958
        %4004 = vmatprep.subr.mxu0 0.0
        %4005 = vmatpush1.msra.mxu0 %v3957
        %4006 = vmatprep.subr.mxu0 0.0
        %4007 = vmatpush2.msra.mxu0 0.0
        %4008 = vmatprep.subr.mxu0 0.0
        %4009 = vmatpush2.msra.mxu0 0.0
        %4010 = vmatprep.subr.mxu0 0.0
        %4011 = vmatpush2.msra.mxu0 0.0
        %4012 = vmatprep.subr.mxu0 0.0
        %4013 = vmatpush2.msra.mxu0 0.0
        %4014 = vmatprep.subr.mxu0 0.0
        %4015 = vmatpush2.msra.mxu0 0.0
        %4016 = vmatprep.subr.mxu0 0.0
        %4017 = vmatpush2.msra.mxu0 0.0
        %4018 = vmatprep.subr.mxu0 0.0
        %4019 = vmatpush2.msra.mxu0 0.0
        %4020 = vmatprep.subr.mxu0 0.0
        %4021 = vmatpush2.msra.mxu0 0.0
        %4022 = vmatprep.subr.mxu0 0.0
        %4023 = vmatpush2.msra.mxu0 0.0
        %4024 = vmatprep.subr.mxu0 0.0
        %4025 = vmatpush2.msra.mxu0 0.0
        %4026 = vmatprep.subr.mxu0 0.0
        %4027 = vmatpush2.msra.mxu0 0.0
        %4028 = vmatprep.subr.mxu0 0.0
        %4029 = vmatpush2.msra.mxu0 0.0
        %4030 = vmatprep.subr.mxu0 0.0
        %4031 = vmatpush2.msra.mxu0 0.0
        %4032 = vmatprep.subr.mxu0 0.0
        %4033 = vmatpush2.msra.mxu0 0.0
        %4034 = vmatprep.subr.mxu0 0.0
        %4035 = vmatpush2.msra.mxu0 0.0
        %4036 = vmatprep.subr.mxu0 0.0
        %4037 = vmatpush2.msra.mxu0 0.0
        %4038 = vmatprep.mubr.f32.mxu0 0.0
        %4039 = vmatmul.mubr.f32.gmra.mxu0 %v3966
        %v4040 = vpop.f32.mrf.mxu0
        %v4041 = vadd.f32 0.0, %v4040
        %v4042 = vpop.f32.mrf.mxu0
        %4043 = vmatprep.mubr.f32.mxu0 0.0
        %4044 = vmatmul.mubr.f32.gmra.mxu0 %v3969
        %v4045 = vpop.f32.mrf.mxu0
        %v4046 = vadd.f32 0.0, %v4045
        %v4047 = vpop.f32.mrf.mxu0
        %4048 = vmatprep.mubr.f32.mxu0 0.0
        %4049 = vmatmul.mubr.f32.gmra.mxu0 %v3972
        %v4050 = vpop.f32.mrf.mxu0
        %v4051 = vadd.f32 0.0, %v4050
        %v4052 = vpop.f32.mrf.mxu0
        %4053 = vdwg.mxu0
        %v4054 = vadd.f32 %v2611, %v4041
        %v4055 = vadd.f32 %v2612, %v4046
        %v4056 = vadd.f32 %v2613, %v4051
        %s4057 = scalar_lea.vmem %s14, 1
        %v4058 = vld [vmem:[%s4057] sm:$0x1]
        %v4060 = vlaneseq
        %v4061 = vshrl.u32 %v4060, 7
        %v4062 = vsub.s32 0, %v4061
        %v4063 = vrot.slane %v4058, %v4062
        %v4065 = vadd.f32 %v4054, %v4063
        %v4066 = vadd.f32 %v4055, %v4063
        %v4067 = vadd.f32 %v4056, %v4063
        %s4068 = scalar_lea.vmem %s15, 1
        %v4069 = vld [vmem:[%s4068] sm:$0x1]
        %s4070 = scalar_lea.vmem %s16, 1
        %v4071 = vld [vmem:[%s4070] sm:$0x1]
        %v4072 = vsel %vm878, %v4065, 0.0
        %4073 = vadd.xlane.f32.xlu0 %v4072
        %v4074 = vpop.xlane.xlu0 %4073
        %v4075 = vsel %vm878, %v4066, 0.0
        %4076 = vadd.xlane.f32.xlu0 %v4075
        %v4077 = vpop.xlane.xlu0 %4076
        %v4078 = vsel %vm885, %v4067, 0.0
        %4079 = vadd.xlane.f32.xlu0 %v4078
        %v4080 = vpop.xlane.xlu0 %4079
        %v4081 = vmul.f32 %v4074, %v889
        %v4082 = vmul.f32 %v4077, %v889
        %v4083 = vmul.f32 %v4080, %v889
        %v4084 = vsub.f32 %v4065, %v4081
        %v4085 = vsub.f32 %v4066, %v4082
        %v4086 = vsub.f32 %v4067, %v4083
        %v4087 = vmul.f32 %v4084, %v4084
        %v4088 = vmul.f32 %v4085, %v4085
        %v4089 = vmul.f32 %v4086, %v4086
        %v4090 = vsel %vm878, %v4087, 0.0
        %4091 = vadd.xlane.f32.xlu0 %v4090
        %v4092 = vpop.xlane.xlu0 %4091
        %v4093 = vsel %vm878, %v4088, 0.0
        %4094 = vadd.xlane.f32.xlu0 %v4093
        %v4095 = vpop.xlane.xlu0 %4094
        %v4096 = vsel %vm885, %v4089, 0.0
        %4097 = vadd.xlane.f32.xlu0 %v4096
        %v4098 = vpop.xlane.xlu0 %4097
        %v4099 = vmul.f32 %v4092, %v889
        %v4100 = vmul.f32 %v4095, %v889
        %v4101 = vmul.f32 %v4098, %v889
        %v4102 = vadd.f32 %v4099, 1e-05
        %v4103 = vadd.f32 %v4100, 1e-05
        %v4104 = vadd.f32 %v4101, 1e-05
        %v4105 = vrsqrt.pop %v4102
        %v4106 = vrsqrt.pop %v4103
        %v4107 = vrsqrt.pop %v4104
        %v4108 = vmul.f32 %v4084, %v4105
        %v4109 = vmul.f32 %v4085, %v4106
        %v4110 = vmul.f32 %v4086, %v4107
        %v4112 = vlaneseq
        %v4113 = vshrl.u32 %v4112, 7
        %v4114 = vsub.s32 0, %v4113
        %v4115 = vrot.slane %v4069, %v4114
        %v4117 = vmul.f32 %v4108, %v4115
        %v4118 = vmul.f32 %v4109, %v4115
        %v4119 = vmul.f32 %v4110, %v4115
        %v4121 = vlaneseq
        %v4122 = vshrl.u32 %v4121, 7
        %v4123 = vsub.s32 0, %v4122
        %v4124 = vrot.slane %v4071, %v4123
        %v4126 = vadd.f32 %v4117, %v4124
        %v4127 = vadd.f32 %v4118, %v4124
        %v4128 = vadd.f32 %v4119, %v4124
        %s4129 = scalar_lea.vmem %s17, 64
        %v4130 = vld [vmem:[%s4129] sm:$0xff]
        %v4131 = vld [vmem:[%s4129 + $0x8] sm:$0xff]
        %v4132 = vld [vmem:[%s4129 + $0x10] sm:$0xff]
        %v4133 = vld [vmem:[%s4129 + $0x18] sm:$0xff]
        %v4134 = vld [vmem:[%s4129 + $0x20] sm:$0xff]
        %v4135 = vld [vmem:[%s4129 + $0x28] sm:$0xff]
        %v4136 = vld [vmem:[%s4129 + $0x30] sm:$0xff]
        %v4137 = vld [vmem:[%s4129 + $0x38] sm:$0xff]
        %s4138 = scalar_lea.vmem %s18, 1
        %v4139 = vld [vmem:[%s4138] sm:$0x1]
        %v4141 = vlaneseq
        %v4142 = vshrl.u32 %v4141, 7
        %v4143 = vsub.s32 0, %v4142
        %v4144 = vrot.slane %v4139, %v4143
        %v4147 = vsel %vm878, %v4126, 0
        %v4150 = vsel %vm878, %v4127, 0
        %v4153 = vsel %vm878, %v4128, 0
        %4155 = vmatprep.subr.mxu0 0.0
        %4156 = vmatpush1.msra.mxu0 0.0
        %4157 = vmatprep.subr.mxu0 0.0
        %4158 = vmatpush1.msra.mxu0 0.0
        %4159 = vmatprep.subr.mxu0 0.0
        %4160 = vmatpush1.msra.mxu0 0.0
        %4161 = vmatprep.subr.mxu0 0.0
        %4162 = vmatpush1.msra.mxu0 0.0
        %4163 = vmatprep.subr.mxu0 0.0
        %4164 = vmatpush1.msra.mxu0 0.0
        %4165 = vmatprep.subr.mxu0 0.0
        %4166 = vmatpush1.msra.mxu0 0.0
        %4167 = vmatprep.subr.mxu0 0.0
        %4168 = vmatpush1.msra.mxu0 0.0
        %4169 = vmatprep.subr.mxu0 0.0
        %4170 = vmatpush1.msra.mxu0 0.0
        %4171 = vmatprep.subr.mxu0 0.0
        %4172 = vmatpush1.msra.mxu0 %v4137
        %4173 = vmatprep.subr.mxu0 0.0
        %4174 = vmatpush1.msra.mxu0 %v4136
        %4175 = vmatprep.subr.mxu0 0.0
        %4176 = vmatpush1.msra.mxu0 %v4135
        %4177 = vmatprep.subr.mxu0 0.0
        %4178 = vmatpush1.msra.mxu0 %v4134
        %4179 = vmatprep.subr.mxu0 0.0
        %4180 = vmatpush1.msra.mxu0 %v4133
        %4181 = vmatprep.subr.mxu0 0.0
        %4182 = vmatpush1.msra.mxu0 %v4132
        %4183 = vmatprep.subr.mxu0 0.0
        %4184 = vmatpush1.msra.mxu0 %v4131
        %4185 = vmatprep.subr.mxu0 0.0
        %4186 = vmatpush1.msra.mxu0 %v4130
        %4187 = vmatprep.subr.mxu0 0.0
        %4188 = vmatpush2.msra.mxu0 0.0
        %4189 = vmatprep.subr.mxu0 0.0
        %4190 = vmatpush2.msra.mxu0 0.0
        %4191 = vmatprep.subr.mxu0 0.0
        %4192 = vmatpush2.msra.mxu0 0.0
        %4193 = vmatprep.subr.mxu0 0.0
        %4194 = vmatpush2.msra.mxu0 0.0
        %4195 = vmatprep.subr.mxu0 0.0
        %4196 = vmatpush2.msra.mxu0 0.0
        %4197 = vmatprep.subr.mxu0 0.0
        %4198 = vmatpush2.msra.mxu0 0.0
        %4199 = vmatprep.subr.mxu0 0.0
        %4200 = vmatpush2.msra.mxu0 0.0
        %4201 = vmatprep.subr.mxu0 0.0
        %4202 = vmatpush2.msra.mxu0 0.0
        %4203 = vmatprep.subr.mxu0 0.0
        %4204 = vmatpush2.msra.mxu0 0.0
        %4205 = vmatprep.subr.mxu0 0.0
        %4206 = vmatpush2.msra.mxu0 0.0
        %4207 = vmatprep.subr.mxu0 0.0
        %4208 = vmatpush2.msra.mxu0 0.0
        %4209 = vmatprep.subr.mxu0 0.0
        %4210 = vmatpush2.msra.mxu0 0.0
        %4211 = vmatprep.subr.mxu0 0.0
        %4212 = vmatpush2.msra.mxu0 0.0
        %4213 = vmatprep.subr.mxu0 0.0
        %4214 = vmatpush2.msra.mxu0 0.0
        %4215 = vmatprep.subr.mxu0 0.0
        %4216 = vmatpush2.msra.mxu0 0.0
        %4217 = vmatprep.subr.mxu0 0.0
        %4218 = vmatpush2.msra.mxu0 0.0
        %4219 = vmatprep.mubr.f32.mxu0 0.0
        %4220 = vmatmul.mubr.f32.gmra.mxu0 %v4147
        %v4221 = vpop.f32.mrf.mxu0
        %v4222 = vadd.f32 %v4144, %v4221
        %v4223 = vpop.f32.mrf.mxu0
        %4224 = vmatprep.mubr.f32.mxu0 0.0
        %4225 = vmatmul.mubr.f32.gmra.mxu0 %v4150
        %v4226 = vpop.f32.mrf.mxu0
        %v4227 = vadd.f32 %v4144, %v4226
        %v4228 = vpop.f32.mrf.mxu0
        %4229 = vmatprep.mubr.f32.mxu0 0.0
        %4230 = vmatmul.mubr.f32.gmra.mxu0 %v4153
        %v4231 = vpop.f32.mrf.mxu0
        %v4232 = vadd.f32 %v4144, %v4231
        %v4233 = vpop.f32.mrf.mxu0
        %4234 = vdwg.mxu0
        %v4235 = vmul.f32 %v4222, 0.5
        %v4236 = vmul.f32 %v4227, 0.5
        %v4237 = vmul.f32 %v4232, 0.5
        %v4238 = vmul.f32 %v4222, 0.70710677
        %v4239 = vmul.f32 %v4227, 0.70710677
        %v4240 = vmul.f32 %v4232, 0.70710677
        %v4241 = verf.f32.pop %v4238
        %v4242 = verf.f32.pop %v4239
        %v4243 = verf.f32.pop %v4240
        %v4244 = vadd.f32 %v4241, 1.0
        %v4245 = vadd.f32 %v4242, 1.0
        %v4246 = vadd.f32 %v4243, 1.0
        %v4247 = vmul.f32 %v4235, %v4244
        %v4248 = vmul.f32 %v4236, %v4245
        %v4249 = vmul.f32 %v4237, %v4246
        %s4250 = scalar_lea.vmem %s19, 128
        %v4251 = vld [vmem:[%s4250] sm:$0xff]
        %v4252 = vld [vmem:[%s4250 + $0x8] sm:$0xff]
        %v4253 = vld [vmem:[%s4250 + $0x10] sm:$0xff]
        %v4254 = vld [vmem:[%s4250 + $0x18] sm:$0xff]
        %v4255 = vld [vmem:[%s4250 + $0x20] sm:$0xff]
        %v4256 = vld [vmem:[%s4250 + $0x28] sm:$0xff]
        %v4257 = vld [vmem:[%s4250 + $0x30] sm:$0xff]
        %v4258 = vld [vmem:[%s4250 + $0x38] sm:$0xff]
        %v4259 = vld [vmem:[%s4250 + $0x40] sm:$0xff]
        %v4260 = vld [vmem:[%s4250 + $0x48] sm:$0xff]
        %v4261 = vld [vmem:[%s4250 + $0x50] sm:$0xff]
        %v4262 = vld [vmem:[%s4250 + $0x58] sm:$0xff]
        %v4263 = vld [vmem:[%s4250 + $0x60] sm:$0xff]
        %v4264 = vld [vmem:[%s4250 + $0x68] sm:$0xff]
        %v4265 = vld [vmem:[%s4250 + $0x70] sm:$0xff]
        %v4266 = vld [vmem:[%s4250 + $0x78] sm:$0xff]
        %4267 = vmatprep.subr.mxu0 0.0
        %4268 = vmatpush1.msra.mxu0 %v4266
        %4269 = vmatprep.subr.mxu0 0.0
        %4270 = vmatpush1.msra.mxu0 %v4265
        %4271 = vmatprep.subr.mxu0 0.0
        %4272 = vmatpush1.msra.mxu0 %v4264
        %4273 = vmatprep.subr.mxu0 0.0
        %4274 = vmatpush1.msra.mxu0 %v4263
        %4275 = vmatprep.subr.mxu0 0.0
        %4276 = vmatpush1.msra.mxu0 %v4262
        %4277 = vmatprep.subr.mxu0 0.0
        %4278 = vmatpush1.msra.mxu0 %v4261
        %4279 = vmatprep.subr.mxu0 0.0
        %4280 = vmatpush1.msra.mxu0 %v4260
        %4281 = vmatprep.subr.mxu0 0.0
        %4282 = vmatpush1.msra.mxu0 %v4259
        %4283 = vmatprep.subr.mxu0 0.0
        %4284 = vmatpush1.msra.mxu0 %v4258
        %4285 = vmatprep.subr.mxu0 0.0
        %4286 = vmatpush1.msra.mxu0 %v4257
        %4287 = vmatprep.subr.mxu0 0.0
        %4288 = vmatpush1.msra.mxu0 %v4256
        %4289 = vmatprep.subr.mxu0 0.0
        %4290 = vmatpush1.msra.mxu0 %v4255
        %4291 = vmatprep.subr.mxu0 0.0
        %4292 = vmatpush1.msra.mxu0 %v4254
        %4293 = vmatprep.subr.mxu0 0.0
        %4294 = vmatpush1.msra.mxu0 %v4253
        %4295 = vmatprep.subr.mxu0 0.0
        %4296 = vmatpush1.msra.mxu0 %v4252
        %4297 = vmatprep.subr.mxu0 0.0
        %4298 = vmatpush1.msra.mxu0 %v4251
        %4299 = vmatprep.subr.mxu0 0.0
        %4300 = vmatpush2.msra.mxu0 0.0
        %4301 = vmatprep.subr.mxu0 0.0
        %4302 = vmatpush2.msra.mxu0 0.0
        %4303 = vmatprep.subr.mxu0 0.0
        %4304 = vmatpush2.msra.mxu0 0.0
        %4305 = vmatprep.subr.mxu0 0.0
        %4306 = vmatpush2.msra.mxu0 0.0
        %4307 = vmatprep.subr.mxu0 0.0
        %4308 = vmatpush2.msra.mxu0 0.0
        %4309 = vmatprep.subr.mxu0 0.0
        %4310 = vmatpush2.msra.mxu0 0.0
        %4311 = vmatprep.subr.mxu0 0.0
        %4312 = vmatpush2.msra.mxu0 0.0
        %4313 = vmatprep.subr.mxu0 0.0
        %4314 = vmatpush2.msra.mxu0 0.0
        %4315 = vmatprep.subr.mxu0 0.0
        %4316 = vmatpush2.msra.mxu0 0.0
        %4317 = vmatprep.subr.mxu0 0.0
        %4318 = vmatpush2.msra.mxu0 0.0
        %4319 = vmatprep.subr.mxu0 0.0
        %4320 = vmatpush2.msra.mxu0 0.0
        %4321 = vmatprep.subr.mxu0 0.0
        %4322 = vmatpush2.msra.mxu0 0.0
        %4323 = vmatprep.subr.mxu0 0.0
        %4324 = vmatpush2.msra.mxu0 0.0
        %4325 = vmatprep.subr.mxu0 0.0
        %4326 = vmatpush2.msra.mxu0 0.0
        %4327 = vmatprep.subr.mxu0 0.0
        %4328 = vmatpush2.msra.mxu0 0.0
        %4329 = vmatprep.subr.mxu0 0.0
        %4330 = vmatpush2.msra.mxu0 0.0
        %4331 = vmatprep.mubr.f32.mxu0 0.0
        %4332 = vmatmul.mubr.f32.gmra.mxu0 %v4247
        %v4333 = vpop.f32.mrf.mxu0
        %v4334 = vadd.f32 0.0, %v4333
        %v4335 = vpop.f32.mrf.mxu0
        %4336 = vmatprep.mubr.f32.mxu0 0.0
        %4337 = vmatmul.mubr.f32.gmra.mxu0 %v4248
        %v4338 = vpop.f32.mrf.mxu0
        %v4339 = vpop.f32.mrf.mxu0
        %4340 = vmatprep.mubr.f32.mxu0 0.0
        %4341 = vmatmul.mubr.f32.gmra.mxu0 %v4249
        %v4342 = vpop.f32.mrf.mxu0
        %v4343 = vpop.f32.mrf.mxu0
        %4344 = vdwg.mxu0
        %v4345 = vadd.f32 %v4065, %v4334
        %s4346 = scalar_lea.vmem %s20, 1
        %v4347 = vld [vmem:[%s4346] sm:$0x1]
        %v4349 = vlaneseq
        %v4350 = vshrl.u32 %v4349, 7
        %v4351 = vsub.s32 0, %v4350
        %v4352 = vrot.slane %v4347, %v4351
        %v4354 = vadd.f32 %v4345, %v4352
        %v4355 = vld [vmem:[%s21] sm:$0x1]
        %v4356 = vld [vmem:[%s22] sm:$0x1]
        %v4357 = vsel %vm885, %v4354, 0.0
        %4358 = vadd.xlane.f32.xlu0 %v4357
        %v4359 = vpop.xlane.xlu0 %4358
        %v4360 = vmul.f32 %v4359, %v889
        %v4361 = vsub.f32 %v4354, %v4360
        %v4362 = vmul.f32 %v4361, %v4361
        %v4363 = vsel %vm885, %v4362, 0.0
        %4364 = vadd.xlane.f32.xlu0 %v4363
        %v4365 = vpop.xlane.xlu0 %4364
        %v4366 = vmul.f32 %v4365, %v889
        %v4367 = vadd.f32 %v4366, 1e-05
        %v4368 = vrsqrt.pop %v4367
        %v4369 = vmul.f32 %v4361, %v4368
        %v4370 = vmul.f32 %v4369, %v4355
        %v4371 = vadd.f32 %v4370, %v4356
        %v4372 = vld [vmem:[%s23] sm:$0xff]
        %v4373 = vld [vmem:[%s23 + $0x8] sm:$0xff]
        %v4374 = vld [vmem:[%s23 + $0x10] sm:$0xff]
        %v4375 = vld [vmem:[%s23 + $0x18] sm:$0xff]
        %v4376 = vld [vmem:[%s23 + $0x20] sm:$0xff]
        %v4377 = vld [vmem:[%s23 + $0x28] sm:$0xff]
        %v4378 = vld [vmem:[%s23 + $0x30] sm:$0xff]
        %v4379 = vld [vmem:[%s23 + $0x38] sm:$0xff]
        %v4380 = vld [vmem:[%s24] sm:$0x1]
        %v4382 = vsel %vm878, %v4371, 0
        %4384 = vmatprep.subr.mxu0 0.0
        %4385 = vmatpush1.msra.mxu0 0.0
        %4386 = vmatprep.subr.mxu0 0.0
        %4387 = vmatpush1.msra.mxu0 0.0
        %4388 = vmatprep.subr.mxu0 0.0
        %4389 = vmatpush1.msra.mxu0 0.0
        %4390 = vmatprep.subr.mxu0 0.0
        %4391 = vmatpush1.msra.mxu0 0.0
        %4392 = vmatprep.subr.mxu0 0.0
        %4393 = vmatpush1.msra.mxu0 0.0
        %4394 = vmatprep.subr.mxu0 0.0
        %4395 = vmatpush1.msra.mxu0 0.0
        %4396 = vmatprep.subr.mxu0 0.0
        %4397 = vmatpush1.msra.mxu0 0.0
        %4398 = vmatprep.subr.mxu0 0.0
        %4399 = vmatpush1.msra.mxu0 0.0
        %4400 = vmatprep.subr.mxu0 0.0
        %4401 = vmatpush1.msra.mxu0 %v4379
        %4402 = vmatprep.subr.mxu0 0.0
        %4403 = vmatpush1.msra.mxu0 %v4378
        %4404 = vmatprep.subr.mxu0 0.0
        %4405 = vmatpush1.msra.mxu0 %v4377
        %4406 = vmatprep.subr.mxu0 0.0
        %4407 = vmatpush1.msra.mxu0 %v4376
        %4408 = vmatprep.subr.mxu0 0.0
        %4409 = vmatpush1.msra.mxu0 %v4375
        %4410 = vmatprep.subr.mxu0 0.0
        %4411 = vmatpush1.msra.mxu0 %v4374
        %4412 = vmatprep.subr.mxu0 0.0
        %4413 = vmatpush1.msra.mxu0 %v4373
        %4414 = vmatprep.subr.mxu0 0.0
        %4415 = vmatpush1.msra.mxu0 %v4372
        %4416 = vmatprep.subr.mxu0 0.0
        %4417 = vmatpush2.msra.mxu0 0.0
        %4418 = vmatprep.subr.mxu0 0.0
        %4419 = vmatpush2.msra.mxu0 0.0
        %4420 = vmatprep.subr.mxu0 0.0
        %4421 = vmatpush2.msra.mxu0 0.0
        %4422 = vmatprep.subr.mxu0 0.0
        %4423 = vmatpush2.msra.mxu0 0.0
        %4424 = vmatprep.subr.mxu0 0.0
        %4425 = vmatpush2.msra.mxu0 0.0
        %4426 = vmatprep.subr.mxu0 0.0
        %4427 = vmatpush2.msra.mxu0 0.0
        %4428 = vmatprep.subr.mxu0 0.0
        %4429 = vmatpush2.msra.mxu0 0.0
        %4430 = vmatprep.subr.mxu0 0.0
        %4431 = vmatpush2.msra.mxu0 0.0
        %4432 = vmatprep.subr.mxu0 0.0
        %4433 = vmatpush2.msra.mxu0 0.0
        %4434 = vmatprep.subr.mxu0 0.0
        %4435 = vmatpush2.msra.mxu0 0.0
        %4436 = vmatprep.subr.mxu0 0.0
        %4437 = vmatpush2.msra.mxu0 0.0
        %4438 = vmatprep.subr.mxu0 0.0
        %4439 = vmatpush2.msra.mxu0 0.0
        %4440 = vmatprep.subr.mxu0 0.0
        %4441 = vmatpush2.msra.mxu0 0.0
        %4442 = vmatprep.subr.mxu0 0.0
        %4443 = vmatpush2.msra.mxu0 0.0
        %4444 = vmatprep.subr.mxu0 0.0
        %4445 = vmatpush2.msra.mxu0 0.0
        %4446 = vmatprep.subr.mxu0 0.0
        %4447 = vmatpush2.msra.mxu0 0.0
        %4448 = vmatprep.mubr.f32.mxu0 0.0
        %4449 = vmatmul.mubr.f32.gmra.mxu0 %v4382
        %v4450 = vpop.f32.mrf.mxu0
        %v4451 = vadd.f32 %v4380, %v4450
        %v4452 = vpop.f32.mrf.mxu0
        %4453 = vdwg.mxu0
        %vm4454 = vcmask 122880
        %4455 = vst.msk [vmem:[%s756] sm:$0x1] %vm4454, %v4451
        %s4456 = sand.u32 %s577, 1
        %s4457 = scalar_lea.sflag [#allocation3], %s4456
        %s4458 = sand.u32 %s577, 1
        %s4459 = scalar_lea.vmem [#allocation2], %s4458
        // Predicated region
        $region121: #{vit_forward.1} parent=119 // pred_check
          %p4460 = pneg %p587
        $region122: #{vit_forward.1} parent=119 // pred_check_branch
          %4462 = sbr.rel (%p4460) target = $region124
        $region123: #{vit_forward.1} parent=119 // pred_region
          %s4464 = ssub.s32 16, 16
          %4465 = vsyncadd %s4457, %s4464
          %s4466 = smul.addr %s39, 16
          %s4467 = scalar_lea.hbm %s25, %s4466
          %s4469 = sshll.u32 %s4459, 4
          %s4470 = int_to_ptr.vmem [resolvable:$true] %s4469
          %4472 = dma.vmem_to_hbm [thread:$0]  %s4470, 16, %s4467, %s4457
        $region124: #{vit_forward.1} parent=119 // pred_fallthru
          _
      $region120: #{vit_forward.1} parent=5 // pred_fallthru
        _
      %p4473 = scmp.le.s32.totalorder 2, %s34
      // Predicated region
      $region125: #{vit_forward.1} parent=5 // pred_check
        %p4474 = pneg %p4473
      $region126: #{vit_forward.1} parent=5 // pred_check_branch
        %4476 = sbr.rel (%p4474) target = $region128
      $region127: #{vit_forward.1} parent=5 // pred_region
        %s4477 = ssub.s32 %s34, 2
        // Predicated region
        $region129: #{vit_forward.1} parent=127 // pred_check
          %p4478 = pneg %p593
        $region130: #{vit_forward.1} parent=127 // pred_check_branch
          %4480 = sbr.rel (%p4478) target = $region132
        $region131: #{vit_forward.1} parent=127 // pred_region
          %s4481 = sand.u32 %s578, 1
          %s4482 = scalar_lea.sflag [#allocation3], %s4481
          %s4483 = sand.u32 %s578, 1
          %s4484 = scalar_lea.vmem [#allocation2], %s4483
          %4485 = dma.done %s4482, 16
        $region132: #{vit_forward.1} parent=127 // pred_fallthru
          _
      $region128: #{vit_forward.1} parent=5 // pred_fallthru
        _
    $region6: #{vit_forward.1} parent=1 // loop_footer
      %s38 = sadd.s32 1, %s34
    $region7: #{vit_forward.1} parent=1 // loop_footer_branch
      %33 = sbr.rel target = $region3
    $region8: #{vit_forward.1} parent=1 // loop_exit
      _
    %4486 = vsyncpa [#allocation3], 1
    %s4487 = scalar_lea.sflag [#allocation3], 1
    %4488 = vsyncpa %s4487, 1

</llo_original>
